<compile_context>
chip_gen: v6e
topology: v6e:2x2x1
jax: 0.10.0
libtpu: 0.0.40
codegen_flags: <defaults>
</compile_context>

<pallas_src>
import jax
import jax.numpy as jnp
from jax.experimental import pallas as pl
from jax.experimental.pallas import tpu as pltpu


def _round_up(x, m):
    return (x + m - 1) // m * m


def _batch_block(n):
    """Grid policy: fold the batch on single-TC chips, shard it on v7x."""
    try:
        kind = jax.devices()[0].device_kind.lower()
    except Exception:
        kind = ""
    if "v7" in kind and n % 2 == 0:
        return 1   # grid=(N,) "parallel" -> both v7x TensorCores get work
    return n       # grid=(1,)            -> no per-step overhead on 1-TC chips
    # TODO(synk): for N == 1 on v7x a lane-split parallel axis would be needed
    #             to occupy the second TensorCore.


@jax.jit
def out_block_forward(x_ncdhw, weight):
    """Dense-equivalent OutBlock forward (3x3x3 conv, same padding, no bias, ReLU).

    x_ncdhw : (N, Cin, D, H, W) float32
    weight  : (3, 3, 3, Cin, Cout) float32
    returns : (N, Cout, D, H, W) float32
    """
    N, Cin, D, H, W = x_ncdhw.shape
    Cout = weight.shape[-1]
    Hp, Wp = H + 2, W + 2
    plane = Hp * Wp

    # Lane-dense output length over the padded-stride index q = d*Hp*Wp + h*Wp + w.
    l_out = _round_up(D * plane, 128)
    max_off = 2 * plane + 2 * Wp + 2                  # largest tap offset
    # Single merged pad: over-pad D (high side) so the flattened padded volume
    # already covers every shifted slab read (>= l_out + max_off).
    Dpad = max(D + 2, -(-(l_out + max_off) // plane))
    l_in = Dpad * plane

    bn = _batch_block(N)
    K = 27 * Cin

    # One pad, one reshape, one cast (all fused under jit) -- no transposes.
    x_pad = jnp.pad(x_ncdhw, ((0, 0), (0, 0), (1, Dpad - D - 1), (1, 1), (1, 1)))
    x_flat = x_pad.reshape(N, Cin, l_in).astype(jnp.bfloat16)

    # Weight as one matmul-ready (Cout, 27*Cin) slab; K index = tap*Cin + cin.
    w2 = jnp.transpose(weight, (4, 0, 1, 2, 3)).reshape(Cout, K).astype(jnp.bfloat16)

    def kernel(x_ref, w_ref, o_ref, stack_ref):
        # x_ref:     (bn, Cin, l_in)   bf16  flattened zero-padded volume(s)
        # w_ref:     (Cout, 27*Cin)    bf16  resident across the grid
        # o_ref:     (bn, Cout, l_out) f32   padded-stride output (lane-dense)
        # stack_ref: (27*Cin, l_out)   bf16  VMEM im2col scratch
        for n in range(bn):
            t = 0
            for kd in range(3):
                for kh in range(3):
                    for kw in range(3):
                        off = kd * plane + kh * Wp + kw
                        stack_ref[t * Cin:(t + 1) * Cin, :] = \
                            x_ref[n, :, off:off + l_out]
                        t += 1
            # One MXU contraction over K = 27*Cin (f32 accumulate).
            acc = jnp.dot(w_ref[...], stack_ref[...],
                          preferred_element_type=jnp.float32)
            o_ref[n] = jnp.maximum(acc, 0.0).astype(o_ref.dtype)   # ReLU

    out_flat = pl.pallas_call(
        kernel,
        out_shape=jax.ShapeDtypeStruct((N, Cout, l_out), jnp.float32),
        grid=(N // bn,),
        in_specs=[
            pl.BlockSpec((bn, Cin, l_in), lambda i: (i, 0, 0)),
            pl.BlockSpec((Cout, K), lambda i: (0, 0)),
        ],
        out_specs=pl.BlockSpec((bn, Cout, l_out), lambda i: (i, 0, 0)),
        scratch_shapes=[pltpu.VMEM((K, l_out), jnp.bfloat16)],
        compiler_params=pltpu.CompilerParams(
            dimension_semantics=("parallel",),
        ),
    )(x_flat, w2)

    # Drop throwaway lanes: keep q = d*Hp*Wp + h*Wp + w with h < H, w < W.
    # (Pure slicing; fuses with the consumer under jit.)
    out = out_flat[:, :, :D * plane].reshape(N, Cout, D, Hp, Wp)
    return out[:, :, :, :H, :W]


if __name__ == "__main__":
    key = jax.random.PRNGKey(0)
    k_x, k_w = jax.random.split(key)

    N, Cin, Cout = 2, 4, 8
    D = H = W = 8

    x = jax.random.normal(k_x, (N, Cin, D, H, W), dtype=jnp.float32)
    # Deterministic weight init (kaiming-ish scale), shape (kd, kh, kw, Cin, Cout).
    fan_in = Cin * 3 * 3 * 3
    weight = jax.random.normal(k_w, (3, 3, 3, Cin, Cout), dtype=jnp.float32) * (2.0 / fan_in) ** 0.5

    out = jax.block_until_ready(out_block_forward(x, weight))

    # Reference: dense conv3d + ReLU via lax on the same bf16-rounded inputs
    # (the kernel computes bf16 x bf16 with f32 accumulation on the MXU).
    x_r = x.astype(jnp.bfloat16).astype(jnp.float32)
    w_r = weight.astype(jnp.bfloat16).astype(jnp.float32)
    w_oidhw = jnp.transpose(w_r, (4, 3, 0, 1, 2))   # (Cout, Cin, kd, kh, kw)
    ref = jax.lax.conv_general_dilated(
        x_r, w_oidhw, window_strides=(1, 1, 1), padding="SAME",
        dimension_numbers=("NCDHW", "OIDHW", "NCDHW"),
        precision=jax.lax.Precision.HIGHEST,
    )
    ref = jnp.maximum(ref, 0.0)

    assert out.shape == (N, Cout, D, H, W)
    assert jnp.allclose(out, ref, atol=2e-3, rtol=2e-3), "mismatch vs lax reference"
    print("KERNEL_OK")
</pallas_src>

<mosaic_0001>
module attributes {stable_mosaic.version = 11 : i64} {
  func.func @kernel(%arg0: i32, %arg1: memref<2x4x1200xbf16, #tpu.memory_space<vmem>>, %arg2: memref<8x108xbf16, #tpu.memory_space<vmem>>, %arg3: memref<2x8x896xf32, #tpu.memory_space<vmem>>, %arg4: memref<108x896xbf16, #tpu.memory_space<vmem>>) attributes {dimension_semantics = [#tpu.dimension_semantics<parallel>], iteration_bounds = array<i64: 1>, scalar_prefetch = 0 : i64, scratch_operands = 1 : i64, tpu.core_type = #tpu.core_type<tc>, window_params = [{transform_indices = @transform_0, window_bounds = array<i64: 2, 4, 1200>}, {pipeline_mode = #tpu.pipeline_mode<synchronous>, transform_indices = @transform_1, window_bounds = array<i64: 8, 108>}, {transform_indices = @transform_2, window_bounds = array<i64: 2, 8, 896>}]} {
    %c0 = arith.constant 0 : index
    %c0_0 = arith.constant 0 : index
    %c0_1 = arith.constant 0 : index
    %0 = vector.load %arg1[%c0, %c0_0, %c0_1] : memref<2x4x1200xbf16, #tpu.memory_space<vmem>>, vector<1x4x896xbf16>
    %1 = vector.shape_cast %0 : vector<1x4x896xbf16> to vector<4x896xbf16>
    %c0_2 = arith.constant 0 : index
    %c0_3 = arith.constant 0 : index
    %2 = vector.load %arg4[%c0_2, %c0_3] : memref<108x896xbf16, #tpu.memory_space<vmem>>, vector<4x896xbf16>
    tpu.vector_store %arg4[%c0_2, %c0_3], %1 {strides = array<i32>} : memref<108x896xbf16, #tpu.memory_space<vmem>>, vector<4x896xbf16>,
    %c0_4 = arith.constant 0 : index
    %c0_5 = arith.constant 0 : index
    %c1 = arith.constant 1 : index
    %3 = vector.load %arg1[%c0_4, %c0_5, %c1] : memref<2x4x1200xbf16, #tpu.memory_space<vmem>>, vector<1x4x896xbf16>
    %4 = vector.shape_cast %3 : vector<1x4x896xbf16> to vector<4x896xbf16>
    %c4 = arith.constant 4 : index
    %c0_6 = arith.constant 0 : index
    %5 = vector.load %arg4[%c4, %c0_6] : memref<108x896xbf16, #tpu.memory_space<vmem>>, vector<4x896xbf16>
    tpu.vector_store %arg4[%c4, %c0_6], %4 {strides = array<i32>} : memref<108x896xbf16, #tpu.memory_space<vmem>>, vector<4x896xbf16>,
    %c0_7 = arith.constant 0 : index
    %c0_8 = arith.constant 0 : index
    %c2 = arith.constant 2 : index
    %6 = vector.load %arg1[%c0_7, %c0_8, %c2] : memref<2x4x1200xbf16, #tpu.memory_space<vmem>>, vector<1x4x896xbf16>
    %7 = vector.shape_cast %6 : vector<1x4x896xbf16> to vector<4x896xbf16>
    %c8 = arith.constant 8 : index
    %c0_9 = arith.constant 0 : index
    %8 = vector.load %arg4[%c8, %c0_9] : memref<108x896xbf16, #tpu.memory_space<vmem>>, vector<4x896xbf16>
    tpu.vector_store %arg4[%c8, %c0_9], %7 {strides = array<i32>} : memref<108x896xbf16, #tpu.memory_space<vmem>>, vector<4x896xbf16>,
    %c0_10 = arith.constant 0 : index
    %c0_11 = arith.constant 0 : index
    %c10 = arith.constant 10 : index
    %9 = vector.load %arg1[%c0_10, %c0_11, %c10] : memref<2x4x1200xbf16, #tpu.memory_space<vmem>>, vector<1x4x896xbf16>
    %10 = vector.shape_cast %9 : vector<1x4x896xbf16> to vector<4x896xbf16>
    %c12 = arith.constant 12 : index
    %c0_12 = arith.constant 0 : index
    %11 = vector.load %arg4[%c12, %c0_12] : memref<108x896xbf16, #tpu.memory_space<vmem>>, vector<4x896xbf16>
    tpu.vector_store %arg4[%c12, %c0_12], %10 {strides = array<i32>} : memref<108x896xbf16, #tpu.memory_space<vmem>>, vector<4x896xbf16>,
    %c0_13 = arith.constant 0 : index
    %c0_14 = arith.constant 0 : index
    %c11 = arith.constant 11 : index
    %12 = vector.load %arg1[%c0_13, %c0_14, %c11] : memref<2x4x1200xbf16, #tpu.memory_space<vmem>>, vector<1x4x896xbf16>
    %13 = vector.shape_cast %12 : vector<1x4x896xbf16> to vector<4x896xbf16>
    %c16 = arith.constant 16 : index
    %c0_15 = arith.constant 0 : index
    %14 = vector.load %arg4[%c16, %c0_15] : memref<108x896xbf16, #tpu.memory_space<vmem>>, vector<4x896xbf16>
    tpu.vector_store %arg4[%c16, %c0_15], %13 {strides = array<i32>} : memref<108x896xbf16, #tpu.memory_space<vmem>>, vector<4x896xbf16>,
    %c0_16 = arith.constant 0 : index
    %c0_17 = arith.constant 0 : index
    %c12_18 = arith.constant 12 : index
    %15 = vector.load %arg1[%c0_16, %c0_17, %c12_18] : memref<2x4x1200xbf16, #tpu.memory_space<vmem>>, vector<1x4x896xbf16>
    %16 = vector.shape_cast %15 : vector<1x4x896xbf16> to vector<4x896xbf16>
    %c20 = arith.constant 20 : index
    %c0_19 = arith.constant 0 : index
    %17 = vector.load %arg4[%c20, %c0_19] : memref<108x896xbf16, #tpu.memory_space<vmem>>, vector<4x896xbf16>
    tpu.vector_store %arg4[%c20, %c0_19], %16 {strides = array<i32>} : memref<108x896xbf16, #tpu.memory_space<vmem>>, vector<4x896xbf16>,
    %c0_20 = arith.constant 0 : index
    %c0_21 = arith.constant 0 : index
    %c20_22 = arith.constant 20 : index
    %18 = vector.load %arg1[%c0_20, %c0_21, %c20_22] : memref<2x4x1200xbf16, #tpu.memory_space<vmem>>, vector<1x4x896xbf16>
    %19 = vector.shape_cast %18 : vector<1x4x896xbf16> to vector<4x896xbf16>
    %c24 = arith.constant 24 : index
    %c0_23 = arith.constant 0 : index
    %20 = vector.load %arg4[%c24, %c0_23] : memref<108x896xbf16, #tpu.memory_space<vmem>>, vector<4x896xbf16>
    tpu.vector_store %arg4[%c24, %c0_23], %19 {strides = array<i32>} : memref<108x896xbf16, #tpu.memory_space<vmem>>, vector<4x896xbf16>,
    %c0_24 = arith.constant 0 : index
    %c0_25 = arith.constant 0 : index
    %c21 = arith.constant 21 : index
    %21 = vector.load %arg1[%c0_24, %c0_25, %c21] : memref<2x4x1200xbf16, #tpu.memory_space<vmem>>, vector<1x4x896xbf16>
    %22 = vector.shape_cast %21 : vector<1x4x896xbf16> to vector<4x896xbf16>
    %c28 = arith.constant 28 : index
    %c0_26 = arith.constant 0 : index
    %23 = vector.load %arg4[%c28, %c0_26] : memref<108x896xbf16, #tpu.memory_space<vmem>>, vector<4x896xbf16>
    tpu.vector_store %arg4[%c28, %c0_26], %22 {strides = array<i32>} : memref<108x896xbf16, #tpu.memory_space<vmem>>, vector<4x896xbf16>,
    %c0_27 = arith.constant 0 : index
    %c0_28 = arith.constant 0 : index
    %c22 = arith.constant 22 : index
    %24 = vector.load %arg1[%c0_27, %c0_28, %c22] : memref<2x4x1200xbf16, #tpu.memory_space<vmem>>, vector<1x4x896xbf16>
    %25 = vector.shape_cast %24 : vector<1x4x896xbf16> to vector<4x896xbf16>
    %c32 = arith.constant 32 : index
    %c0_29 = arith.constant 0 : index
    %26 = vector.load %arg4[%c32, %c0_29] : memref<108x896xbf16, #tpu.memory_space<vmem>>, vector<4x896xbf16>
    tpu.vector_store %arg4[%c32, %c0_29], %25 {strides = array<i32>} : memref<108x896xbf16, #tpu.memory_space<vmem>>, vector<4x896xbf16>,
    %c0_30 = arith.constant 0 : index
    %c0_31 = arith.constant 0 : index
    %c100 = arith.constant 100 : index
    %27 = vector.load %arg1[%c0_30, %c0_31, %c100] : memref<2x4x1200xbf16, #tpu.memory_space<vmem>>, vector<1x4x896xbf16>
    %28 = vector.shape_cast %27 : vector<1x4x896xbf16> to vector<4x896xbf16>
    %c36 = arith.constant 36 : index
    %c0_32 = arith.constant 0 : index
    %29 = vector.load %arg4[%c36, %c0_32] : memref<108x896xbf16, #tpu.memory_space<vmem>>, vector<4x896xbf16>
    tpu.vector_store %arg4[%c36, %c0_32], %28 {strides = array<i32>} : memref<108x896xbf16, #tpu.memory_space<vmem>>, vector<4x896xbf16>,
    %c0_33 = arith.constant 0 : index
    %c0_34 = arith.constant 0 : index
    %c101 = arith.constant 101 : index
    %30 = vector.load %arg1[%c0_33, %c0_34, %c101] : memref<2x4x1200xbf16, #tpu.memory_space<vmem>>, vector<1x4x896xbf16>
    %31 = vector.shape_cast %30 : vector<1x4x896xbf16> to vector<4x896xbf16>
    %c40 = arith.constant 40 : index
    %c0_35 = arith.constant 0 : index
    %32 = vector.load %arg4[%c40, %c0_35] : memref<108x896xbf16, #tpu.memory_space<vmem>>, vector<4x896xbf16>
    tpu.vector_store %arg4[%c40, %c0_35], %31 {strides = array<i32>} : memref<108x896xbf16, #tpu.memory_space<vmem>>, vector<4x896xbf16>,
    %c0_36 = arith.constant 0 : index
    %c0_37 = arith.constant 0 : index
    %c102 = arith.constant 102 : index
    %33 = vector.load %arg1[%c0_36, %c0_37, %c102] : memref<2x4x1200xbf16, #tpu.memory_space<vmem>>, vector<1x4x896xbf16>
    %34 = vector.shape_cast %33 : vector<1x4x896xbf16> to vector<4x896xbf16>
    %c44 = arith.constant 44 : index
    %c0_38 = arith.constant 0 : index
    %35 = vector.load %arg4[%c44, %c0_38] : memref<108x896xbf16, #tpu.memory_space<vmem>>, vector<4x896xbf16>
    tpu.vector_store %arg4[%c44, %c0_38], %34 {strides = array<i32>} : memref<108x896xbf16, #tpu.memory_space<vmem>>, vector<4x896xbf16>,
    %c0_39 = arith.constant 0 : index
    %c0_40 = arith.constant 0 : index
    %c110 = arith.constant 110 : index
    %36 = vector.load %arg1[%c0_39, %c0_40, %c110] : memref<2x4x1200xbf16, #tpu.memory_space<vmem>>, vector<1x4x896xbf16>
    %37 = vector.shape_cast %36 : vector<1x4x896xbf16> to vector<4x896xbf16>
    %c48 = arith.constant 48 : index
    %c0_41 = arith.constant 0 : index
    %38 = vector.load %arg4[%c48, %c0_41] : memref<108x896xbf16, #tpu.memory_space<vmem>>, vector<4x896xbf16>
    tpu.vector_store %arg4[%c48, %c0_41], %37 {strides = array<i32>} : memref<108x896xbf16, #tpu.memory_space<vmem>>, vector<4x896xbf16>,
    %c0_42 = arith.constant 0 : index
    %c0_43 = arith.constant 0 : index
    %c111 = arith.constant 111 : index
    %39 = vector.load %arg1[%c0_42, %c0_43, %c111] : memref<2x4x1200xbf16, #tpu.memory_space<vmem>>, vector<1x4x896xbf16>
    %40 = vector.shape_cast %39 : vector<1x4x896xbf16> to vector<4x896xbf16>
    %c52 = arith.constant 52 : index
    %c0_44 = arith.constant 0 : index
    %41 = vector.load %arg4[%c52, %c0_44] : memref<108x896xbf16, #tpu.memory_space<vmem>>, vector<4x896xbf16>
    tpu.vector_store %arg4[%c52, %c0_44], %40 {strides = array<i32>} : memref<108x896xbf16, #tpu.memory_space<vmem>>, vector<4x896xbf16>,
    %c0_45 = arith.constant 0 : index
    %c0_46 = arith.constant 0 : index
    %c112 = arith.constant 112 : index
    %42 = vector.load %arg1[%c0_45, %c0_46, %c112] : memref<2x4x1200xbf16, #tpu.memory_space<vmem>>, vector<1x4x896xbf16>
    %43 = vector.shape_cast %42 : vector<1x4x896xbf16> to vector<4x896xbf16>
    %c56 = arith.constant 56 : index
    %c0_47 = arith.constant 0 : index
    %44 = vector.load %arg4[%c56, %c0_47] : memref<108x896xbf16, #tpu.memory_space<vmem>>, vector<4x896xbf16>
    tpu.vector_store %arg4[%c56, %c0_47], %43 {strides = array<i32>} : memref<108x896xbf16, #tpu.memory_space<vmem>>, vector<4x896xbf16>,
    %c0_48 = arith.constant 0 : index
    %c0_49 = arith.constant 0 : index
    %c120 = arith.constant 120 : index
    %45 = vector.load %arg1[%c0_48, %c0_49, %c120] : memref<2x4x1200xbf16, #tpu.memory_space<vmem>>, vector<1x4x896xbf16>
    %46 = vector.shape_cast %45 : vector<1x4x896xbf16> to vector<4x896xbf16>
    %c60 = arith.constant 60 : index
    %c0_50 = arith.constant 0 : index
    %47 = vector.load %arg4[%c60, %c0_50] : memref<108x896xbf16, #tpu.memory_space<vmem>>, vector<4x896xbf16>
    tpu.vector_store %arg4[%c60, %c0_50], %46 {strides = array<i32>} : memref<108x896xbf16, #tpu.memory_space<vmem>>, vector<4x896xbf16>,
    %c0_51 = arith.constant 0 : index
    %c0_52 = arith.constant 0 : index
    %c121 = arith.constant 121 : index
    %48 = vector.load %arg1[%c0_51, %c0_52, %c121] : memref<2x4x1200xbf16, #tpu.memory_space<vmem>>, vector<1x4x896xbf16>
    %49 = vector.shape_cast %48 : vector<1x4x896xbf16> to vector<4x896xbf16>
    %c64 = arith.constant 64 : index
    %c0_53 = arith.constant 0 : index
    %50 = vector.load %arg4[%c64, %c0_53] : memref<108x896xbf16, #tpu.memory_space<vmem>>, vector<4x896xbf16>
    tpu.vector_store %arg4[%c64, %c0_53], %49 {strides = array<i32>} : memref<108x896xbf16, #tpu.memory_space<vmem>>, vector<4x896xbf16>,
    %c0_54 = arith.constant 0 : index
    %c0_55 = arith.constant 0 : index
    %c122 = arith.constant 122 : index
    %51 = vector.load %arg1[%c0_54, %c0_55, %c122] : memref<2x4x1200xbf16, #tpu.memory_space<vmem>>, vector<1x4x896xbf16>
    %52 = vector.shape_cast %51 : vector<1x4x896xbf16> to vector<4x896xbf16>
    %c68 = arith.constant 68 : index
    %c0_56 = arith.constant 0 : index
    %53 = vector.load %arg4[%c68, %c0_56] : memref<108x896xbf16, #tpu.memory_space<vmem>>, vector<4x896xbf16>
    tpu.vector_store %arg4[%c68, %c0_56], %52 {strides = array<i32>} : memref<108x896xbf16, #tpu.memory_space<vmem>>, vector<4x896xbf16>,
    %c0_57 = arith.constant 0 : index
    %c0_58 = arith.constant 0 : index
    %c200 = arith.constant 200 : index
    %54 = vector.load %arg1[%c0_57, %c0_58, %c200] : memref<2x4x1200xbf16, #tpu.memory_space<vmem>>, vector<1x4x896xbf16>
    %55 = vector.shape_cast %54 : vector<1x4x896xbf16> to vector<4x896xbf16>
    %c72 = arith.constant 72 : index
    %c0_59 = arith.constant 0 : index
    %56 = vector.load %arg4[%c72, %c0_59] : memref<108x896xbf16, #tpu.memory_space<vmem>>, vector<4x896xbf16>
    tpu.vector_store %arg4[%c72, %c0_59], %55 {strides = array<i32>} : memref<108x896xbf16, #tpu.memory_space<vmem>>, vector<4x896xbf16>,
    %c0_60 = arith.constant 0 : index
    %c0_61 = arith.constant 0 : index
    %c201 = arith.constant 201 : index
    %57 = vector.load %arg1[%c0_60, %c0_61, %c201] : memref<2x4x1200xbf16, #tpu.memory_space<vmem>>, vector<1x4x896xbf16>
    %58 = vector.shape_cast %57 : vector<1x4x896xbf16> to vector<4x896xbf16>
    %c76 = arith.constant 76 : index
    %c0_62 = arith.constant 0 : index
    %59 = vector.load %arg4[%c76, %c0_62] : memref<108x896xbf16, #tpu.memory_space<vmem>>, vector<4x896xbf16>
    tpu.vector_store %arg4[%c76, %c0_62], %58 {strides = array<i32>} : memref<108x896xbf16, #tpu.memory_space<vmem>>, vector<4x896xbf16>,
    %c0_63 = arith.constant 0 : index
    %c0_64 = arith.constant 0 : index
    %c202 = arith.constant 202 : index
    %60 = vector.load %arg1[%c0_63, %c0_64, %c202] : memref<2x4x1200xbf16, #tpu.memory_space<vmem>>, vector<1x4x896xbf16>
    %61 = vector.shape_cast %60 : vector<1x4x896xbf16> to vector<4x896xbf16>
    %c80 = arith.constant 80 : index
    %c0_65 = arith.constant 0 : index
    %62 = vector.load %arg4[%c80, %c0_65] : memref<108x896xbf16, #tpu.memory_space<vmem>>, vector<4x896xbf16>
    tpu.vector_store %arg4[%c80, %c0_65], %61 {strides = array<i32>} : memref<108x896xbf16, #tpu.memory_space<vmem>>, vector<4x896xbf16>,
    %c0_66 = arith.constant 0 : index
    %c0_67 = arith.constant 0 : index
    %c210 = arith.constant 210 : index
    %63 = vector.load %arg1[%c0_66, %c0_67, %c210] : memref<2x4x1200xbf16, #tpu.memory_space<vmem>>, vector<1x4x896xbf16>
    %64 = vector.shape_cast %63 : vector<1x4x896xbf16> to vector<4x896xbf16>
    %c84 = arith.constant 84 : index
    %c0_68 = arith.constant 0 : index
    %65 = vector.load %arg4[%c84, %c0_68] : memref<108x896xbf16, #tpu.memory_space<vmem>>, vector<4x896xbf16>
    tpu.vector_store %arg4[%c84, %c0_68], %64 {strides = array<i32>} : memref<108x896xbf16, #tpu.memory_space<vmem>>, vector<4x896xbf16>,
    %c0_69 = arith.constant 0 : index
    %c0_70 = arith.constant 0 : index
    %c211 = arith.constant 211 : index
    %66 = vector.load %arg1[%c0_69, %c0_70, %c211] : memref<2x4x1200xbf16, #tpu.memory_space<vmem>>, vector<1x4x896xbf16>
    %67 = vector.shape_cast %66 : vector<1x4x896xbf16> to vector<4x896xbf16>
    %c88 = arith.constant 88 : index
    %c0_71 = arith.constant 0 : index
    %68 = vector.load %arg4[%c88, %c0_71] : memref<108x896xbf16, #tpu.memory_space<vmem>>, vector<4x896xbf16>
    tpu.vector_store %arg4[%c88, %c0_71], %67 {strides = array<i32>} : memref<108x896xbf16, #tpu.memory_space<vmem>>, vector<4x896xbf16>,
    %c0_72 = arith.constant 0 : index
    %c0_73 = arith.constant 0 : index
    %c212 = arith.constant 212 : index
    %69 = vector.load %arg1[%c0_72, %c0_73, %c212] : memref<2x4x1200xbf16, #tpu.memory_space<vmem>>, vector<1x4x896xbf16>
    %70 = vector.shape_cast %69 : vector<1x4x896xbf16> to vector<4x896xbf16>
    %c92 = arith.constant 92 : index
    %c0_74 = arith.constant 0 : index
    %71 = vector.load %arg4[%c92, %c0_74] : memref<108x896xbf16, #tpu.memory_space<vmem>>, vector<4x896xbf16>
    tpu.vector_store %arg4[%c92, %c0_74], %70 {strides = array<i32>} : memref<108x896xbf16, #tpu.memory_space<vmem>>, vector<4x896xbf16>,
    %c0_75 = arith.constant 0 : index
    %c0_76 = arith.constant 0 : index
    %c220 = arith.constant 220 : index
    %72 = vector.load %arg1[%c0_75, %c0_76, %c220] : memref<2x4x1200xbf16, #tpu.memory_space<vmem>>, vector<1x4x896xbf16>
    %73 = vector.shape_cast %72 : vector<1x4x896xbf16> to vector<4x896xbf16>
    %c96 = arith.constant 96 : index
    %c0_77 = arith.constant 0 : index
    %74 = vector.load %arg4[%c96, %c0_77] : memref<108x896xbf16, #tpu.memory_space<vmem>>, vector<4x896xbf16>
    tpu.vector_store %arg4[%c96, %c0_77], %73 {strides = array<i32>} : memref<108x896xbf16, #tpu.memory_space<vmem>>, vector<4x896xbf16>,
    %c0_78 = arith.constant 0 : index
    %c0_79 = arith.constant 0 : index
    %c221 = arith.constant 221 : index
    %75 = vector.load %arg1[%c0_78, %c0_79, %c221] : memref<2x4x1200xbf16, #tpu.memory_space<vmem>>, vector<1x4x896xbf16>
    %76 = vector.shape_cast %75 : vector<1x4x896xbf16> to vector<4x896xbf16>
    %c100_80 = arith.constant 100 : index
    %c0_81 = arith.constant 0 : index
    %77 = vector.load %arg4[%c100_80, %c0_81] : memref<108x896xbf16, #tpu.memory_space<vmem>>, vector<4x896xbf16>
    tpu.vector_store %arg4[%c100_80, %c0_81], %76 {strides = array<i32>} : memref<108x896xbf16, #tpu.memory_space<vmem>>, vector<4x896xbf16>,
    %c0_82 = arith.constant 0 : index
    %c0_83 = arith.constant 0 : index
    %c222 = arith.constant 222 : index
    %78 = vector.load %arg1[%c0_82, %c0_83, %c222] : memref<2x4x1200xbf16, #tpu.memory_space<vmem>>, vector<1x4x896xbf16>
    %79 = vector.shape_cast %78 : vector<1x4x896xbf16> to vector<4x896xbf16>
    %c104 = arith.constant 104 : index
    %c0_84 = arith.constant 0 : index
    %80 = vector.load %arg4[%c104, %c0_84] : memref<108x896xbf16, #tpu.memory_space<vmem>>, vector<4x896xbf16>
    tpu.vector_store %arg4[%c104, %c0_84], %79 {strides = array<i32>} : memref<108x896xbf16, #tpu.memory_space<vmem>>, vector<4x896xbf16>,
    %c0_85 = arith.constant 0 : index
    %c0_86 = arith.constant 0 : index
    %81 = vector.load %arg2[%c0_85, %c0_86] : memref<8x108xbf16, #tpu.memory_space<vmem>>, vector<8x108xbf16>
    %c0_87 = arith.constant 0 : index
    %c0_88 = arith.constant 0 : index
    %82 = vector.load %arg4[%c0_87, %c0_88] : memref<108x896xbf16, #tpu.memory_space<vmem>>, vector<108x896xbf16>
    %cst = arith.constant dense<0.000000e+00> : vector<8x896xf32>
    %83 = tpu.matmul %81, %82, %cst {dimension_numbers = #tpu.dot_dimension_numbers<[1], [0], [0], [1], [0, 0, 1, 1], [], []>} : vector<8x108xbf16>, vector<108x896xbf16>, vector<8x896xf32> -> vector<8x896xf32>
    %cst_89 = arith.constant 0.000000e+00 : f32
    %84 = vector.broadcast %cst_89 : f32 to vector<8x896xf32>
    %85 = arith.maximumf %83, %84 : vector<8x896xf32>
    %c0_90 = arith.constant 0 : index
    %c0_91 = arith.constant 0 : index
    %c0_92 = arith.constant 0 : index
    %86 = vector.load %arg3[%c0_90, %c0_91, %c0_92] : memref<2x8x896xf32, #tpu.memory_space<vmem>>, vector<1x8x896xf32>
    %87 = vector.shape_cast %86 : vector<1x8x896xf32> to vector<8x896xf32>
    %88 = vector.shape_cast %85 : vector<8x896xf32> to vector<1x8x896xf32>
    tpu.vector_store %arg3[%c0_90, %c0_91, %c0_92], %88 {strides = array<i32>} : memref<2x8x896xf32, #tpu.memory_space<vmem>>, vector<1x8x896xf32>,
    %c1_93 = arith.constant 1 : index
    %c0_94 = arith.constant 0 : index
    %c0_95 = arith.constant 0 : index
    %89 = vector.load %arg1[%c1_93, %c0_94, %c0_95] : memref<2x4x1200xbf16, #tpu.memory_space<vmem>>, vector<1x4x896xbf16>
    %90 = vector.shape_cast %89 : vector<1x4x896xbf16> to vector<4x896xbf16>
    %c0_96 = arith.constant 0 : index
    %c0_97 = arith.constant 0 : index
    %91 = vector.load %arg4[%c0_96, %c0_97] : memref<108x896xbf16, #tpu.memory_space<vmem>>, vector<4x896xbf16>
    tpu.vector_store %arg4[%c0_96, %c0_97], %90 {strides = array<i32>} : memref<108x896xbf16, #tpu.memory_space<vmem>>, vector<4x896xbf16>,
    %c1_98 = arith.constant 1 : index
    %c0_99 = arith.constant 0 : index
    %c1_100 = arith.constant 1 : index
    %92 = vector.load %arg1[%c1_98, %c0_99, %c1_100] : memref<2x4x1200xbf16, #tpu.memory_space<vmem>>, vector<1x4x896xbf16>
    %93 = vector.shape_cast %92 : vector<1x4x896xbf16> to vector<4x896xbf16>
    %c4_101 = arith.constant 4 : index
    %c0_102 = arith.constant 0 : index
    %94 = vector.load %arg4[%c4_101, %c0_102] : memref<108x896xbf16, #tpu.memory_space<vmem>>, vector<4x896xbf16>
    tpu.vector_store %arg4[%c4_101, %c0_102], %93 {strides = array<i32>} : memref<108x896xbf16, #tpu.memory_space<vmem>>, vector<4x896xbf16>,
    %c1_103 = arith.constant 1 : index
    %c0_104 = arith.constant 0 : index
    %c2_105 = arith.constant 2 : index
    %95 = vector.load %arg1[%c1_103, %c0_104, %c2_105] : memref<2x4x1200xbf16, #tpu.memory_space<vmem>>, vector<1x4x896xbf16>
    %96 = vector.shape_cast %95 : vector<1x4x896xbf16> to vector<4x896xbf16>
    %c8_106 = arith.constant 8 : index
    %c0_107 = arith.constant 0 : index
    %97 = vector.load %arg4[%c8_106, %c0_107] : memref<108x896xbf16, #tpu.memory_space<vmem>>, vector<4x896xbf16>
    tpu.vector_store %arg4[%c8_106, %c0_107], %96 {strides = array<i32>} : memref<108x896xbf16, #tpu.memory_space<vmem>>, vector<4x896xbf16>,
    %c1_108 = arith.constant 1 : index
    %c0_109 = arith.constant 0 : index
    %c10_110 = arith.constant 10 : index
    %98 = vector.load %arg1[%c1_108, %c0_109, %c10_110] : memref<2x4x1200xbf16, #tpu.memory_space<vmem>>, vector<1x4x896xbf16>
    %99 = vector.shape_cast %98 : vector<1x4x896xbf16> to vector<4x896xbf16>
    %c12_111 = arith.constant 12 : index
    %c0_112 = arith.constant 0 : index
    %100 = vector.load %arg4[%c12_111, %c0_112] : memref<108x896xbf16, #tpu.memory_space<vmem>>, vector<4x896xbf16>
    tpu.vector_store %arg4[%c12_111, %c0_112], %99 {strides = array<i32>} : memref<108x896xbf16, #tpu.memory_space<vmem>>, vector<4x896xbf16>,
    %c1_113 = arith.constant 1 : index
    %c0_114 = arith.constant 0 : index
    %c11_115 = arith.constant 11 : index
    %101 = vector.load %arg1[%c1_113, %c0_114, %c11_115] : memref<2x4x1200xbf16, #tpu.memory_space<vmem>>, vector<1x4x896xbf16>
    %102 = vector.shape_cast %101 : vector<1x4x896xbf16> to vector<4x896xbf16>
    %c16_116 = arith.constant 16 : index
    %c0_117 = arith.constant 0 : index
    %103 = vector.load %arg4[%c16_116, %c0_117] : memref<108x896xbf16, #tpu.memory_space<vmem>>, vector<4x896xbf16>
    tpu.vector_store %arg4[%c16_116, %c0_117], %102 {strides = array<i32>} : memref<108x896xbf16, #tpu.memory_space<vmem>>, vector<4x896xbf16>,
    %c1_118 = arith.constant 1 : index
    %c0_119 = arith.constant 0 : index
    %c12_120 = arith.constant 12 : index
    %104 = vector.load %arg1[%c1_118, %c0_119, %c12_120] : memref<2x4x1200xbf16, #tpu.memory_space<vmem>>, vector<1x4x896xbf16>
    %105 = vector.shape_cast %104 : vector<1x4x896xbf16> to vector<4x896xbf16>
    %c20_121 = arith.constant 20 : index
    %c0_122 = arith.constant 0 : index
    %106 = vector.load %arg4[%c20_121, %c0_122] : memref<108x896xbf16, #tpu.memory_space<vmem>>, vector<4x896xbf16>
    tpu.vector_store %arg4[%c20_121, %c0_122], %105 {strides = array<i32>} : memref<108x896xbf16, #tpu.memory_space<vmem>>, vector<4x896xbf16>,
    %c1_123 = arith.constant 1 : index
    %c0_124 = arith.constant 0 : index
    %c20_125 = arith.constant 20 : index
    %107 = vector.load %arg1[%c1_123, %c0_124, %c20_125] : memref<2x4x1200xbf16, #tpu.memory_space<vmem>>, vector<1x4x896xbf16>
    %108 = vector.shape_cast %107 : vector<1x4x896xbf16> to vector<4x896xbf16>
    %c24_126 = arith.constant 24 : index
    %c0_127 = arith.constant 0 : index
    %109 = vector.load %arg4[%c24_126, %c0_127] : memref<108x896xbf16, #tpu.memory_space<vmem>>, vector<4x896xbf16>
    tpu.vector_store %arg4[%c24_126, %c0_127], %108 {strides = array<i32>} : memref<108x896xbf16, #tpu.memory_space<vmem>>, vector<4x896xbf16>,
    %c1_128 = arith.constant 1 : index
    %c0_129 = arith.constant 0 : index
    %c21_130 = arith.constant 21 : index
    %110 = vector.load %arg1[%c1_128, %c0_129, %c21_130] : memref<2x4x1200xbf16, #tpu.memory_space<vmem>>, vector<1x4x896xbf16>
    %111 = vector.shape_cast %110 : vector<1x4x896xbf16> to vector<4x896xbf16>
    %c28_131 = arith.constant 28 : index
    %c0_132 = arith.constant 0 : index
    %112 = vector.load %arg4[%c28_131, %c0_132] : memref<108x896xbf16, #tpu.memory_space<vmem>>, vector<4x896xbf16>
    tpu.vector_store %arg4[%c28_131, %c0_132], %111 {strides = array<i32>} : memref<108x896xbf16, #tpu.memory_space<vmem>>, vector<4x896xbf16>,
    %c1_133 = arith.constant 1 : index
    %c0_134 = arith.constant 0 : index
    %c22_135 = arith.constant 22 : index
    %113 = vector.load %arg1[%c1_133, %c0_134, %c22_135] : memref<2x4x1200xbf16, #tpu.memory_space<vmem>>, vector<1x4x896xbf16>
    %114 = vector.shape_cast %113 : vector<1x4x896xbf16> to vector<4x896xbf16>
    %c32_136 = arith.constant 32 : index
    %c0_137 = arith.constant 0 : index
    %115 = vector.load %arg4[%c32_136, %c0_137] : memref<108x896xbf16, #tpu.memory_space<vmem>>, vector<4x896xbf16>
    tpu.vector_store %arg4[%c32_136, %c0_137], %114 {strides = array<i32>} : memref<108x896xbf16, #tpu.memory_space<vmem>>, vector<4x896xbf16>,
    %c1_138 = arith.constant 1 : index
    %c0_139 = arith.constant 0 : index
    %c100_140 = arith.constant 100 : index
    %116 = vector.load %arg1[%c1_138, %c0_139, %c100_140] : memref<2x4x1200xbf16, #tpu.memory_space<vmem>>, vector<1x4x896xbf16>
    %117 = vector.shape_cast %116 : vector<1x4x896xbf16> to vector<4x896xbf16>
    %c36_141 = arith.constant 36 : index
    %c0_142 = arith.constant 0 : index
    %118 = vector.load %arg4[%c36_141, %c0_142] : memref<108x896xbf16, #tpu.memory_space<vmem>>, vector<4x896xbf16>
    tpu.vector_store %arg4[%c36_141, %c0_142], %117 {strides = array<i32>} : memref<108x896xbf16, #tpu.memory_space<vmem>>, vector<4x896xbf16>,
    %c1_143 = arith.constant 1 : index
    %c0_144 = arith.constant 0 : index
    %c101_145 = arith.constant 101 : index
    %119 = vector.load %arg1[%c1_143, %c0_144, %c101_145] : memref<2x4x1200xbf16, #tpu.memory_space<vmem>>, vector<1x4x896xbf16>
    %120 = vector.shape_cast %119 : vector<1x4x896xbf16> to vector<4x896xbf16>
    %c40_146 = arith.constant 40 : index
    %c0_147 = arith.constant 0 : index
    %121 = vector.load %arg4[%c40_146, %c0_147] : memref<108x896xbf16, #tpu.memory_space<vmem>>, vector<4x896xbf16>
    tpu.vector_store %arg4[%c40_146, %c0_147], %120 {strides = array<i32>} : memref<108x896xbf16, #tpu.memory_space<vmem>>, vector<4x896xbf16>,
    %c1_148 = arith.constant 1 : index
    %c0_149 = arith.constant 0 : index
    %c102_150 = arith.constant 102 : index
    %122 = vector.load %arg1[%c1_148, %c0_149, %c102_150] : memref<2x4x1200xbf16, #tpu.memory_space<vmem>>, vector<1x4x896xbf16>
    %123 = vector.shape_cast %122 : vector<1x4x896xbf16> to vector<4x896xbf16>
    %c44_151 = arith.constant 44 : index
    %c0_152 = arith.constant 0 : index
    %124 = vector.load %arg4[%c44_151, %c0_152] : memref<108x896xbf16, #tpu.memory_space<vmem>>, vector<4x896xbf16>
    tpu.vector_store %arg4[%c44_151, %c0_152], %123 {strides = array<i32>} : memref<108x896xbf16, #tpu.memory_space<vmem>>, vector<4x896xbf16>,
    %c1_153 = arith.constant 1 : index
    %c0_154 = arith.constant 0 : index
    %c110_155 = arith.constant 110 : index
    %125 = vector.load %arg1[%c1_153, %c0_154, %c110_155] : memref<2x4x1200xbf16, #tpu.memory_space<vmem>>, vector<1x4x896xbf16>
    %126 = vector.shape_cast %125 : vector<1x4x896xbf16> to vector<4x896xbf16>
    %c48_156 = arith.constant 48 : index
    %c0_157 = arith.constant 0 : index
    %127 = vector.load %arg4[%c48_156, %c0_157] : memref<108x896xbf16, #tpu.memory_space<vmem>>, vector<4x896xbf16>
    tpu.vector_store %arg4[%c48_156, %c0_157], %126 {strides = array<i32>} : memref<108x896xbf16, #tpu.memory_space<vmem>>, vector<4x896xbf16>,
    %c1_158 = arith.constant 1 : index
    %c0_159 = arith.constant 0 : index
    %c111_160 = arith.constant 111 : index
    %128 = vector.load %arg1[%c1_158, %c0_159, %c111_160] : memref<2x4x1200xbf16, #tpu.memory_space<vmem>>, vector<1x4x896xbf16>
    %129 = vector.shape_cast %128 : vector<1x4x896xbf16> to vector<4x896xbf16>
    %c52_161 = arith.constant 52 : index
    %c0_162 = arith.constant 0 : index
    %130 = vector.load %arg4[%c52_161, %c0_162] : memref<108x896xbf16, #tpu.memory_space<vmem>>, vector<4x896xbf16>
    tpu.vector_store %arg4[%c52_161, %c0_162], %129 {strides = array<i32>} : memref<108x896xbf16, #tpu.memory_space<vmem>>, vector<4x896xbf16>,
    %c1_163 = arith.constant 1 : index
    %c0_164 = arith.constant 0 : index
    %c112_165 = arith.constant 112 : index
    %131 = vector.load %arg1[%c1_163, %c0_164, %c112_165] : memref<2x4x1200xbf16, #tpu.memory_space<vmem>>, vector<1x4x896xbf16>
    %132 = vector.shape_cast %131 : vector<1x4x896xbf16> to vector<4x896xbf16>
    %c56_166 = arith.constant 56 : index
    %c0_167 = arith.constant 0 : index
    %133 = vector.load %arg4[%c56_166, %c0_167] : memref<108x896xbf16, #tpu.memory_space<vmem>>, vector<4x896xbf16>
    tpu.vector_store %arg4[%c56_166, %c0_167], %132 {strides = array<i32>} : memref<108x896xbf16, #tpu.memory_space<vmem>>, vector<4x896xbf16>,
    %c1_168 = arith.constant 1 : index
    %c0_169 = arith.constant 0 : index
    %c120_170 = arith.constant 120 : index
    %134 = vector.load %arg1[%c1_168, %c0_169, %c120_170] : memref<2x4x1200xbf16, #tpu.memory_space<vmem>>, vector<1x4x896xbf16>
    %135 = vector.shape_cast %134 : vector<1x4x896xbf16> to vector<4x896xbf16>
    %c60_171 = arith.constant 60 : index
    %c0_172 = arith.constant 0 : index
    %136 = vector.load %arg4[%c60_171, %c0_172] : memref<108x896xbf16, #tpu.memory_space<vmem>>, vector<4x896xbf16>
    tpu.vector_store %arg4[%c60_171, %c0_172], %135 {strides = array<i32>} : memref<108x896xbf16, #tpu.memory_space<vmem>>, vector<4x896xbf16>,
    %c1_173 = arith.constant 1 : index
    %c0_174 = arith.constant 0 : index
    %c121_175 = arith.constant 121 : index
    %137 = vector.load %arg1[%c1_173, %c0_174, %c121_175] : memref<2x4x1200xbf16, #tpu.memory_space<vmem>>, vector<1x4x896xbf16>
    %138 = vector.shape_cast %137 : vector<1x4x896xbf16> to vector<4x896xbf16>
    %c64_176 = arith.constant 64 : index
    %c0_177 = arith.constant 0 : index
    %139 = vector.load %arg4[%c64_176, %c0_177] : memref<108x896xbf16, #tpu.memory_space<vmem>>, vector<4x896xbf16>
    tpu.vector_store %arg4[%c64_176, %c0_177], %138 {strides = array<i32>} : memref<108x896xbf16, #tpu.memory_space<vmem>>, vector<4x896xbf16>,
    %c1_178 = arith.constant 1 : index
    %c0_179 = arith.constant 0 : index
    %c122_180 = arith.constant 122 : index
    %140 = vector.load %arg1[%c1_178, %c0_179, %c122_180] : memref<2x4x1200xbf16, #tpu.memory_space<vmem>>, vector<1x4x896xbf16>
    %141 = vector.shape_cast %140 : vector<1x4x896xbf16> to vector<4x896xbf16>
    %c68_181 = arith.constant 68 : index
    %c0_182 = arith.constant 0 : index
    %142 = vector.load %arg4[%c68_181, %c0_182] : memref<108x896xbf16, #tpu.memory_space<vmem>>, vector<4x896xbf16>
    tpu.vector_store %arg4[%c68_181, %c0_182], %141 {strides = array<i32>} : memref<108x896xbf16, #tpu.memory_space<vmem>>, vector<4x896xbf16>,
    %c1_183 = arith.constant 1 : index
    %c0_184 = arith.constant 0 : index
    %c200_185 = arith.constant 200 : index
    %143 = vector.load %arg1[%c1_183, %c0_184, %c200_185] : memref<2x4x1200xbf16, #tpu.memory_space<vmem>>, vector<1x4x896xbf16>
    %144 = vector.shape_cast %143 : vector<1x4x896xbf16> to vector<4x896xbf16>
    %c72_186 = arith.constant 72 : index
    %c0_187 = arith.constant 0 : index
    %145 = vector.load %arg4[%c72_186, %c0_187] : memref<108x896xbf16, #tpu.memory_space<vmem>>, vector<4x896xbf16>
    tpu.vector_store %arg4[%c72_186, %c0_187], %144 {strides = array<i32>} : memref<108x896xbf16, #tpu.memory_space<vmem>>, vector<4x896xbf16>,
    %c1_188 = arith.constant 1 : index
    %c0_189 = arith.constant 0 : index
    %c201_190 = arith.constant 201 : index
    %146 = vector.load %arg1[%c1_188, %c0_189, %c201_190] : memref<2x4x1200xbf16, #tpu.memory_space<vmem>>, vector<1x4x896xbf16>
    %147 = vector.shape_cast %146 : vector<1x4x896xbf16> to vector<4x896xbf16>
    %c76_191 = arith.constant 76 : index
    %c0_192 = arith.constant 0 : index
    %148 = vector.load %arg4[%c76_191, %c0_192] : memref<108x896xbf16, #tpu.memory_space<vmem>>, vector<4x896xbf16>
    tpu.vector_store %arg4[%c76_191, %c0_192], %147 {strides = array<i32>} : memref<108x896xbf16, #tpu.memory_space<vmem>>, vector<4x896xbf16>,
    %c1_193 = arith.constant 1 : index
    %c0_194 = arith.constant 0 : index
    %c202_195 = arith.constant 202 : index
    %149 = vector.load %arg1[%c1_193, %c0_194, %c202_195] : memref<2x4x1200xbf16, #tpu.memory_space<vmem>>, vector<1x4x896xbf16>
    %150 = vector.shape_cast %149 : vector<1x4x896xbf16> to vector<4x896xbf16>
    %c80_196 = arith.constant 80 : index
    %c0_197 = arith.constant 0 : index
    %151 = vector.load %arg4[%c80_196, %c0_197] : memref<108x896xbf16, #tpu.memory_space<vmem>>, vector<4x896xbf16>
    tpu.vector_store %arg4[%c80_196, %c0_197], %150 {strides = array<i32>} : memref<108x896xbf16, #tpu.memory_space<vmem>>, vector<4x896xbf16>,
    %c1_198 = arith.constant 1 : index
    %c0_199 = arith.constant 0 : index
    %c210_200 = arith.constant 210 : index
    %152 = vector.load %arg1[%c1_198, %c0_199, %c210_200] : memref<2x4x1200xbf16, #tpu.memory_space<vmem>>, vector<1x4x896xbf16>
    %153 = vector.shape_cast %152 : vector<1x4x896xbf16> to vector<4x896xbf16>
    %c84_201 = arith.constant 84 : index
    %c0_202 = arith.constant 0 : index
    %154 = vector.load %arg4[%c84_201, %c0_202] : memref<108x896xbf16, #tpu.memory_space<vmem>>, vector<4x896xbf16>
    tpu.vector_store %arg4[%c84_201, %c0_202], %153 {strides = array<i32>} : memref<108x896xbf16, #tpu.memory_space<vmem>>, vector<4x896xbf16>,
    %c1_203 = arith.constant 1 : index
    %c0_204 = arith.constant 0 : index
    %c211_205 = arith.constant 211 : index
    %155 = vector.load %arg1[%c1_203, %c0_204, %c211_205] : memref<2x4x1200xbf16, #tpu.memory_space<vmem>>, vector<1x4x896xbf16>
    %156 = vector.shape_cast %155 : vector<1x4x896xbf16> to vector<4x896xbf16>
    %c88_206 = arith.constant 88 : index
    %c0_207 = arith.constant 0 : index
    %157 = vector.load %arg4[%c88_206, %c0_207] : memref<108x896xbf16, #tpu.memory_space<vmem>>, vector<4x896xbf16>
    tpu.vector_store %arg4[%c88_206, %c0_207], %156 {strides = array<i32>} : memref<108x896xbf16, #tpu.memory_space<vmem>>, vector<4x896xbf16>,
    %c1_208 = arith.constant 1 : index
    %c0_209 = arith.constant 0 : index
    %c212_210 = arith.constant 212 : index
    %158 = vector.load %arg1[%c1_208, %c0_209, %c212_210] : memref<2x4x1200xbf16, #tpu.memory_space<vmem>>, vector<1x4x896xbf16>
    %159 = vector.shape_cast %158 : vector<1x4x896xbf16> to vector<4x896xbf16>
    %c92_211 = arith.constant 92 : index
    %c0_212 = arith.constant 0 : index
    %160 = vector.load %arg4[%c92_211, %c0_212] : memref<108x896xbf16, #tpu.memory_space<vmem>>, vector<4x896xbf16>
    tpu.vector_store %arg4[%c92_211, %c0_212], %159 {strides = array<i32>} : memref<108x896xbf16, #tpu.memory_space<vmem>>, vector<4x896xbf16>,
    %c1_213 = arith.constant 1 : index
    %c0_214 = arith.constant 0 : index
    %c220_215 = arith.constant 220 : index
    %161 = vector.load %arg1[%c1_213, %c0_214, %c220_215] : memref<2x4x1200xbf16, #tpu.memory_space<vmem>>, vector<1x4x896xbf16>
    %162 = vector.shape_cast %161 : vector<1x4x896xbf16> to vector<4x896xbf16>
    %c96_216 = arith.constant 96 : index
    %c0_217 = arith.constant 0 : index
    %163 = vector.load %arg4[%c96_216, %c0_217] : memref<108x896xbf16, #tpu.memory_space<vmem>>, vector<4x896xbf16>
    tpu.vector_store %arg4[%c96_216, %c0_217], %162 {strides = array<i32>} : memref<108x896xbf16, #tpu.memory_space<vmem>>, vector<4x896xbf16>,
    %c1_218 = arith.constant 1 : index
    %c0_219 = arith.constant 0 : index
    %c221_220 = arith.constant 221 : index
    %164 = vector.load %arg1[%c1_218, %c0_219, %c221_220] : memref<2x4x1200xbf16, #tpu.memory_space<vmem>>, vector<1x4x896xbf16>
    %165 = vector.shape_cast %164 : vector<1x4x896xbf16> to vector<4x896xbf16>
    %c100_221 = arith.constant 100 : index
    %c0_222 = arith.constant 0 : index
    %166 = vector.load %arg4[%c100_221, %c0_222] : memref<108x896xbf16, #tpu.memory_space<vmem>>, vector<4x896xbf16>
    tpu.vector_store %arg4[%c100_221, %c0_222], %165 {strides = array<i32>} : memref<108x896xbf16, #tpu.memory_space<vmem>>, vector<4x896xbf16>,
    %c1_223 = arith.constant 1 : index
    %c0_224 = arith.constant 0 : index
    %c222_225 = arith.constant 222 : index
    %167 = vector.load %arg1[%c1_223, %c0_224, %c222_225] : memref<2x4x1200xbf16, #tpu.memory_space<vmem>>, vector<1x4x896xbf16>
    %168 = vector.shape_cast %167 : vector<1x4x896xbf16> to vector<4x896xbf16>
    %c104_226 = arith.constant 104 : index
    %c0_227 = arith.constant 0 : index
    %169 = vector.load %arg4[%c104_226, %c0_227] : memref<108x896xbf16, #tpu.memory_space<vmem>>, vector<4x896xbf16>
    tpu.vector_store %arg4[%c104_226, %c0_227], %168 {strides = array<i32>} : memref<108x896xbf16, #tpu.memory_space<vmem>>, vector<4x896xbf16>,
    %c0_228 = arith.constant 0 : index
    %c0_229 = arith.constant 0 : index
    %170 = vector.load %arg2[%c0_228, %c0_229] : memref<8x108xbf16, #tpu.memory_space<vmem>>, vector<8x108xbf16>
    %c0_230 = arith.constant 0 : index
    %c0_231 = arith.constant 0 : index
    %171 = vector.load %arg4[%c0_230, %c0_231] : memref<108x896xbf16, #tpu.memory_space<vmem>>, vector<108x896xbf16>
    %cst_232 = arith.constant dense<0.000000e+00> : vector<8x896xf32>
    %172 = tpu.matmul %170, %171, %cst_232 {dimension_numbers = #tpu.dot_dimension_numbers<[1], [0], [0], [1], [0, 0, 1, 1], [], []>} : vector<8x108xbf16>, vector<108x896xbf16>, vector<8x896xf32> -> vector<8x896xf32>
    %cst_233 = arith.constant 0.000000e+00 : f32
    %173 = vector.broadcast %cst_233 : f32 to vector<8x896xf32>
    %174 = arith.maximumf %172, %173 : vector<8x896xf32>
    %c1_234 = arith.constant 1 : index
    %c0_235 = arith.constant 0 : index
    %c0_236 = arith.constant 0 : index
    %175 = vector.load %arg3[%c1_234, %c0_235, %c0_236] : memref<2x8x896xf32, #tpu.memory_space<vmem>>, vector<1x8x896xf32>
    %176 = vector.shape_cast %175 : vector<1x8x896xf32> to vector<8x896xf32>
    %177 = vector.shape_cast %174 : vector<8x896xf32> to vector<1x8x896xf32>
    tpu.vector_store %arg3[%c1_234, %c0_235, %c0_236], %177 {strides = array<i32>} : memref<2x8x896xf32, #tpu.memory_space<vmem>>, vector<1x8x896xf32>,
    return
  }
  func.func @transform_0(%arg0: i32) -> (i32, i32, i32) {
    %c0_i32 = arith.constant 0 : i32
    %c0_i32_0 = arith.constant 0 : i32
    %c0_i32_1 = arith.constant 0 : i32
    return %arg0, %c0_i32, %c0_i32_0 : i32, i32, i32
  }
  func.func @transform_1(%arg0: i32) -> (i32, i32) {
    %c0_i32 = arith.constant 0 : i32
    %c0_i32_0 = arith.constant 0 : i32
    %c0_i32_1 = arith.constant 0 : i32
    return %c0_i32, %c0_i32_0 : i32, i32
  }
  func.func @transform_2(%arg0: i32) -> (i32, i32, i32) {
    %c0_i32 = arith.constant 0 : i32
    %c0_i32_0 = arith.constant 0 : i32
    %c0_i32_1 = arith.constant 0 : i32
    return %arg0, %c0_i32, %c0_i32_0 : i32, i32, i32
  }
}

</mosaic_0001>

<llo_original>
// kernel: out_block_forward.1
$region0: #{out_block_forward.1}
  #allocation0 [shape = 'u32[]', space=smem, size = 0x4, offset = 0x4, fixed_abs, tag = 'smem constant byte address 0x4 - core index']
  #allocation1 [shape = 'u32[144,128]{1,0:T(1,128)}', space=vmem, size = 0x12000, scoped, tag = 'internal scratch']
  #allocation2 [shape = 'bf16[108,896]{1,0:T(8,128)(2,1)}', space=vmem, size = 0x31000, scoped, tag = 'scratch operand']
  %s0 = inlined_call_operand.vmem [shape: bf16[2,4,1200], index: 0, kind: input, shape index: {}]
  %s1 = inlined_call_operand.vmem [shape: bf16[8,108], index: 1, kind: input, shape index: {}]
  %s2 = inlined_call_operand.vmem [shape: f32[2,8,896], index: 2, kind: output, shape index: {}]
  %s3 = sld [smem:[#allocation0]]
  $region18: #{out_block_forward.1} parent=0
    _
  %s5 = ssub.s32 1, %s3
  %s6 = scalar_select 0, %s5, %s3
  // Predicated region
  $region2: #{out_block_forward.1} parent=0 // pred_check
    _
  $region3: #{out_block_forward.1} parent=0 // pred_check_branch
    %8 = sbr.rel (0) target = $region5
  $region4: #{out_block_forward.1} parent=0 // pred_region
    _
  $region5: #{out_block_forward.1} parent=0 // pred_fallthru
    _
  // Predicated region
  $region6: #{out_block_forward.1} parent=0 // pred_check
    _
  $region7: #{out_block_forward.1} parent=0 // pred_check_branch
    %10 = sbr.rel (0) target = $region9
  $region8: #{out_block_forward.1} parent=0 // pred_region
    _
  $region9: #{out_block_forward.1} parent=0 // pred_fallthru
    _
  %v12 = vld [vmem:[%s0] sm:$0xff]
  %v13 = vld [vmem:[%s0 + $0x8] sm:$0x3f]
  %v16 = vcombine.high %v12, %v12
  %v18 = vunpack.c.l.s4 1983009808
  %v19 = vunpack.c.0.s8 %v18
  %v20 = vlaneseq
  %v21 = vshrl.u32 %v20, 7
  %v22 = vsub.s32 %v19, %v21
  %v23 = vrot.slane %v12, %v22
  %v25 = vunpack.c.l.s4 1983009808
  %v26 = vunpack.c.0.s8 %v25
  %v27 = vlaneseq
  %v28 = vshrl.u32 %v27, 7
  %v29 = vsub.s32 %v26, %v28
  %v30 = vrot.slane %v16, %v29
  %v31 = vcombine.high %v13, %v13
  %v33 = vunpack.c.l.s4 1983009808
  %v34 = vunpack.c.0.s8 %v33
  %v35 = vlaneseq
  %v36 = vshrl.u32 %v35, 7
  %v37 = vsub.s32 %v34, %v36
  %v38 = vrot.slane %v13, %v37
  %v40 = vunpack.c.l.s4 1983009808
  %v41 = vunpack.c.0.s8 %v40
  %v42 = vlaneseq
  %v43 = vshrl.u32 %v42, 7
  %v44 = vsub.s32 %v41, %v43
  %v45 = vrot.slane %v31, %v44
  %50 = vst [vmem:[#allocation2] sm:$0x33] %v23
  %51 = vst [vmem:[#allocation2 + $0x8] sm:$0x33] %v30
  %52 = vst [vmem:[#allocation2 + $0x10] sm:$0x33] %v38
  %53 = vst [vmem:[#allocation2 + $0x18] sm:$0x3] %v45
  %v54 = vld [vmem:[%s0] sm:$0xff]
  %v55 = vld [vmem:[%s0 + $0x8] sm:$0xff]
  %v58 = vcombine.low %v54, %v54
  %v60 = vunpack.c.l.s4 1983009808
  %v61 = vunpack.c.0.s8 %v60
  %v62 = vlaneseq
  %v63 = vshrl.u32 %v62, 7
  %v64 = vsub.s32 %v61, %v63
  %v65 = vrot.slane %v58, %v64
  %v67 = vunpack.c.l.s4 1983009808
  %v68 = vunpack.c.0.s8 %v67
  %v69 = vlaneseq
  %v70 = vshrl.u32 %v69, 7
  %v71 = vsub.s32 %v68, %v70
  %v72 = vrot.slane %v54, %v71
  %v73 = vcombine.low %v55, %v55
  %v75 = vunpack.c.l.s4 1983009808
  %v76 = vunpack.c.0.s8 %v75
  %v77 = vlaneseq
  %v78 = vshrl.u32 %v77, 7
  %v79 = vsub.s32 %v76, %v78
  %v80 = vrot.slane %v73, %v79
  %v82 = vunpack.c.l.s4 1983009808
  %v83 = vunpack.c.0.s8 %v82
  %v84 = vlaneseq
  %v85 = vshrl.u32 %v84, 7
  %v86 = vsub.s32 %v83, %v85
  %v87 = vrot.slane %v55, %v86
  %88 = vrot.lane.b32.xlu0 %v65, 127
  %v89 = vpop.permute.xlu0 %88
  %90 = vrot.lane.b32.xlu0 %v72, 127
  %v91 = vpop.permute.xlu0 %90
  %92 = vrot.lane.b32.xlu0 %v80, 127
  %v93 = vpop.permute.xlu0 %92
  %94 = vrot.lane.b32.xlu0 %v87, 127
  %v95 = vpop.permute.xlu0 %94
  %v96 = vrot.slane %v89, 4
  %v97 = vrot.slane %v91, 4
  %v98 = vrot.slane %v93, 4
  %v99 = vrot.slane %v95, 4
  %vm100 = vcmask 1043456
  %v101 = vsel %vm100, %v96, %v97
  %vm102 = vcmask 1039360
  %v103 = vsel %vm102, %v89, %v101
  %v104 = vsel %vm100, %v97, %v98
  %v105 = vsel %vm102, %v91, %v104
  %v106 = vsel %vm100, %v98, %v99
  %v107 = vsel %vm102, %v93, %v106
  %v108 = vsel %vm102, %v95, %v99
  %113 = vst [vmem:[#allocation2] sm:$0xcc] %v103
  %114 = vst [vmem:[#allocation2 + $0x8] sm:$0xcc] %v105
  %115 = vst [vmem:[#allocation2 + $0x10] sm:$0xcc] %v107
  %116 = vst [vmem:[#allocation2 + $0x18] sm:$0xc] %v108
  %v117 = vld [vmem:[%s0] sm:$0xff]
  %v118 = vld [vmem:[%s0 + $0x8] sm:$0xff]
  %v121 = vcombine.high %v117, %v117
  %v123 = vunpack.c.l.s4 1983009808
  %v124 = vunpack.c.0.s8 %v123
  %v125 = vlaneseq
  %v126 = vshrl.u32 %v125, 7
  %v127 = vsub.s32 %v124, %v126
  %v128 = vrot.slane %v117, %v127
  %v130 = vunpack.c.l.s4 1983009808
  %v131 = vunpack.c.0.s8 %v130
  %v132 = vlaneseq
  %v133 = vshrl.u32 %v132, 7
  %v134 = vsub.s32 %v131, %v133
  %v135 = vrot.slane %v121, %v134
  %v136 = vcombine.high %v118, %v118
  %v138 = vunpack.c.l.s4 1983009808
  %v139 = vunpack.c.0.s8 %v138
  %v140 = vlaneseq
  %v141 = vshrl.u32 %v140, 7
  %v142 = vsub.s32 %v139, %v141
  %v143 = vrot.slane %v118, %v142
  %v145 = vunpack.c.l.s4 1983009808
  %v146 = vunpack.c.0.s8 %v145
  %v147 = vlaneseq
  %v148 = vshrl.u32 %v147, 7
  %v149 = vsub.s32 %v146, %v148
  %v150 = vrot.slane %v136, %v149
  %151 = vrot.lane.b32.xlu0 %v128, 126
  %v152 = vpop.permute.xlu0 %151
  %153 = vrot.lane.b32.xlu0 %v135, 126
  %v154 = vpop.permute.xlu0 %153
  %155 = vrot.lane.b32.xlu0 %v143, 126
  %v156 = vpop.permute.xlu0 %155
  %157 = vrot.lane.b32.xlu0 %v150, 126
  %v158 = vpop.permute.xlu0 %157
  %v159 = vrot.slane %v152, 4
  %v160 = vrot.slane %v154, 4
  %v161 = vrot.slane %v156, 4
  %v162 = vrot.slane %v158, 4
  %v163 = vsel %vm100, %v159, %v160
  %vm164 = vcmask 1031168
  %v165 = vsel %vm164, %v152, %v163
  %v166 = vsel %vm100, %v160, %v161
  %v167 = vsel %vm164, %v154, %v166
  %v168 = vsel %vm100, %v161, %v162
  %v169 = vsel %vm164, %v156, %v168
  %v170 = vsel %vm164, %v158, %v162
  %175 = vst [vmem:[#allocation2 + $0x1c] sm:$0x33] %v165
  %176 = vst [vmem:[#allocation2 + $0x24] sm:$0x33] %v167
  %177 = vst [vmem:[#allocation2 + $0x2c] sm:$0x33] %v169
  %178 = vst [vmem:[#allocation2 + $0x34] sm:$0x3] %v170
  %v179 = vld [vmem:[%s0] sm:$0xff]
  %v180 = vld [vmem:[%s0 + $0x8] sm:$0xff]
  %v183 = vcombine.low %v179, %v179
  %v185 = vunpack.c.l.s4 1983009808
  %v186 = vunpack.c.0.s8 %v185
  %v187 = vlaneseq
  %v188 = vshrl.u32 %v187, 7
  %v189 = vsub.s32 %v186, %v188
  %v190 = vrot.slane %v183, %v189
  %v192 = vunpack.c.l.s4 1983009808
  %v193 = vunpack.c.0.s8 %v192
  %v194 = vlaneseq
  %v195 = vshrl.u32 %v194, 7
  %v196 = vsub.s32 %v193, %v195
  %v197 = vrot.slane %v179, %v196
  %v198 = vcombine.low %v180, %v180
  %v200 = vunpack.c.l.s4 1983009808
  %v201 = vunpack.c.0.s8 %v200
  %v202 = vlaneseq
  %v203 = vshrl.u32 %v202, 7
  %v204 = vsub.s32 %v201, %v203
  %v205 = vrot.slane %v198, %v204
  %v207 = vunpack.c.l.s4 1983009808
  %v208 = vunpack.c.0.s8 %v207
  %v209 = vlaneseq
  %v210 = vshrl.u32 %v209, 7
  %v211 = vsub.s32 %v208, %v210
  %v212 = vrot.slane %v180, %v211
  %213 = vrot.lane.b32.xlu0 %v190, 118
  %v214 = vpop.permute.xlu0 %213
  %215 = vrot.lane.b32.xlu0 %v197, 118
  %v216 = vpop.permute.xlu0 %215
  %217 = vrot.lane.b32.xlu0 %v205, 118
  %v218 = vpop.permute.xlu0 %217
  %219 = vrot.lane.b32.xlu0 %v212, 118
  %v220 = vpop.permute.xlu0 %219
  %v221 = vrot.slane %v214, 4
  %v222 = vrot.slane %v216, 4
  %v223 = vrot.slane %v218, 4
  %v224 = vrot.slane %v220, 4
  %v225 = vsel %vm100, %v221, %v222
  %vm226 = vcmask 965632
  %v227 = vsel %vm226, %v214, %v225
  %v228 = vsel %vm100, %v222, %v223
  %v229 = vsel %vm226, %v216, %v228
  %v230 = vsel %vm100, %v223, %v224
  %v231 = vsel %vm226, %v218, %v230
  %v232 = vsel %vm226, %v220, %v224
  %237 = vst [vmem:[#allocation2 + $0x1c] sm:$0xcc] %v227
  %238 = vst [vmem:[#allocation2 + $0x24] sm:$0xcc] %v229
  %239 = vst [vmem:[#allocation2 + $0x2c] sm:$0xcc] %v231
  %240 = vst [vmem:[#allocation2 + $0x34] sm:$0xc] %v232
  %v241 = vld [vmem:[%s0] sm:$0xff]
  %v242 = vld [vmem:[%s0 + $0x8] sm:$0xff]
  %v245 = vcombine.high %v241, %v241
  %v247 = vunpack.c.l.s4 1983009808
  %v248 = vunpack.c.0.s8 %v247
  %v249 = vlaneseq
  %v250 = vshrl.u32 %v249, 7
  %v251 = vsub.s32 %v248, %v250
  %v252 = vrot.slane %v241, %v251
  %v254 = vunpack.c.l.s4 1983009808
  %v255 = vunpack.c.0.s8 %v254
  %v256 = vlaneseq
  %v257 = vshrl.u32 %v256, 7
  %v258 = vsub.s32 %v255, %v257
  %v259 = vrot.slane %v245, %v258
  %v260 = vcombine.high %v242, %v242
  %v262 = vunpack.c.l.s4 1983009808
  %v263 = vunpack.c.0.s8 %v262
  %v264 = vlaneseq
  %v265 = vshrl.u32 %v264, 7
  %v266 = vsub.s32 %v263, %v265
  %v267 = vrot.slane %v242, %v266
  %v269 = vunpack.c.l.s4 1983009808
  %v270 = vunpack.c.0.s8 %v269
  %v271 = vlaneseq
  %v272 = vshrl.u32 %v271, 7
  %v273 = vsub.s32 %v270, %v272
  %v274 = vrot.slane %v260, %v273
  %275 = vrot.lane.b32.xlu0 %v252, 117
  %v276 = vpop.permute.xlu0 %275
  %277 = vrot.lane.b32.xlu0 %v259, 117
  %v278 = vpop.permute.xlu0 %277
  %279 = vrot.lane.b32.xlu0 %v267, 117
  %v280 = vpop.permute.xlu0 %279
  %281 = vrot.lane.b32.xlu0 %v274, 117
  %v282 = vpop.permute.xlu0 %281
  %v283 = vrot.slane %v276, 4
  %v284 = vrot.slane %v278, 4
  %v285 = vrot.slane %v280, 4
  %v286 = vrot.slane %v282, 4
  %v287 = vsel %vm100, %v283, %v284
  %vm288 = vcmask 957440
  %v289 = vsel %vm288, %v276, %v287
  %v290 = vsel %vm100, %v284, %v285
  %v291 = vsel %vm288, %v278, %v290
  %v292 = vsel %vm100, %v285, %v286
  %v293 = vsel %vm288, %v280, %v292
  %v294 = vsel %vm288, %v282, %v286
  %299 = vst [vmem:[#allocation2 + $0x38] sm:$0x33] %v289
  %300 = vst [vmem:[#allocation2 + $0x40] sm:$0x33] %v291
  %301 = vst [vmem:[#allocation2 + $0x48] sm:$0x33] %v293
  %302 = vst [vmem:[#allocation2 + $0x50] sm:$0x3] %v294
  %v303 = vld [vmem:[%s0] sm:$0xff]
  %v304 = vld [vmem:[%s0 + $0x8] sm:$0xff]
  %v307 = vcombine.low %v303, %v303
  %v309 = vunpack.c.l.s4 1983009808
  %v310 = vunpack.c.0.s8 %v309
  %v311 = vlaneseq
  %v312 = vshrl.u32 %v311, 7
  %v313 = vsub.s32 %v310, %v312
  %v314 = vrot.slane %v307, %v313
  %v316 = vunpack.c.l.s4 1983009808
  %v317 = vunpack.c.0.s8 %v316
  %v318 = vlaneseq
  %v319 = vshrl.u32 %v318, 7
  %v320 = vsub.s32 %v317, %v319
  %v321 = vrot.slane %v303, %v320
  %v322 = vcombine.low %v304, %v304
  %v324 = vunpack.c.l.s4 1983009808
  %v325 = vunpack.c.0.s8 %v324
  %v326 = vlaneseq
  %v327 = vshrl.u32 %v326, 7
  %v328 = vsub.s32 %v325, %v327
  %v329 = vrot.slane %v322, %v328
  %v331 = vunpack.c.l.s4 1983009808
  %v332 = vunpack.c.0.s8 %v331
  %v333 = vlaneseq
  %v334 = vshrl.u32 %v333, 7
  %v335 = vsub.s32 %v332, %v334
  %v336 = vrot.slane %v304, %v335
  %337 = vrot.lane.b32.xlu0 %v314, 116
  %v338 = vpop.permute.xlu0 %337
  %339 = vrot.lane.b32.xlu0 %v321, 116
  %v340 = vpop.permute.xlu0 %339
  %341 = vrot.lane.b32.xlu0 %v329, 116
  %v342 = vpop.permute.xlu0 %341
  %343 = vrot.lane.b32.xlu0 %v336, 116
  %v344 = vpop.permute.xlu0 %343
  %v345 = vrot.slane %v338, 4
  %v346 = vrot.slane %v340, 4
  %v347 = vrot.slane %v342, 4
  %v348 = vrot.slane %v344, 4
  %v349 = vsel %vm100, %v345, %v346
  %vm350 = vcmask 949248
  %v351 = vsel %vm350, %v338, %v349
  %v352 = vsel %vm100, %v346, %v347
  %v353 = vsel %vm350, %v340, %v352
  %v354 = vsel %vm100, %v347, %v348
  %v355 = vsel %vm350, %v342, %v354
  %v356 = vsel %vm350, %v344, %v348
  %361 = vst [vmem:[#allocation2 + $0x38] sm:$0xcc] %v351
  %362 = vst [vmem:[#allocation2 + $0x40] sm:$0xcc] %v353
  %363 = vst [vmem:[#allocation2 + $0x48] sm:$0xcc] %v355
  %364 = vst [vmem:[#allocation2 + $0x50] sm:$0xc] %v356
  %v365 = vld [vmem:[%s0] sm:$0xff]
  %v366 = vld [vmem:[%s0 + $0x8] sm:$0xff]
  %v369 = vcombine.high %v365, %v365
  %v371 = vunpack.c.l.s4 1983009808
  %v372 = vunpack.c.0.s8 %v371
  %v373 = vlaneseq
  %v374 = vshrl.u32 %v373, 7
  %v375 = vsub.s32 %v372, %v374
  %v376 = vrot.slane %v365, %v375
  %v378 = vunpack.c.l.s4 1983009808
  %v379 = vunpack.c.0.s8 %v378
  %v380 = vlaneseq
  %v381 = vshrl.u32 %v380, 7
  %v382 = vsub.s32 %v379, %v381
  %v383 = vrot.slane %v369, %v382
  %v384 = vcombine.high %v366, %v366
  %v386 = vunpack.c.l.s4 1983009808
  %v387 = vunpack.c.0.s8 %v386
  %v388 = vlaneseq
  %v389 = vshrl.u32 %v388, 7
  %v390 = vsub.s32 %v387, %v389
  %v391 = vrot.slane %v366, %v390
  %v393 = vunpack.c.l.s4 1983009808
  %v394 = vunpack.c.0.s8 %v393
  %v395 = vlaneseq
  %v396 = vshrl.u32 %v395, 7
  %v397 = vsub.s32 %v394, %v396
  %v398 = vrot.slane %v384, %v397
  %399 = vrot.lane.b32.xlu0 %v376, 108
  %v400 = vpop.permute.xlu0 %399
  %401 = vrot.lane.b32.xlu0 %v383, 108
  %v402 = vpop.permute.xlu0 %401
  %403 = vrot.lane.b32.xlu0 %v391, 108
  %v404 = vpop.permute.xlu0 %403
  %405 = vrot.lane.b32.xlu0 %v398, 108
  %v406 = vpop.permute.xlu0 %405
  %v407 = vrot.slane %v400, 4
  %v408 = vrot.slane %v402, 4
  %v409 = vrot.slane %v404, 4
  %v410 = vrot.slane %v406, 4
  %v411 = vsel %vm100, %v407, %v408
  %vm412 = vcmask 883712
  %v413 = vsel %vm412, %v400, %v411
  %v414 = vsel %vm100, %v408, %v409
  %v415 = vsel %vm412, %v402, %v414
  %v416 = vsel %vm100, %v409, %v410
  %v417 = vsel %vm412, %v404, %v416
  %v418 = vsel %vm412, %v406, %v410
  %423 = vst [vmem:[#allocation2 + $0x54] sm:$0x33] %v413
  %424 = vst [vmem:[#allocation2 + $0x5c] sm:$0x33] %v415
  %425 = vst [vmem:[#allocation2 + $0x64] sm:$0x33] %v417
  %426 = vst [vmem:[#allocation2 + $0x6c] sm:$0x3] %v418
  %v427 = vld [vmem:[%s0] sm:$0xff]
  %v428 = vld [vmem:[%s0 + $0x8] sm:$0xff]
  %v431 = vcombine.low %v427, %v427
  %v433 = vunpack.c.l.s4 1983009808
  %v434 = vunpack.c.0.s8 %v433
  %v435 = vlaneseq
  %v436 = vshrl.u32 %v435, 7
  %v437 = vsub.s32 %v434, %v436
  %v438 = vrot.slane %v431, %v437
  %v440 = vunpack.c.l.s4 1983009808
  %v441 = vunpack.c.0.s8 %v440
  %v442 = vlaneseq
  %v443 = vshrl.u32 %v442, 7
  %v444 = vsub.s32 %v441, %v443
  %v445 = vrot.slane %v427, %v444
  %v446 = vcombine.low %v428, %v428
  %v448 = vunpack.c.l.s4 1983009808
  %v449 = vunpack.c.0.s8 %v448
  %v450 = vlaneseq
  %v451 = vshrl.u32 %v450, 7
  %v452 = vsub.s32 %v449, %v451
  %v453 = vrot.slane %v446, %v452
  %v455 = vunpack.c.l.s4 1983009808
  %v456 = vunpack.c.0.s8 %v455
  %v457 = vlaneseq
  %v458 = vshrl.u32 %v457, 7
  %v459 = vsub.s32 %v456, %v458
  %v460 = vrot.slane %v428, %v459
  %461 = vrot.lane.b32.xlu0 %v438, 107
  %v462 = vpop.permute.xlu0 %461
  %463 = vrot.lane.b32.xlu0 %v445, 107
  %v464 = vpop.permute.xlu0 %463
  %465 = vrot.lane.b32.xlu0 %v453, 107
  %v466 = vpop.permute.xlu0 %465
  %467 = vrot.lane.b32.xlu0 %v460, 107
  %v468 = vpop.permute.xlu0 %467
  %v469 = vrot.slane %v462, 4
  %v470 = vrot.slane %v464, 4
  %v471 = vrot.slane %v466, 4
  %v472 = vrot.slane %v468, 4
  %v473 = vsel %vm100, %v469, %v470
  %vm474 = vcmask 875520
  %v475 = vsel %vm474, %v462, %v473
  %v476 = vsel %vm100, %v470, %v471
  %v477 = vsel %vm474, %v464, %v476
  %v478 = vsel %vm100, %v471, %v472
  %v479 = vsel %vm474, %v466, %v478
  %v480 = vsel %vm474, %v468, %v472
  %485 = vst [vmem:[#allocation2 + $0x54] sm:$0xcc] %v475
  %486 = vst [vmem:[#allocation2 + $0x5c] sm:$0xcc] %v477
  %487 = vst [vmem:[#allocation2 + $0x64] sm:$0xcc] %v479
  %488 = vst [vmem:[#allocation2 + $0x6c] sm:$0xc] %v480
  %v489 = vld [vmem:[%s0] sm:$0xff]
  %v490 = vld [vmem:[%s0 + $0x8] sm:$0xff]
  %v493 = vcombine.high %v489, %v489
  %v495 = vunpack.c.l.s4 1983009808
  %v496 = vunpack.c.0.s8 %v495
  %v497 = vlaneseq
  %v498 = vshrl.u32 %v497, 7
  %v499 = vsub.s32 %v496, %v498
  %v500 = vrot.slane %v489, %v499
  %v502 = vunpack.c.l.s4 1983009808
  %v503 = vunpack.c.0.s8 %v502
  %v504 = vlaneseq
  %v505 = vshrl.u32 %v504, 7
  %v506 = vsub.s32 %v503, %v505
  %v507 = vrot.slane %v493, %v506
  %v508 = vcombine.high %v490, %v490
  %v510 = vunpack.c.l.s4 1983009808
  %v511 = vunpack.c.0.s8 %v510
  %v512 = vlaneseq
  %v513 = vshrl.u32 %v512, 7
  %v514 = vsub.s32 %v511, %v513
  %v515 = vrot.slane %v490, %v514
  %v517 = vunpack.c.l.s4 1983009808
  %v518 = vunpack.c.0.s8 %v517
  %v519 = vlaneseq
  %v520 = vshrl.u32 %v519, 7
  %v521 = vsub.s32 %v518, %v520
  %v522 = vrot.slane %v508, %v521
  %523 = vrot.lane.b32.xlu0 %v500, 106
  %v524 = vpop.permute.xlu0 %523
  %525 = vrot.lane.b32.xlu0 %v507, 106
  %v526 = vpop.permute.xlu0 %525
  %527 = vrot.lane.b32.xlu0 %v515, 106
  %v528 = vpop.permute.xlu0 %527
  %529 = vrot.lane.b32.xlu0 %v522, 106
  %v530 = vpop.permute.xlu0 %529
  %v531 = vrot.slane %v524, 4
  %v532 = vrot.slane %v526, 4
  %v533 = vrot.slane %v528, 4
  %v534 = vrot.slane %v530, 4
  %v535 = vsel %vm100, %v531, %v532
  %vm536 = vcmask 867328
  %v537 = vsel %vm536, %v524, %v535
  %v538 = vsel %vm100, %v532, %v533
  %v539 = vsel %vm536, %v526, %v538
  %v540 = vsel %vm100, %v533, %v534
  %v541 = vsel %vm536, %v528, %v540
  %v542 = vsel %vm536, %v530, %v534
  %547 = vst [vmem:[#allocation2 + $0x70] sm:$0x33] %v537
  %548 = vst [vmem:[#allocation2 + $0x78] sm:$0x33] %v539
  %549 = vst [vmem:[#allocation2 + $0x80] sm:$0x33] %v541
  %550 = vst [vmem:[#allocation2 + $0x88] sm:$0x3] %v542
  %v551 = vld [vmem:[%s0] sm:$0xff]
  %v552 = vld [vmem:[%s0 + $0x8] sm:$0xff]
  %v555 = vcombine.low %v551, %v551
  %v557 = vunpack.c.l.s4 1983009808
  %v558 = vunpack.c.0.s8 %v557
  %v559 = vlaneseq
  %v560 = vshrl.u32 %v559, 7
  %v561 = vsub.s32 %v558, %v560
  %v562 = vrot.slane %v555, %v561
  %v564 = vunpack.c.l.s4 1983009808
  %v565 = vunpack.c.0.s8 %v564
  %v566 = vlaneseq
  %v567 = vshrl.u32 %v566, 7
  %v568 = vsub.s32 %v565, %v567
  %v569 = vrot.slane %v551, %v568
  %v570 = vcombine.low %v552, %v552
  %v572 = vunpack.c.l.s4 1983009808
  %v573 = vunpack.c.0.s8 %v572
  %v574 = vlaneseq
  %v575 = vshrl.u32 %v574, 7
  %v576 = vsub.s32 %v573, %v575
  %v577 = vrot.slane %v570, %v576
  %v579 = vunpack.c.l.s4 1983009808
  %v580 = vunpack.c.0.s8 %v579
  %v581 = vlaneseq
  %v582 = vshrl.u32 %v581, 7
  %v583 = vsub.s32 %v580, %v582
  %v584 = vrot.slane %v552, %v583
  %585 = vrot.lane.b32.xlu0 %v562, 28
  %v586 = vpop.permute.xlu0 %585
  %587 = vrot.lane.b32.xlu0 %v569, 28
  %v588 = vpop.permute.xlu0 %587
  %589 = vrot.lane.b32.xlu0 %v577, 28
  %v590 = vpop.permute.xlu0 %589
  %591 = vrot.lane.b32.xlu0 %v584, 28
  %v592 = vpop.permute.xlu0 %591
  %v593 = vrot.slane %v586, 4
  %v594 = vrot.slane %v588, 4
  %v595 = vrot.slane %v590, 4
  %v596 = vrot.slane %v592, 4
  %v597 = vsel %vm100, %v593, %v594
  %vm598 = vcmask 228352
  %v599 = vsel %vm598, %v586, %v597
  %v600 = vsel %vm100, %v594, %v595
  %v601 = vsel %vm598, %v588, %v600
  %v602 = vsel %vm100, %v595, %v596
  %v603 = vsel %vm598, %v590, %v602
  %v604 = vsel %vm598, %v592, %v596
  %609 = vst [vmem:[#allocation2 + $0x70] sm:$0xcc] %v599
  %610 = vst [vmem:[#allocation2 + $0x78] sm:$0xcc] %v601
  %611 = vst [vmem:[#allocation2 + $0x80] sm:$0xcc] %v603
  %612 = vst [vmem:[#allocation2 + $0x88] sm:$0xc] %v604
  %v613 = vld [vmem:[%s0] sm:$0xff]
  %v614 = vld [vmem:[%s0 + $0x8] sm:$0xff]
  %v617 = vcombine.high %v613, %v613
  %v619 = vunpack.c.l.s4 1983009808
  %v620 = vunpack.c.0.s8 %v619
  %v621 = vlaneseq
  %v622 = vshrl.u32 %v621, 7
  %v623 = vsub.s32 %v620, %v622
  %v624 = vrot.slane %v613, %v623
  %v626 = vunpack.c.l.s4 1983009808
  %v627 = vunpack.c.0.s8 %v626
  %v628 = vlaneseq
  %v629 = vshrl.u32 %v628, 7
  %v630 = vsub.s32 %v627, %v629
  %v631 = vrot.slane %v617, %v630
  %v632 = vcombine.high %v614, %v614
  %v634 = vunpack.c.l.s4 1983009808
  %v635 = vunpack.c.0.s8 %v634
  %v636 = vlaneseq
  %v637 = vshrl.u32 %v636, 7
  %v638 = vsub.s32 %v635, %v637
  %v639 = vrot.slane %v614, %v638
  %v641 = vunpack.c.l.s4 1983009808
  %v642 = vunpack.c.0.s8 %v641
  %v643 = vlaneseq
  %v644 = vshrl.u32 %v643, 7
  %v645 = vsub.s32 %v642, %v644
  %v646 = vrot.slane %v632, %v645
  %647 = vrot.lane.b32.xlu0 %v624, 27
  %v648 = vpop.permute.xlu0 %647
  %649 = vrot.lane.b32.xlu0 %v631, 27
  %v650 = vpop.permute.xlu0 %649
  %651 = vrot.lane.b32.xlu0 %v639, 27
  %v652 = vpop.permute.xlu0 %651
  %653 = vrot.lane.b32.xlu0 %v646, 27
  %v654 = vpop.permute.xlu0 %653
  %v655 = vrot.slane %v648, 4
  %v656 = vrot.slane %v650, 4
  %v657 = vrot.slane %v652, 4
  %v658 = vrot.slane %v654, 4
  %v659 = vsel %vm100, %v655, %v656
  %vm660 = vcmask 220160
  %v661 = vsel %vm660, %v648, %v659
  %v662 = vsel %vm100, %v656, %v657
  %v663 = vsel %vm660, %v650, %v662
  %v664 = vsel %vm100, %v657, %v658
  %v665 = vsel %vm660, %v652, %v664
  %v666 = vsel %vm660, %v654, %v658
  %671 = vst [vmem:[#allocation2 + $0x8c] sm:$0x33] %v661
  %672 = vst [vmem:[#allocation2 + $0x94] sm:$0x33] %v663
  %673 = vst [vmem:[#allocation2 + $0x9c] sm:$0x33] %v665
  %674 = vst [vmem:[#allocation2 + $0xa4] sm:$0x3] %v666
  %v675 = vld [vmem:[%s0] sm:$0xff]
  %v676 = vld [vmem:[%s0 + $0x8] sm:$0xff]
  %v679 = vcombine.low %v675, %v675
  %v681 = vunpack.c.l.s4 1983009808
  %v682 = vunpack.c.0.s8 %v681
  %v683 = vlaneseq
  %v684 = vshrl.u32 %v683, 7
  %v685 = vsub.s32 %v682, %v684
  %v686 = vrot.slane %v679, %v685
  %v688 = vunpack.c.l.s4 1983009808
  %v689 = vunpack.c.0.s8 %v688
  %v690 = vlaneseq
  %v691 = vshrl.u32 %v690, 7
  %v692 = vsub.s32 %v689, %v691
  %v693 = vrot.slane %v675, %v692
  %v694 = vcombine.low %v676, %v676
  %v696 = vunpack.c.l.s4 1983009808
  %v697 = vunpack.c.0.s8 %v696
  %v698 = vlaneseq
  %v699 = vshrl.u32 %v698, 7
  %v700 = vsub.s32 %v697, %v699
  %v701 = vrot.slane %v694, %v700
  %v703 = vunpack.c.l.s4 1983009808
  %v704 = vunpack.c.0.s8 %v703
  %v705 = vlaneseq
  %v706 = vshrl.u32 %v705, 7
  %v707 = vsub.s32 %v704, %v706
  %v708 = vrot.slane %v676, %v707
  %709 = vrot.lane.b32.xlu0 %v686, 26
  %v710 = vpop.permute.xlu0 %709
  %711 = vrot.lane.b32.xlu0 %v693, 26
  %v712 = vpop.permute.xlu0 %711
  %713 = vrot.lane.b32.xlu0 %v701, 26
  %v714 = vpop.permute.xlu0 %713
  %715 = vrot.lane.b32.xlu0 %v708, 26
  %v716 = vpop.permute.xlu0 %715
  %v717 = vrot.slane %v710, 4
  %v718 = vrot.slane %v712, 4
  %v719 = vrot.slane %v714, 4
  %v720 = vrot.slane %v716, 4
  %v721 = vsel %vm100, %v717, %v718
  %vm722 = vcmask 211968
  %v723 = vsel %vm722, %v710, %v721
  %v724 = vsel %vm100, %v718, %v719
  %v725 = vsel %vm722, %v712, %v724
  %v726 = vsel %vm100, %v719, %v720
  %v727 = vsel %vm722, %v714, %v726
  %v728 = vsel %vm722, %v716, %v720
  %733 = vst [vmem:[#allocation2 + $0x8c] sm:$0xcc] %v723
  %734 = vst [vmem:[#allocation2 + $0x94] sm:$0xcc] %v725
  %735 = vst [vmem:[#allocation2 + $0x9c] sm:$0xcc] %v727
  %736 = vst [vmem:[#allocation2 + $0xa4] sm:$0xc] %v728
  %v737 = vld [vmem:[%s0] sm:$0xff]
  %v738 = vld [vmem:[%s0 + $0x8] sm:$0xff]
  %v741 = vcombine.high %v737, %v737
  %v743 = vunpack.c.l.s4 1983009808
  %v744 = vunpack.c.0.s8 %v743
  %v745 = vlaneseq
  %v746 = vshrl.u32 %v745, 7
  %v747 = vsub.s32 %v744, %v746
  %v748 = vrot.slane %v737, %v747
  %v750 = vunpack.c.l.s4 1983009808
  %v751 = vunpack.c.0.s8 %v750
  %v752 = vlaneseq
  %v753 = vshrl.u32 %v752, 7
  %v754 = vsub.s32 %v751, %v753
  %v755 = vrot.slane %v741, %v754
  %v756 = vcombine.high %v738, %v738
  %v758 = vunpack.c.l.s4 1983009808
  %v759 = vunpack.c.0.s8 %v758
  %v760 = vlaneseq
  %v761 = vshrl.u32 %v760, 7
  %v762 = vsub.s32 %v759, %v761
  %v763 = vrot.slane %v738, %v762
  %v765 = vunpack.c.l.s4 1983009808
  %v766 = vunpack.c.0.s8 %v765
  %v767 = vlaneseq
  %v768 = vshrl.u32 %v767, 7
  %v769 = vsub.s32 %v766, %v768
  %v770 = vrot.slane %v756, %v769
  %771 = vrot.lane.b32.xlu0 %v748, 18
  %v772 = vpop.permute.xlu0 %771
  %773 = vrot.lane.b32.xlu0 %v755, 18
  %v774 = vpop.permute.xlu0 %773
  %775 = vrot.lane.b32.xlu0 %v763, 18
  %v776 = vpop.permute.xlu0 %775
  %777 = vrot.lane.b32.xlu0 %v770, 18
  %v778 = vpop.permute.xlu0 %777
  %v779 = vrot.slane %v772, 4
  %v780 = vrot.slane %v774, 4
  %v781 = vrot.slane %v776, 4
  %v782 = vrot.slane %v778, 4
  %v783 = vsel %vm100, %v779, %v780
  %vm784 = vcmask 146432
  %v785 = vsel %vm784, %v772, %v783
  %v786 = vsel %vm100, %v780, %v781
  %v787 = vsel %vm784, %v774, %v786
  %v788 = vsel %vm100, %v781, %v782
  %v789 = vsel %vm784, %v776, %v788
  %v790 = vsel %vm784, %v778, %v782
  %795 = vst [vmem:[#allocation2 + $0xa8] sm:$0x33] %v785
  %796 = vst [vmem:[#allocation2 + $0xb0] sm:$0x33] %v787
  %797 = vst [vmem:[#allocation2 + $0xb8] sm:$0x33] %v789
  %798 = vst [vmem:[#allocation2 + $0xc0] sm:$0x3] %v790
  %v799 = vld [vmem:[%s0] sm:$0xff]
  %v800 = vld [vmem:[%s0 + $0x8] sm:$0xff]
  %v803 = vcombine.low %v799, %v799
  %v805 = vunpack.c.l.s4 1983009808
  %v806 = vunpack.c.0.s8 %v805
  %v807 = vlaneseq
  %v808 = vshrl.u32 %v807, 7
  %v809 = vsub.s32 %v806, %v808
  %v810 = vrot.slane %v803, %v809
  %v812 = vunpack.c.l.s4 1983009808
  %v813 = vunpack.c.0.s8 %v812
  %v814 = vlaneseq
  %v815 = vshrl.u32 %v814, 7
  %v816 = vsub.s32 %v813, %v815
  %v817 = vrot.slane %v799, %v816
  %v818 = vcombine.low %v800, %v800
  %v820 = vunpack.c.l.s4 1983009808
  %v821 = vunpack.c.0.s8 %v820
  %v822 = vlaneseq
  %v823 = vshrl.u32 %v822, 7
  %v824 = vsub.s32 %v821, %v823
  %v825 = vrot.slane %v818, %v824
  %v827 = vunpack.c.l.s4 1983009808
  %v828 = vunpack.c.0.s8 %v827
  %v829 = vlaneseq
  %v830 = vshrl.u32 %v829, 7
  %v831 = vsub.s32 %v828, %v830
  %v832 = vrot.slane %v800, %v831
  %833 = vrot.lane.b32.xlu0 %v810, 17
  %v834 = vpop.permute.xlu0 %833
  %835 = vrot.lane.b32.xlu0 %v817, 17
  %v836 = vpop.permute.xlu0 %835
  %837 = vrot.lane.b32.xlu0 %v825, 17
  %v838 = vpop.permute.xlu0 %837
  %839 = vrot.lane.b32.xlu0 %v832, 17
  %v840 = vpop.permute.xlu0 %839
  %v841 = vrot.slane %v834, 4
  %v842 = vrot.slane %v836, 4
  %v843 = vrot.slane %v838, 4
  %v844 = vrot.slane %v840, 4
  %v845 = vsel %vm100, %v841, %v842
  %vm846 = vcmask 138240
  %v847 = vsel %vm846, %v834, %v845
  %v848 = vsel %vm100, %v842, %v843
  %v849 = vsel %vm846, %v836, %v848
  %v850 = vsel %vm100, %v843, %v844
  %v851 = vsel %vm846, %v838, %v850
  %v852 = vsel %vm846, %v840, %v844
  %857 = vst [vmem:[#allocation2 + $0xa8] sm:$0xcc] %v847
  %858 = vst [vmem:[#allocation2 + $0xb0] sm:$0xcc] %v849
  %859 = vst [vmem:[#allocation2 + $0xb8] sm:$0xcc] %v851
  %860 = vst [vmem:[#allocation2 + $0xc0] sm:$0xc] %v852
  %v861 = vld [vmem:[%s0] sm:$0xff]
  %v862 = vld [vmem:[%s0 + $0x8] sm:$0xff]
  %v865 = vcombine.high %v861, %v861
  %v867 = vunpack.c.l.s4 1983009808
  %v868 = vunpack.c.0.s8 %v867
  %v869 = vlaneseq
  %v870 = vshrl.u32 %v869, 7
  %v871 = vsub.s32 %v868, %v870
  %v872 = vrot.slane %v861, %v871
  %v874 = vunpack.c.l.s4 1983009808
  %v875 = vunpack.c.0.s8 %v874
  %v876 = vlaneseq
  %v877 = vshrl.u32 %v876, 7
  %v878 = vsub.s32 %v875, %v877
  %v879 = vrot.slane %v865, %v878
  %v880 = vcombine.high %v862, %v862
  %v882 = vunpack.c.l.s4 1983009808
  %v883 = vunpack.c.0.s8 %v882
  %v884 = vlaneseq
  %v885 = vshrl.u32 %v884, 7
  %v886 = vsub.s32 %v883, %v885
  %v887 = vrot.slane %v862, %v886
  %v889 = vunpack.c.l.s4 1983009808
  %v890 = vunpack.c.0.s8 %v889
  %v891 = vlaneseq
  %v892 = vshrl.u32 %v891, 7
  %v893 = vsub.s32 %v890, %v892
  %v894 = vrot.slane %v880, %v893
  %895 = vrot.lane.b32.xlu0 %v872, 16
  %v896 = vpop.permute.xlu0 %895
  %897 = vrot.lane.b32.xlu0 %v879, 16
  %v898 = vpop.permute.xlu0 %897
  %899 = vrot.lane.b32.xlu0 %v887, 16
  %v900 = vpop.permute.xlu0 %899
  %901 = vrot.lane.b32.xlu0 %v894, 16
  %v902 = vpop.permute.xlu0 %901
  %v903 = vrot.slane %v896, 4
  %v904 = vrot.slane %v898, 4
  %v905 = vrot.slane %v900, 4
  %v906 = vrot.slane %v902, 4
  %v907 = vsel %vm100, %v903, %v904
  %vm908 = vcmask 130048
  %v909 = vsel %vm908, %v896, %v907
  %v910 = vsel %vm100, %v904, %v905
  %v911 = vsel %vm908, %v898, %v910
  %v912 = vsel %vm100, %v905, %v906
  %v913 = vsel %vm908, %v900, %v912
  %v914 = vsel %vm908, %v902, %v906
  %919 = vst [vmem:[#allocation2 + $0xc4] sm:$0x33] %v909
  %920 = vst [vmem:[#allocation2 + $0xcc] sm:$0x33] %v911
  %921 = vst [vmem:[#allocation2 + $0xd4] sm:$0x33] %v913
  %922 = vst [vmem:[#allocation2 + $0xdc] sm:$0x3] %v914
  %v923 = vld [vmem:[%s0] sm:$0xff]
  %v924 = vld [vmem:[%s0 + $0x8] sm:$0xff]
  %v927 = vcombine.low %v923, %v923
  %v929 = vunpack.c.l.s4 1983009808
  %v930 = vunpack.c.0.s8 %v929
  %v931 = vlaneseq
  %v932 = vshrl.u32 %v931, 7
  %v933 = vsub.s32 %v930, %v932
  %v934 = vrot.slane %v927, %v933
  %v936 = vunpack.c.l.s4 1983009808
  %v937 = vunpack.c.0.s8 %v936
  %v938 = vlaneseq
  %v939 = vshrl.u32 %v938, 7
  %v940 = vsub.s32 %v937, %v939
  %v941 = vrot.slane %v923, %v940
  %v942 = vcombine.low %v924, %v924
  %v944 = vunpack.c.l.s4 1983009808
  %v945 = vunpack.c.0.s8 %v944
  %v946 = vlaneseq
  %v947 = vshrl.u32 %v946, 7
  %v948 = vsub.s32 %v945, %v947
  %v949 = vrot.slane %v942, %v948
  %v951 = vunpack.c.l.s4 1983009808
  %v952 = vunpack.c.0.s8 %v951
  %v953 = vlaneseq
  %v954 = vshrl.u32 %v953, 7
  %v955 = vsub.s32 %v952, %v954
  %v956 = vrot.slane %v924, %v955
  %957 = vrot.lane.b32.xlu0 %v934, 8
  %v958 = vpop.permute.xlu0 %957
  %959 = vrot.lane.b32.xlu0 %v941, 8
  %v960 = vpop.permute.xlu0 %959
  %961 = vrot.lane.b32.xlu0 %v949, 8
  %v962 = vpop.permute.xlu0 %961
  %963 = vrot.lane.b32.xlu0 %v956, 8
  %v964 = vpop.permute.xlu0 %963
  %v965 = vrot.slane %v958, 4
  %v966 = vrot.slane %v960, 4
  %v967 = vrot.slane %v962, 4
  %v968 = vrot.slane %v964, 4
  %v969 = vsel %vm100, %v965, %v966
  %vm970 = vcmask 64512
  %v971 = vsel %vm970, %v958, %v969
  %v972 = vsel %vm100, %v966, %v967
  %v973 = vsel %vm970, %v960, %v972
  %v974 = vsel %vm100, %v967, %v968
  %v975 = vsel %vm970, %v962, %v974
  %v976 = vsel %vm970, %v964, %v968
  %981 = vst [vmem:[#allocation2 + $0xc4] sm:$0xcc] %v971
  %982 = vst [vmem:[#allocation2 + $0xcc] sm:$0xcc] %v973
  %983 = vst [vmem:[#allocation2 + $0xd4] sm:$0xcc] %v975
  %984 = vst [vmem:[#allocation2 + $0xdc] sm:$0xc] %v976
  %v985 = vld [vmem:[%s0] sm:$0xff]
  %v986 = vld [vmem:[%s0 + $0x8] sm:$0xff]
  %v989 = vcombine.high %v985, %v985
  %v991 = vunpack.c.l.s4 1983009808
  %v992 = vunpack.c.0.s8 %v991
  %v993 = vlaneseq
  %v994 = vshrl.u32 %v993, 7
  %v995 = vsub.s32 %v992, %v994
  %v996 = vrot.slane %v985, %v995
  %v998 = vunpack.c.l.s4 1983009808
  %v999 = vunpack.c.0.s8 %v998
  %v1000 = vlaneseq
  %v1001 = vshrl.u32 %v1000, 7
  %v1002 = vsub.s32 %v999, %v1001
  %v1003 = vrot.slane %v989, %v1002
  %v1004 = vcombine.high %v986, %v986
  %v1006 = vunpack.c.l.s4 1983009808
  %v1007 = vunpack.c.0.s8 %v1006
  %v1008 = vlaneseq
  %v1009 = vshrl.u32 %v1008, 7
  %v1010 = vsub.s32 %v1007, %v1009
  %v1011 = vrot.slane %v986, %v1010
  %v1013 = vunpack.c.l.s4 1983009808
  %v1014 = vunpack.c.0.s8 %v1013
  %v1015 = vlaneseq
  %v1016 = vshrl.u32 %v1015, 7
  %v1017 = vsub.s32 %v1014, %v1016
  %v1018 = vrot.slane %v1004, %v1017
  %1019 = vrot.lane.b32.xlu0 %v996, 7
  %v1020 = vpop.permute.xlu0 %1019
  %1021 = vrot.lane.b32.xlu0 %v1003, 7
  %v1022 = vpop.permute.xlu0 %1021
  %1023 = vrot.lane.b32.xlu0 %v1011, 7
  %v1024 = vpop.permute.xlu0 %1023
  %1025 = vrot.lane.b32.xlu0 %v1018, 7
  %v1026 = vpop.permute.xlu0 %1025
  %v1027 = vrot.slane %v1020, 4
  %v1028 = vrot.slane %v1022, 4
  %v1029 = vrot.slane %v1024, 4
  %v1030 = vrot.slane %v1026, 4
  %v1031 = vsel %vm100, %v1027, %v1028
  %vm1032 = vcmask 56320
  %v1033 = vsel %vm1032, %v1020, %v1031
  %v1034 = vsel %vm100, %v1028, %v1029
  %v1035 = vsel %vm1032, %v1022, %v1034
  %v1036 = vsel %vm100, %v1029, %v1030
  %v1037 = vsel %vm1032, %v1024, %v1036
  %v1038 = vsel %vm1032, %v1026, %v1030
  %1043 = vst [vmem:[#allocation2 + $0xe0] sm:$0x33] %v1033
  %1044 = vst [vmem:[#allocation2 + $0xe8] sm:$0x33] %v1035
  %1045 = vst [vmem:[#allocation2 + $0xf0] sm:$0x33] %v1037
  %1046 = vst [vmem:[#allocation2 + $0xf8] sm:$0x3] %v1038
  %v1047 = vld [vmem:[%s0] sm:$0xff]
  %v1048 = vld [vmem:[%s0 + $0x8] sm:$0xff]
  %v1051 = vcombine.low %v1047, %v1047
  %v1053 = vunpack.c.l.s4 1983009808
  %v1054 = vunpack.c.0.s8 %v1053
  %v1055 = vlaneseq
  %v1056 = vshrl.u32 %v1055, 7
  %v1057 = vsub.s32 %v1054, %v1056
  %v1058 = vrot.slane %v1051, %v1057
  %v1060 = vunpack.c.l.s4 1983009808
  %v1061 = vunpack.c.0.s8 %v1060
  %v1062 = vlaneseq
  %v1063 = vshrl.u32 %v1062, 7
  %v1064 = vsub.s32 %v1061, %v1063
  %v1065 = vrot.slane %v1047, %v1064
  %v1066 = vcombine.low %v1048, %v1048
  %v1068 = vunpack.c.l.s4 1983009808
  %v1069 = vunpack.c.0.s8 %v1068
  %v1070 = vlaneseq
  %v1071 = vshrl.u32 %v1070, 7
  %v1072 = vsub.s32 %v1069, %v1071
  %v1073 = vrot.slane %v1066, %v1072
  %v1075 = vunpack.c.l.s4 1983009808
  %v1076 = vunpack.c.0.s8 %v1075
  %v1077 = vlaneseq
  %v1078 = vshrl.u32 %v1077, 7
  %v1079 = vsub.s32 %v1076, %v1078
  %v1080 = vrot.slane %v1048, %v1079
  %1081 = vrot.lane.b32.xlu0 %v1058, 6
  %v1082 = vpop.permute.xlu0 %1081
  %1083 = vrot.lane.b32.xlu0 %v1065, 6
  %v1084 = vpop.permute.xlu0 %1083
  %1085 = vrot.lane.b32.xlu0 %v1073, 6
  %v1086 = vpop.permute.xlu0 %1085
  %1087 = vrot.lane.b32.xlu0 %v1080, 6
  %v1088 = vpop.permute.xlu0 %1087
  %v1089 = vrot.slane %v1082, 4
  %v1090 = vrot.slane %v1084, 4
  %v1091 = vrot.slane %v1086, 4
  %v1092 = vrot.slane %v1088, 4
  %v1093 = vsel %vm100, %v1089, %v1090
  %vm1094 = vcmask 48128
  %v1095 = vsel %vm1094, %v1082, %v1093
  %v1096 = vsel %vm100, %v1090, %v1091
  %v1097 = vsel %vm1094, %v1084, %v1096
  %v1098 = vsel %vm100, %v1091, %v1092
  %v1099 = vsel %vm1094, %v1086, %v1098
  %v1100 = vsel %vm1094, %v1088, %v1092
  %1105 = vst [vmem:[#allocation2 + $0xe0] sm:$0xcc] %v1095
  %1106 = vst [vmem:[#allocation2 + $0xe8] sm:$0xcc] %v1097
  %1107 = vst [vmem:[#allocation2 + $0xf0] sm:$0xcc] %v1099
  %1108 = vst [vmem:[#allocation2 + $0xf8] sm:$0xc] %v1100
  %v1109 = vld [vmem:[%s0 + $0x2] sm:$0xff]
  %v1110 = vld [vmem:[%s0 + $0xa] sm:$0xff]
  %v1113 = vcombine.high %v1109, %v1109
  %v1115 = vunpack.c.l.s4 1983009808
  %v1116 = vunpack.c.0.s8 %v1115
  %v1117 = vlaneseq
  %v1118 = vshrl.u32 %v1117, 7
  %v1119 = vsub.s32 %v1116, %v1118
  %v1120 = vrot.slane %v1109, %v1119
  %v1122 = vunpack.c.l.s4 1983009808
  %v1123 = vunpack.c.0.s8 %v1122
  %v1124 = vlaneseq
  %v1125 = vshrl.u32 %v1124, 7
  %v1126 = vsub.s32 %v1123, %v1125
  %v1127 = vrot.slane %v1113, %v1126
  %v1128 = vcombine.high %v1110, %v1110
  %v1130 = vunpack.c.l.s4 1983009808
  %v1131 = vunpack.c.0.s8 %v1130
  %v1132 = vlaneseq
  %v1133 = vshrl.u32 %v1132, 7
  %v1134 = vsub.s32 %v1131, %v1133
  %v1135 = vrot.slane %v1110, %v1134
  %v1137 = vunpack.c.l.s4 1983009808
  %v1138 = vunpack.c.0.s8 %v1137
  %v1139 = vlaneseq
  %v1140 = vshrl.u32 %v1139, 7
  %v1141 = vsub.s32 %v1138, %v1140
  %v1142 = vrot.slane %v1128, %v1141
  %1143 = vrot.lane.b32.xlu0 %v1120, 56
  %v1144 = vpop.permute.xlu0 %1143
  %1145 = vrot.lane.b32.xlu0 %v1127, 56
  %v1146 = vpop.permute.xlu0 %1145
  %1147 = vrot.lane.b32.xlu0 %v1135, 56
  %v1148 = vpop.permute.xlu0 %1147
  %1149 = vrot.lane.b32.xlu0 %v1142, 56
  %v1150 = vpop.permute.xlu0 %1149
  %v1151 = vrot.slane %v1144, 4
  %v1152 = vrot.slane %v1146, 4
  %v1153 = vrot.slane %v1148, 4
  %v1154 = vrot.slane %v1150, 4
  %v1155 = vsel %vm100, %v1151, %v1152
  %vm1156 = vcmask 457728
  %v1157 = vsel %vm1156, %v1144, %v1155
  %v1158 = vsel %vm100, %v1152, %v1153
  %v1159 = vsel %vm1156, %v1146, %v1158
  %v1160 = vsel %vm100, %v1153, %v1154
  %v1161 = vsel %vm1156, %v1148, %v1160
  %v1162 = vsel %vm1156, %v1150, %v1154
  %1167 = vst [vmem:[#allocation2 + $0xfc] sm:$0x33] %v1157
  %1168 = vst [vmem:[#allocation2 + $0x104] sm:$0x33] %v1159
  %1169 = vst [vmem:[#allocation2 + $0x10c] sm:$0x33] %v1161
  %1170 = vst [vmem:[#allocation2 + $0x114] sm:$0x3] %v1162
  %v1171 = vld [vmem:[%s0 + $0x2] sm:$0xff]
  %v1172 = vld [vmem:[%s0 + $0xa] sm:$0xff]
  %v1175 = vcombine.low %v1171, %v1171
  %v1177 = vunpack.c.l.s4 1983009808
  %v1178 = vunpack.c.0.s8 %v1177
  %v1179 = vlaneseq
  %v1180 = vshrl.u32 %v1179, 7
  %v1181 = vsub.s32 %v1178, %v1180
  %v1182 = vrot.slane %v1175, %v1181
  %v1184 = vunpack.c.l.s4 1983009808
  %v1185 = vunpack.c.0.s8 %v1184
  %v1186 = vlaneseq
  %v1187 = vshrl.u32 %v1186, 7
  %v1188 = vsub.s32 %v1185, %v1187
  %v1189 = vrot.slane %v1171, %v1188
  %v1190 = vcombine.low %v1172, %v1172
  %v1192 = vunpack.c.l.s4 1983009808
  %v1193 = vunpack.c.0.s8 %v1192
  %v1194 = vlaneseq
  %v1195 = vshrl.u32 %v1194, 7
  %v1196 = vsub.s32 %v1193, %v1195
  %v1197 = vrot.slane %v1190, %v1196
  %v1199 = vunpack.c.l.s4 1983009808
  %v1200 = vunpack.c.0.s8 %v1199
  %v1201 = vlaneseq
  %v1202 = vshrl.u32 %v1201, 7
  %v1203 = vsub.s32 %v1200, %v1202
  %v1204 = vrot.slane %v1172, %v1203
  %1205 = vrot.lane.b32.xlu0 %v1182, 55
  %v1206 = vpop.permute.xlu0 %1205
  %1207 = vrot.lane.b32.xlu0 %v1189, 55
  %v1208 = vpop.permute.xlu0 %1207
  %1209 = vrot.lane.b32.xlu0 %v1197, 55
  %v1210 = vpop.permute.xlu0 %1209
  %1211 = vrot.lane.b32.xlu0 %v1204, 55
  %v1212 = vpop.permute.xlu0 %1211
  %v1213 = vrot.slane %v1206, 4
  %v1214 = vrot.slane %v1208, 4
  %v1215 = vrot.slane %v1210, 4
  %v1216 = vrot.slane %v1212, 4
  %v1217 = vsel %vm100, %v1213, %v1214
  %vm1218 = vcmask 449536
  %v1219 = vsel %vm1218, %v1206, %v1217
  %v1220 = vsel %vm100, %v1214, %v1215
  %v1221 = vsel %vm1218, %v1208, %v1220
  %v1222 = vsel %vm100, %v1215, %v1216
  %v1223 = vsel %vm1218, %v1210, %v1222
  %v1224 = vsel %vm1218, %v1212, %v1216
  %1229 = vst [vmem:[#allocation2 + $0xfc] sm:$0xcc] %v1219
  %1230 = vst [vmem:[#allocation2 + $0x104] sm:$0xcc] %v1221
  %1231 = vst [vmem:[#allocation2 + $0x10c] sm:$0xcc] %v1223
  %1232 = vst [vmem:[#allocation2 + $0x114] sm:$0xc] %v1224
  %v1233 = vld [vmem:[%s0 + $0x2] sm:$0xff]
  %v1234 = vld [vmem:[%s0 + $0xa] sm:$0xff]
  %v1237 = vcombine.high %v1233, %v1233
  %v1239 = vunpack.c.l.s4 1983009808
  %v1240 = vunpack.c.0.s8 %v1239
  %v1241 = vlaneseq
  %v1242 = vshrl.u32 %v1241, 7
  %v1243 = vsub.s32 %v1240, %v1242
  %v1244 = vrot.slane %v1233, %v1243
  %v1246 = vunpack.c.l.s4 1983009808
  %v1247 = vunpack.c.0.s8 %v1246
  %v1248 = vlaneseq
  %v1249 = vshrl.u32 %v1248, 7
  %v1250 = vsub.s32 %v1247, %v1249
  %v1251 = vrot.slane %v1237, %v1250
  %v1252 = vcombine.high %v1234, %v1234
  %v1254 = vunpack.c.l.s4 1983009808
  %v1255 = vunpack.c.0.s8 %v1254
  %v1256 = vlaneseq
  %v1257 = vshrl.u32 %v1256, 7
  %v1258 = vsub.s32 %v1255, %v1257
  %v1259 = vrot.slane %v1234, %v1258
  %v1261 = vunpack.c.l.s4 1983009808
  %v1262 = vunpack.c.0.s8 %v1261
  %v1263 = vlaneseq
  %v1264 = vshrl.u32 %v1263, 7
  %v1265 = vsub.s32 %v1262, %v1264
  %v1266 = vrot.slane %v1252, %v1265
  %1267 = vrot.lane.b32.xlu0 %v1244, 54
  %v1268 = vpop.permute.xlu0 %1267
  %1269 = vrot.lane.b32.xlu0 %v1251, 54
  %v1270 = vpop.permute.xlu0 %1269
  %1271 = vrot.lane.b32.xlu0 %v1259, 54
  %v1272 = vpop.permute.xlu0 %1271
  %1273 = vrot.lane.b32.xlu0 %v1266, 54
  %v1274 = vpop.permute.xlu0 %1273
  %v1275 = vrot.slane %v1268, 4
  %v1276 = vrot.slane %v1270, 4
  %v1277 = vrot.slane %v1272, 4
  %v1278 = vrot.slane %v1274, 4
  %v1279 = vsel %vm100, %v1275, %v1276
  %vm1280 = vcmask 441344
  %v1281 = vsel %vm1280, %v1268, %v1279
  %v1282 = vsel %vm100, %v1276, %v1277
  %v1283 = vsel %vm1280, %v1270, %v1282
  %v1284 = vsel %vm100, %v1277, %v1278
  %v1285 = vsel %vm1280, %v1272, %v1284
  %v1286 = vsel %vm1280, %v1274, %v1278
  %1291 = vst [vmem:[#allocation2 + $0x118] sm:$0x33] %v1281
  %1292 = vst [vmem:[#allocation2 + $0x120] sm:$0x33] %v1283
  %1293 = vst [vmem:[#allocation2 + $0x128] sm:$0x33] %v1285
  %1294 = vst [vmem:[#allocation2 + $0x130] sm:$0x3] %v1286
  %v1295 = vld [vmem:[%s0 + $0x2] sm:$0xff]
  %v1296 = vld [vmem:[%s0 + $0xa] sm:$0xff]
  %v1299 = vcombine.low %v1295, %v1295
  %v1301 = vunpack.c.l.s4 1983009808
  %v1302 = vunpack.c.0.s8 %v1301
  %v1303 = vlaneseq
  %v1304 = vshrl.u32 %v1303, 7
  %v1305 = vsub.s32 %v1302, %v1304
  %v1306 = vrot.slane %v1299, %v1305
  %v1308 = vunpack.c.l.s4 1983009808
  %v1309 = vunpack.c.0.s8 %v1308
  %v1310 = vlaneseq
  %v1311 = vshrl.u32 %v1310, 7
  %v1312 = vsub.s32 %v1309, %v1311
  %v1313 = vrot.slane %v1295, %v1312
  %v1314 = vcombine.low %v1296, %v1296
  %v1316 = vunpack.c.l.s4 1983009808
  %v1317 = vunpack.c.0.s8 %v1316
  %v1318 = vlaneseq
  %v1319 = vshrl.u32 %v1318, 7
  %v1320 = vsub.s32 %v1317, %v1319
  %v1321 = vrot.slane %v1314, %v1320
  %v1323 = vunpack.c.l.s4 1983009808
  %v1324 = vunpack.c.0.s8 %v1323
  %v1325 = vlaneseq
  %v1326 = vshrl.u32 %v1325, 7
  %v1327 = vsub.s32 %v1324, %v1326
  %v1328 = vrot.slane %v1296, %v1327
  %1329 = vrot.lane.b32.xlu0 %v1306, 46
  %v1330 = vpop.permute.xlu0 %1329
  %1331 = vrot.lane.b32.xlu0 %v1313, 46
  %v1332 = vpop.permute.xlu0 %1331
  %1333 = vrot.lane.b32.xlu0 %v1321, 46
  %v1334 = vpop.permute.xlu0 %1333
  %1335 = vrot.lane.b32.xlu0 %v1328, 46
  %v1336 = vpop.permute.xlu0 %1335
  %v1337 = vrot.slane %v1330, 4
  %v1338 = vrot.slane %v1332, 4
  %v1339 = vrot.slane %v1334, 4
  %v1340 = vrot.slane %v1336, 4
  %v1341 = vsel %vm100, %v1337, %v1338
  %vm1342 = vcmask 375808
  %v1343 = vsel %vm1342, %v1330, %v1341
  %v1344 = vsel %vm100, %v1338, %v1339
  %v1345 = vsel %vm1342, %v1332, %v1344
  %v1346 = vsel %vm100, %v1339, %v1340
  %v1347 = vsel %vm1342, %v1334, %v1346
  %v1348 = vsel %vm1342, %v1336, %v1340
  %1353 = vst [vmem:[#allocation2 + $0x118] sm:$0xcc] %v1343
  %1354 = vst [vmem:[#allocation2 + $0x120] sm:$0xcc] %v1345
  %1355 = vst [vmem:[#allocation2 + $0x128] sm:$0xcc] %v1347
  %1356 = vst [vmem:[#allocation2 + $0x130] sm:$0xc] %v1348
  %v1357 = vld [vmem:[%s0 + $0x2] sm:$0xff]
  %v1358 = vld [vmem:[%s0 + $0xa] sm:$0xff]
  %v1361 = vcombine.high %v1357, %v1357
  %v1363 = vunpack.c.l.s4 1983009808
  %v1364 = vunpack.c.0.s8 %v1363
  %v1365 = vlaneseq
  %v1366 = vshrl.u32 %v1365, 7
  %v1367 = vsub.s32 %v1364, %v1366
  %v1368 = vrot.slane %v1357, %v1367
  %v1370 = vunpack.c.l.s4 1983009808
  %v1371 = vunpack.c.0.s8 %v1370
  %v1372 = vlaneseq
  %v1373 = vshrl.u32 %v1372, 7
  %v1374 = vsub.s32 %v1371, %v1373
  %v1375 = vrot.slane %v1361, %v1374
  %v1376 = vcombine.high %v1358, %v1358
  %v1378 = vunpack.c.l.s4 1983009808
  %v1379 = vunpack.c.0.s8 %v1378
  %v1380 = vlaneseq
  %v1381 = vshrl.u32 %v1380, 7
  %v1382 = vsub.s32 %v1379, %v1381
  %v1383 = vrot.slane %v1358, %v1382
  %v1385 = vunpack.c.l.s4 1983009808
  %v1386 = vunpack.c.0.s8 %v1385
  %v1387 = vlaneseq
  %v1388 = vshrl.u32 %v1387, 7
  %v1389 = vsub.s32 %v1386, %v1388
  %v1390 = vrot.slane %v1376, %v1389
  %1391 = vrot.lane.b32.xlu0 %v1368, 45
  %v1392 = vpop.permute.xlu0 %1391
  %1393 = vrot.lane.b32.xlu0 %v1375, 45
  %v1394 = vpop.permute.xlu0 %1393
  %1395 = vrot.lane.b32.xlu0 %v1383, 45
  %v1396 = vpop.permute.xlu0 %1395
  %1397 = vrot.lane.b32.xlu0 %v1390, 45
  %v1398 = vpop.permute.xlu0 %1397
  %v1399 = vrot.slane %v1392, 4
  %v1400 = vrot.slane %v1394, 4
  %v1401 = vrot.slane %v1396, 4
  %v1402 = vrot.slane %v1398, 4
  %v1403 = vsel %vm100, %v1399, %v1400
  %vm1404 = vcmask 367616
  %v1405 = vsel %vm1404, %v1392, %v1403
  %v1406 = vsel %vm100, %v1400, %v1401
  %v1407 = vsel %vm1404, %v1394, %v1406
  %v1408 = vsel %vm100, %v1401, %v1402
  %v1409 = vsel %vm1404, %v1396, %v1408
  %v1410 = vsel %vm1404, %v1398, %v1402
  %1415 = vst [vmem:[#allocation2 + $0x134] sm:$0x33] %v1405
  %1416 = vst [vmem:[#allocation2 + $0x13c] sm:$0x33] %v1407
  %1417 = vst [vmem:[#allocation2 + $0x144] sm:$0x33] %v1409
  %1418 = vst [vmem:[#allocation2 + $0x14c] sm:$0x3] %v1410
  %v1419 = vld [vmem:[%s0 + $0x2] sm:$0xff]
  %v1420 = vld [vmem:[%s0 + $0xa] sm:$0xff]
  %v1423 = vcombine.low %v1419, %v1419
  %v1425 = vunpack.c.l.s4 1983009808
  %v1426 = vunpack.c.0.s8 %v1425
  %v1427 = vlaneseq
  %v1428 = vshrl.u32 %v1427, 7
  %v1429 = vsub.s32 %v1426, %v1428
  %v1430 = vrot.slane %v1423, %v1429
  %v1432 = vunpack.c.l.s4 1983009808
  %v1433 = vunpack.c.0.s8 %v1432
  %v1434 = vlaneseq
  %v1435 = vshrl.u32 %v1434, 7
  %v1436 = vsub.s32 %v1433, %v1435
  %v1437 = vrot.slane %v1419, %v1436
  %v1438 = vcombine.low %v1420, %v1420
  %v1440 = vunpack.c.l.s4 1983009808
  %v1441 = vunpack.c.0.s8 %v1440
  %v1442 = vlaneseq
  %v1443 = vshrl.u32 %v1442, 7
  %v1444 = vsub.s32 %v1441, %v1443
  %v1445 = vrot.slane %v1438, %v1444
  %v1447 = vunpack.c.l.s4 1983009808
  %v1448 = vunpack.c.0.s8 %v1447
  %v1449 = vlaneseq
  %v1450 = vshrl.u32 %v1449, 7
  %v1451 = vsub.s32 %v1448, %v1450
  %v1452 = vrot.slane %v1420, %v1451
  %1453 = vrot.lane.b32.xlu0 %v1430, 44
  %v1454 = vpop.permute.xlu0 %1453
  %1455 = vrot.lane.b32.xlu0 %v1437, 44
  %v1456 = vpop.permute.xlu0 %1455
  %1457 = vrot.lane.b32.xlu0 %v1445, 44
  %v1458 = vpop.permute.xlu0 %1457
  %1459 = vrot.lane.b32.xlu0 %v1452, 44
  %v1460 = vpop.permute.xlu0 %1459
  %v1461 = vrot.slane %v1454, 4
  %v1462 = vrot.slane %v1456, 4
  %v1463 = vrot.slane %v1458, 4
  %v1464 = vrot.slane %v1460, 4
  %v1465 = vsel %vm100, %v1461, %v1462
  %vm1466 = vcmask 359424
  %v1467 = vsel %vm1466, %v1454, %v1465
  %v1468 = vsel %vm100, %v1462, %v1463
  %v1469 = vsel %vm1466, %v1456, %v1468
  %v1470 = vsel %vm100, %v1463, %v1464
  %v1471 = vsel %vm1466, %v1458, %v1470
  %v1472 = vsel %vm1466, %v1460, %v1464
  %1477 = vst [vmem:[#allocation2 + $0x134] sm:$0xcc] %v1467
  %1478 = vst [vmem:[#allocation2 + $0x13c] sm:$0xcc] %v1469
  %1479 = vst [vmem:[#allocation2 + $0x144] sm:$0xcc] %v1471
  %1480 = vst [vmem:[#allocation2 + $0x14c] sm:$0xc] %v1472
  %v1481 = vld [vmem:[%s0 + $0x2] sm:$0xff]
  %v1482 = vld [vmem:[%s0 + $0xa] sm:$0xff]
  %v1485 = vcombine.high %v1481, %v1481
  %v1487 = vunpack.c.l.s4 1983009808
  %v1488 = vunpack.c.0.s8 %v1487
  %v1489 = vlaneseq
  %v1490 = vshrl.u32 %v1489, 7
  %v1491 = vsub.s32 %v1488, %v1490
  %v1492 = vrot.slane %v1481, %v1491
  %v1494 = vunpack.c.l.s4 1983009808
  %v1495 = vunpack.c.0.s8 %v1494
  %v1496 = vlaneseq
  %v1497 = vshrl.u32 %v1496, 7
  %v1498 = vsub.s32 %v1495, %v1497
  %v1499 = vrot.slane %v1485, %v1498
  %v1500 = vcombine.high %v1482, %v1482
  %v1502 = vunpack.c.l.s4 1983009808
  %v1503 = vunpack.c.0.s8 %v1502
  %v1504 = vlaneseq
  %v1505 = vshrl.u32 %v1504, 7
  %v1506 = vsub.s32 %v1503, %v1505
  %v1507 = vrot.slane %v1482, %v1506
  %v1509 = vunpack.c.l.s4 1983009808
  %v1510 = vunpack.c.0.s8 %v1509
  %v1511 = vlaneseq
  %v1512 = vshrl.u32 %v1511, 7
  %v1513 = vsub.s32 %v1510, %v1512
  %v1514 = vrot.slane %v1500, %v1513
  %1515 = vrot.lane.b32.xlu0 %v1492, 36
  %v1516 = vpop.permute.xlu0 %1515
  %1517 = vrot.lane.b32.xlu0 %v1499, 36
  %v1518 = vpop.permute.xlu0 %1517
  %1519 = vrot.lane.b32.xlu0 %v1507, 36
  %v1520 = vpop.permute.xlu0 %1519
  %1521 = vrot.lane.b32.xlu0 %v1514, 36
  %v1522 = vpop.permute.xlu0 %1521
  %v1523 = vrot.slane %v1516, 4
  %v1524 = vrot.slane %v1518, 4
  %v1525 = vrot.slane %v1520, 4
  %v1526 = vrot.slane %v1522, 4
  %v1527 = vsel %vm100, %v1523, %v1524
  %vm1528 = vcmask 293888
  %v1529 = vsel %vm1528, %v1516, %v1527
  %v1530 = vsel %vm100, %v1524, %v1525
  %v1531 = vsel %vm1528, %v1518, %v1530
  %v1532 = vsel %vm100, %v1525, %v1526
  %v1533 = vsel %vm1528, %v1520, %v1532
  %v1534 = vsel %vm1528, %v1522, %v1526
  %1539 = vst [vmem:[#allocation2 + $0x150] sm:$0x33] %v1529
  %1540 = vst [vmem:[#allocation2 + $0x158] sm:$0x33] %v1531
  %1541 = vst [vmem:[#allocation2 + $0x160] sm:$0x33] %v1533
  %1542 = vst [vmem:[#allocation2 + $0x168] sm:$0x3] %v1534
  %v1543 = vld [vmem:[%s0 + $0x2] sm:$0xff]
  %v1544 = vld [vmem:[%s0 + $0xa] sm:$0xff]
  %v1547 = vcombine.low %v1543, %v1543
  %v1549 = vunpack.c.l.s4 1983009808
  %v1550 = vunpack.c.0.s8 %v1549
  %v1551 = vlaneseq
  %v1552 = vshrl.u32 %v1551, 7
  %v1553 = vsub.s32 %v1550, %v1552
  %v1554 = vrot.slane %v1547, %v1553
  %v1556 = vunpack.c.l.s4 1983009808
  %v1557 = vunpack.c.0.s8 %v1556
  %v1558 = vlaneseq
  %v1559 = vshrl.u32 %v1558, 7
  %v1560 = vsub.s32 %v1557, %v1559
  %v1561 = vrot.slane %v1543, %v1560
  %v1562 = vcombine.low %v1544, %v1544
  %v1564 = vunpack.c.l.s4 1983009808
  %v1565 = vunpack.c.0.s8 %v1564
  %v1566 = vlaneseq
  %v1567 = vshrl.u32 %v1566, 7
  %v1568 = vsub.s32 %v1565, %v1567
  %v1569 = vrot.slane %v1562, %v1568
  %v1571 = vunpack.c.l.s4 1983009808
  %v1572 = vunpack.c.0.s8 %v1571
  %v1573 = vlaneseq
  %v1574 = vshrl.u32 %v1573, 7
  %v1575 = vsub.s32 %v1572, %v1574
  %v1576 = vrot.slane %v1544, %v1575
  %1577 = vrot.lane.b32.xlu0 %v1554, 35
  %v1578 = vpop.permute.xlu0 %1577
  %1579 = vrot.lane.b32.xlu0 %v1561, 35
  %v1580 = vpop.permute.xlu0 %1579
  %1581 = vrot.lane.b32.xlu0 %v1569, 35
  %v1582 = vpop.permute.xlu0 %1581
  %1583 = vrot.lane.b32.xlu0 %v1576, 35
  %v1584 = vpop.permute.xlu0 %1583
  %v1585 = vrot.slane %v1578, 4
  %v1586 = vrot.slane %v1580, 4
  %v1587 = vrot.slane %v1582, 4
  %v1588 = vrot.slane %v1584, 4
  %v1589 = vsel %vm100, %v1585, %v1586
  %vm1590 = vcmask 285696
  %v1591 = vsel %vm1590, %v1578, %v1589
  %v1592 = vsel %vm100, %v1586, %v1587
  %v1593 = vsel %vm1590, %v1580, %v1592
  %v1594 = vsel %vm100, %v1587, %v1588
  %v1595 = vsel %vm1590, %v1582, %v1594
  %v1596 = vsel %vm1590, %v1584, %v1588
  %1601 = vst [vmem:[#allocation2 + $0x150] sm:$0xcc] %v1591
  %1602 = vst [vmem:[#allocation2 + $0x158] sm:$0xcc] %v1593
  %1603 = vst [vmem:[#allocation2 + $0x160] sm:$0xcc] %v1595
  %1604 = vst [vmem:[#allocation2 + $0x168] sm:$0xc] %v1596
  %v1605 = vld [vmem:[%s0 + $0x2] sm:$0xff]
  %v1606 = vld [vmem:[%s0 + $0xa] sm:$0xff]
  %v1609 = vcombine.high %v1605, %v1605
  %v1611 = vunpack.c.l.s4 1983009808
  %v1612 = vunpack.c.0.s8 %v1611
  %v1613 = vlaneseq
  %v1614 = vshrl.u32 %v1613, 7
  %v1615 = vsub.s32 %v1612, %v1614
  %v1616 = vrot.slane %v1605, %v1615
  %v1618 = vunpack.c.l.s4 1983009808
  %v1619 = vunpack.c.0.s8 %v1618
  %v1620 = vlaneseq
  %v1621 = vshrl.u32 %v1620, 7
  %v1622 = vsub.s32 %v1619, %v1621
  %v1623 = vrot.slane %v1609, %v1622
  %v1624 = vcombine.high %v1606, %v1606
  %v1626 = vunpack.c.l.s4 1983009808
  %v1627 = vunpack.c.0.s8 %v1626
  %v1628 = vlaneseq
  %v1629 = vshrl.u32 %v1628, 7
  %v1630 = vsub.s32 %v1627, %v1629
  %v1631 = vrot.slane %v1606, %v1630
  %v1633 = vunpack.c.l.s4 1983009808
  %v1634 = vunpack.c.0.s8 %v1633
  %v1635 = vlaneseq
  %v1636 = vshrl.u32 %v1635, 7
  %v1637 = vsub.s32 %v1634, %v1636
  %v1638 = vrot.slane %v1624, %v1637
  %1639 = vrot.lane.b32.xlu0 %v1616, 34
  %v1640 = vpop.permute.xlu0 %1639
  %1641 = vrot.lane.b32.xlu0 %v1623, 34
  %v1642 = vpop.permute.xlu0 %1641
  %1643 = vrot.lane.b32.xlu0 %v1631, 34
  %v1644 = vpop.permute.xlu0 %1643
  %1645 = vrot.lane.b32.xlu0 %v1638, 34
  %v1646 = vpop.permute.xlu0 %1645
  %v1647 = vrot.slane %v1640, 4
  %v1648 = vrot.slane %v1642, 4
  %v1649 = vrot.slane %v1644, 4
  %v1650 = vrot.slane %v1646, 4
  %v1651 = vsel %vm100, %v1647, %v1648
  %vm1652 = vcmask 277504
  %v1653 = vsel %vm1652, %v1640, %v1651
  %v1654 = vsel %vm100, %v1648, %v1649
  %v1655 = vsel %vm1652, %v1642, %v1654
  %v1656 = vsel %vm100, %v1649, %v1650
  %v1657 = vsel %vm1652, %v1644, %v1656
  %v1658 = vsel %vm1652, %v1646, %v1650
  %1663 = vst [vmem:[#allocation2 + $0x16c] sm:$0x33] %v1653
  %1664 = vst [vmem:[#allocation2 + $0x174] sm:$0x33] %v1655
  %1665 = vst [vmem:[#allocation2 + $0x17c] sm:$0x33] %v1657
  %1666 = vst [vmem:[#allocation2 + $0x184] sm:$0x3] %v1658
  %v1667 = vld [vmem:[%s1] sm:$0xf]
  %v1668 = vld [vmem:[#allocation2] sm:$0xff]
  %v1669 = vld [vmem:[#allocation2 + $0x8] sm:$0xff]
  %v1670 = vld [vmem:[#allocation2 + $0x10] sm:$0xff]
  %v1671 = vld [vmem:[#allocation2 + $0x18] sm:$0xf]
  %v1672 = vld [vmem:[#allocation2 + $0x1c] sm:$0xff]
  %v1673 = vld [vmem:[#allocation2 + $0x24] sm:$0xff]
  %v1674 = vld [vmem:[#allocation2 + $0x2c] sm:$0xff]
  %v1675 = vld [vmem:[#allocation2 + $0x34] sm:$0xf]
  %v1676 = vld [vmem:[#allocation2 + $0x38] sm:$0xff]
  %v1677 = vld [vmem:[#allocation2 + $0x40] sm:$0xff]
  %v1678 = vld [vmem:[#allocation2 + $0x48] sm:$0xff]
  %v1679 = vld [vmem:[#allocation2 + $0x50] sm:$0xf]
  %v1680 = vld [vmem:[#allocation2 + $0x54] sm:$0xff]
  %v1681 = vld [vmem:[#allocation2 + $0x5c] sm:$0xff]
  %v1682 = vld [vmem:[#allocation2 + $0x64] sm:$0xff]
  %v1683 = vld [vmem:[#allocation2 + $0x6c] sm:$0xf]
  %v1684 = vld [vmem:[#allocation2 + $0x70] sm:$0xff]
  %v1685 = vld [vmem:[#allocation2 + $0x78] sm:$0xff]
  %v1686 = vld [vmem:[#allocation2 + $0x80] sm:$0xff]
  %v1687 = vld [vmem:[#allocation2 + $0x88] sm:$0xf]
  %v1688 = vld [vmem:[#allocation2 + $0x8c] sm:$0xff]
  %v1689 = vld [vmem:[#allocation2 + $0x94] sm:$0xff]
  %v1690 = vld [vmem:[#allocation2 + $0x9c] sm:$0xff]
  %v1691 = vld [vmem:[#allocation2 + $0xa4] sm:$0xf]
  %v1692 = vld [vmem:[#allocation2 + $0xa8] sm:$0xff]
  %v1693 = vld [vmem:[#allocation2 + $0xb0] sm:$0xff]
  %v1694 = vld [vmem:[#allocation2 + $0xb8] sm:$0xff]
  %v1695 = vld [vmem:[#allocation2 + $0xc0] sm:$0xf]
  %v1696 = vld [vmem:[#allocation2 + $0xc4] sm:$0xff]
  %v1697 = vld [vmem:[#allocation2 + $0xcc] sm:$0xff]
  %v1698 = vld [vmem:[#allocation2 + $0xd4] sm:$0xff]
  %v1699 = vld [vmem:[#allocation2 + $0xdc] sm:$0xf]
  %v1700 = vld [vmem:[#allocation2 + $0xe0] sm:$0xff]
  %v1701 = vld [vmem:[#allocation2 + $0xe8] sm:$0xff]
  %v1702 = vld [vmem:[#allocation2 + $0xf0] sm:$0xff]
  %v1703 = vld [vmem:[#allocation2 + $0xf8] sm:$0xf]
  %v1704 = vld [vmem:[#allocation2 + $0xfc] sm:$0xff]
  %v1705 = vld [vmem:[#allocation2 + $0x104] sm:$0xff]
  %v1706 = vld [vmem:[#allocation2 + $0x10c] sm:$0xff]
  %v1707 = vld [vmem:[#allocation2 + $0x114] sm:$0xf]
  %v1708 = vld [vmem:[#allocation2 + $0x118] sm:$0xff]
  %v1709 = vld [vmem:[#allocation2 + $0x120] sm:$0xff]
  %v1710 = vld [vmem:[#allocation2 + $0x128] sm:$0xff]
  %v1711 = vld [vmem:[#allocation2 + $0x130] sm:$0xf]
  %v1712 = vld [vmem:[#allocation2 + $0x134] sm:$0xff]
  %v1713 = vld [vmem:[#allocation2 + $0x13c] sm:$0xff]
  %v1714 = vld [vmem:[#allocation2 + $0x144] sm:$0xff]
  %v1715 = vld [vmem:[#allocation2 + $0x14c] sm:$0xf]
  %v1716 = vld [vmem:[#allocation2 + $0x150] sm:$0xff]
  %v1717 = vld [vmem:[#allocation2 + $0x158] sm:$0xff]
  %v1718 = vld [vmem:[#allocation2 + $0x160] sm:$0xff]
  %v1719 = vld [vmem:[#allocation2 + $0x168] sm:$0xf]
  %v1720 = vld [vmem:[#allocation2 + $0x16c] sm:$0x33]
  %v1721 = vld [vmem:[#allocation2 + $0x174] sm:$0x33]
  %v1722 = vld [vmem:[#allocation2 + $0x17c] sm:$0x33]
  %v1723 = vld [vmem:[#allocation2 + $0x184] sm:$0x3]
  %v1780 = vunpack.c.l.b16 %v1668
  %v1781 = vunpack.c.h.b16 %v1668
  %v1782 = vunpack.c.l.b16 %v1669
  %v1783 = vunpack.c.h.b16 %v1669
  %v1784 = vunpack.c.l.b16 %v1670
  %v1785 = vunpack.c.h.b16 %v1670
  %v1786 = vunpack.c.l.b16 %v1671
  %v1787 = vunpack.c.l.b16 %v1672
  %v1788 = vunpack.c.h.b16 %v1672
  %v1789 = vunpack.c.l.b16 %v1673
  %v1790 = vunpack.c.h.b16 %v1673
  %v1791 = vunpack.c.l.b16 %v1674
  %v1792 = vunpack.c.h.b16 %v1674
  %v1793 = vunpack.c.l.b16 %v1675
  %v1794 = vunpack.c.l.b16 %v1676
  %v1795 = vunpack.c.h.b16 %v1676
  %v1796 = vunpack.c.l.b16 %v1677
  %v1797 = vunpack.c.h.b16 %v1677
  %v1798 = vunpack.c.l.b16 %v1678
  %v1799 = vunpack.c.h.b16 %v1678
  %v1800 = vunpack.c.l.b16 %v1679
  %v1801 = vunpack.c.l.b16 %v1680
  %v1802 = vunpack.c.h.b16 %v1680
  %v1803 = vunpack.c.l.b16 %v1681
  %v1804 = vunpack.c.h.b16 %v1681
  %v1805 = vunpack.c.l.b16 %v1682
  %v1806 = vunpack.c.h.b16 %v1682
  %v1807 = vunpack.c.l.b16 %v1683
  %v1808 = vunpack.c.l.b16 %v1684
  %v1809 = vunpack.c.h.b16 %v1684
  %v1810 = vunpack.c.l.b16 %v1685
  %v1811 = vunpack.c.h.b16 %v1685
  %v1812 = vunpack.c.l.b16 %v1686
  %v1813 = vunpack.c.h.b16 %v1686
  %v1814 = vunpack.c.l.b16 %v1687
  %v1815 = vunpack.c.l.b16 %v1688
  %v1816 = vunpack.c.h.b16 %v1688
  %v1817 = vunpack.c.l.b16 %v1689
  %v1818 = vunpack.c.h.b16 %v1689
  %v1819 = vunpack.c.l.b16 %v1690
  %v1820 = vunpack.c.h.b16 %v1690
  %v1821 = vunpack.c.l.b16 %v1691
  %v1822 = vunpack.c.l.b16 %v1692
  %v1823 = vunpack.c.h.b16 %v1692
  %v1824 = vunpack.c.l.b16 %v1693
  %v1825 = vunpack.c.h.b16 %v1693
  %v1826 = vunpack.c.l.b16 %v1694
  %v1827 = vunpack.c.h.b16 %v1694
  %v1828 = vunpack.c.l.b16 %v1695
  %v1829 = vunpack.c.l.b16 %v1696
  %v1830 = vunpack.c.h.b16 %v1696
  %v1831 = vunpack.c.l.b16 %v1697
  %v1832 = vunpack.c.h.b16 %v1697
  %v1833 = vunpack.c.l.b16 %v1698
  %v1834 = vunpack.c.h.b16 %v1698
  %v1835 = vunpack.c.l.b16 %v1699
  %v1836 = vunpack.c.l.b16 %v1700
  %v1837 = vunpack.c.h.b16 %v1700
  %v1838 = vunpack.c.l.b16 %v1701
  %v1839 = vunpack.c.h.b16 %v1701
  %v1840 = vunpack.c.l.b16 %v1702
  %v1841 = vunpack.c.h.b16 %v1702
  %v1842 = vunpack.c.l.b16 %v1703
  %v1843 = vunpack.c.l.b16 %v1704
  %v1844 = vunpack.c.h.b16 %v1704
  %v1845 = vunpack.c.l.b16 %v1705
  %v1846 = vunpack.c.h.b16 %v1705
  %v1847 = vunpack.c.l.b16 %v1706
  %v1848 = vunpack.c.h.b16 %v1706
  %v1849 = vunpack.c.l.b16 %v1707
  %v1850 = vunpack.c.l.b16 %v1708
  %v1851 = vunpack.c.h.b16 %v1708
  %v1852 = vunpack.c.l.b16 %v1709
  %v1853 = vunpack.c.h.b16 %v1709
  %v1854 = vunpack.c.l.b16 %v1710
  %v1855 = vunpack.c.h.b16 %v1710
  %v1856 = vunpack.c.l.b16 %v1711
  %v1857 = vunpack.c.l.b16 %v1712
  %v1858 = vunpack.c.h.b16 %v1712
  %v1859 = vunpack.c.l.b16 %v1713
  %v1860 = vunpack.c.h.b16 %v1713
  %v1861 = vunpack.c.l.b16 %v1714
  %v1862 = vunpack.c.h.b16 %v1714
  %v1863 = vunpack.c.l.b16 %v1715
  %v1864 = vunpack.c.l.b16 %v1716
  %v1865 = vunpack.c.h.b16 %v1716
  %v1866 = vunpack.c.l.b16 %v1717
  %v1867 = vunpack.c.h.b16 %v1717
  %v1868 = vunpack.c.l.b16 %v1718
  %v1869 = vunpack.c.h.b16 %v1718
  %v1870 = vunpack.c.l.b16 %v1719
  %v1871 = vunpack.c.l.b16 %v1720
  %v1872 = vunpack.c.h.b16 %v1720
  %v1873 = vunpack.c.l.b16 %v1721
  %v1874 = vunpack.c.h.b16 %v1721
  %v1875 = vunpack.c.l.b16 %v1722
  %v1876 = vunpack.c.h.b16 %v1722
  %v1877 = vunpack.c.l.b16 %v1723
  %v1878 = vpack.c.b16 %v1787, %v1780
  %v1879 = vpack.c.b16 %v1788, %v1781
  %v1880 = vpack.c.b16 %v1789, %v1782
  %v1881 = vpack.c.b16 %v1790, %v1783
  %v1882 = vpack.c.b16 %v1791, %v1784
  %v1883 = vpack.c.b16 %v1792, %v1785
  %v1884 = vpack.c.b16 %v1793, %v1786
  %v1885 = vpack.c.b16 %v1801, %v1794
  %v1886 = vpack.c.b16 %v1802, %v1795
  %v1887 = vpack.c.b16 %v1803, %v1796
  %v1888 = vpack.c.b16 %v1804, %v1797
  %v1889 = vpack.c.b16 %v1805, %v1798
  %v1890 = vpack.c.b16 %v1806, %v1799
  %v1891 = vpack.c.b16 %v1807, %v1800
  %v1892 = vpack.c.b16 %v1815, %v1808
  %v1893 = vpack.c.b16 %v1816, %v1809
  %v1894 = vpack.c.b16 %v1817, %v1810
  %v1895 = vpack.c.b16 %v1818, %v1811
  %v1896 = vpack.c.b16 %v1819, %v1812
  %v1897 = vpack.c.b16 %v1820, %v1813
  %v1898 = vpack.c.b16 %v1821, %v1814
  %v1899 = vpack.c.b16 %v1829, %v1822
  %v1900 = vpack.c.b16 %v1830, %v1823
  %v1901 = vpack.c.b16 %v1831, %v1824
  %v1902 = vpack.c.b16 %v1832, %v1825
  %v1903 = vpack.c.b16 %v1833, %v1826
  %v1904 = vpack.c.b16 %v1834, %v1827
  %v1905 = vpack.c.b16 %v1835, %v1828
  %v1906 = vpack.c.b16 %v1843, %v1836
  %v1907 = vpack.c.b16 %v1844, %v1837
  %v1908 = vpack.c.b16 %v1845, %v1838
  %v1909 = vpack.c.b16 %v1846, %v1839
  %v1910 = vpack.c.b16 %v1847, %v1840
  %v1911 = vpack.c.b16 %v1848, %v1841
  %v1912 = vpack.c.b16 %v1849, %v1842
  %v1913 = vpack.c.b16 %v1857, %v1850
  %v1914 = vpack.c.b16 %v1858, %v1851
  %v1915 = vpack.c.b16 %v1859, %v1852
  %v1916 = vpack.c.b16 %v1860, %v1853
  %v1917 = vpack.c.b16 %v1861, %v1854
  %v1918 = vpack.c.b16 %v1862, %v1855
  %v1919 = vpack.c.b16 %v1863, %v1856
  %v1920 = vpack.c.b16 %v1871, %v1864
  %v1921 = vpack.c.b16 %v1872, %v1865
  %v1922 = vpack.c.b16 %v1873, %v1866
  %v1923 = vpack.c.b16 %v1874, %v1867
  %v1924 = vpack.c.b16 %v1875, %v1868
  %v1925 = vpack.c.b16 %v1876, %v1869
  %v1926 = vpack.c.b16 %v1877, %v1870
  %vm1969 = vcmask 883712
  %v1971 = vsel %vm1969, %v1667, 0
  %vm1973 = vcmask 1045504
  %v1975 = vsel %vm1973, %v1920, 0
  %v1978 = vsel %vm1973, %v1921, 0
  %v1981 = vsel %vm1973, %v1922, 0
  %v1984 = vsel %vm1973, %v1923, 0
  %v1987 = vsel %vm1973, %v1924, 0
  %v1990 = vsel %vm1973, %v1925, 0
  %v1993 = vsel %vm1973, %v1926, 0
  %1995 = vmatprep.subr.bf16.mxu0 0
  %1996 = vmatpush1.bf16.msra.mxu0 0
  %1997 = vmatprep.subr.bf16.mxu0 %v1978
  %1998 = vmatpush1.bf16.msra.mxu0 %v1975
  %1999 = vmatprep.subr.bf16.mxu0 %v1914
  %2000 = vmatpush1.bf16.msra.mxu0 %v1913
  %2001 = vmatprep.subr.bf16.mxu0 %v1907
  %2002 = vmatpush1.bf16.msra.mxu0 %v1906
  %2003 = vmatprep.subr.bf16.mxu0 %v1900
  %2004 = vmatpush1.bf16.msra.mxu0 %v1899
  %2005 = vmatprep.subr.bf16.mxu0 %v1893
  %2006 = vmatpush1.bf16.msra.mxu0 %v1892
  %2007 = vmatprep.subr.bf16.mxu0 %v1886
  %2008 = vmatpush1.bf16.msra.mxu0 %v1885
  %2009 = vmatprep.subr.bf16.mxu0 %v1879
  %2010 = vmatpush1.bf16.msra.mxu0 %v1878
  %2011 = vmatprep.subr.bf16.mxu0 0
  %2012 = vmatpush2.bf16.msra.mxu0 0
  %2013 = vmatprep.subr.bf16.mxu0 0
  %2014 = vmatpush2.bf16.msra.mxu0 0
  %2015 = vmatprep.subr.bf16.mxu0 0
  %2016 = vmatpush2.bf16.msra.mxu0 0
  %2017 = vmatprep.subr.bf16.mxu0 0
  %2018 = vmatpush2.bf16.msra.mxu0 0
  %2019 = vmatprep.subr.bf16.mxu0 0
  %2020 = vmatpush2.bf16.msra.mxu0 0
  %2021 = vmatprep.subr.bf16.mxu0 0
  %2022 = vmatpush2.bf16.msra.mxu0 0
  %2023 = vmatprep.subr.bf16.mxu0 0
  %2024 = vmatpush2.bf16.msra.mxu0 0
  %2025 = vmatprep.subr.bf16.mxu0 0
  %2026 = vmatpush2.bf16.msra.mxu0 0
  %2027 = vmatprep.mubr.bf16.mxu0 0
  %2028 = vmatmul.mubr.bf16.gmra.mxu0 %v1971
  %v2029 = vpop.f32.mrf.mxu0
  %v2030 = vadd.f32 0.0, %v2029
  %v2031 = vpop.f32.mrf.mxu0
  %v2032 = vadd.f32 0.0, %v2031
  %v2033 = vpop.f32.mrf.mxu0
  %v2034 = vpop.f32.mrf.mxu0
  %2035 = vdwg.mxu0
  %2036 = vmatprep.subr.bf16.mxu0 0
  %2037 = vmatpush1.bf16.msra.mxu0 0
  %2038 = vmatprep.subr.bf16.mxu0 %v1984
  %2039 = vmatpush1.bf16.msra.mxu0 %v1981
  %2040 = vmatprep.subr.bf16.mxu0 %v1916
  %2041 = vmatpush1.bf16.msra.mxu0 %v1915
  %2042 = vmatprep.subr.bf16.mxu0 %v1909
  %2043 = vmatpush1.bf16.msra.mxu0 %v1908
  %2044 = vmatprep.subr.bf16.mxu0 %v1902
  %2045 = vmatpush1.bf16.msra.mxu0 %v1901
  %2046 = vmatprep.subr.bf16.mxu0 %v1895
  %2047 = vmatpush1.bf16.msra.mxu0 %v1894
  %2048 = vmatprep.subr.bf16.mxu0 %v1888
  %2049 = vmatpush1.bf16.msra.mxu0 %v1887
  %2050 = vmatprep.subr.bf16.mxu0 %v1881
  %2051 = vmatpush1.bf16.msra.mxu0 %v1880
  %2052 = vmatprep.subr.bf16.mxu0 0
  %2053 = vmatpush2.bf16.msra.mxu0 0
  %2054 = vmatprep.subr.bf16.mxu0 0
  %2055 = vmatpush2.bf16.msra.mxu0 0
  %2056 = vmatprep.subr.bf16.mxu0 0
  %2057 = vmatpush2.bf16.msra.mxu0 0
  %2058 = vmatprep.subr.bf16.mxu0 0
  %2059 = vmatpush2.bf16.msra.mxu0 0
  %2060 = vmatprep.subr.bf16.mxu0 0
  %2061 = vmatpush2.bf16.msra.mxu0 0
  %2062 = vmatprep.subr.bf16.mxu0 0
  %2063 = vmatpush2.bf16.msra.mxu0 0
  %2064 = vmatprep.subr.bf16.mxu0 0
  %2065 = vmatpush2.bf16.msra.mxu0 0
  %2066 = vmatprep.subr.bf16.mxu0 0
  %2067 = vmatpush2.bf16.msra.mxu0 0
  %2068 = vmatprep.mubr.bf16.mxu0 0
  %2069 = vmatmul.mubr.bf16.gmra.mxu0 %v1971
  %v2070 = vpop.f32.mrf.mxu0
  %v2071 = vadd.f32 0.0, %v2070
  %v2072 = vpop.f32.mrf.mxu0
  %v2073 = vadd.f32 0.0, %v2072
  %v2074 = vpop.f32.mrf.mxu0
  %v2075 = vpop.f32.mrf.mxu0
  %2076 = vdwg.mxu0
  %2077 = vmatprep.subr.bf16.mxu0 0
  %2078 = vmatpush1.bf16.msra.mxu0 0
  %2079 = vmatprep.subr.bf16.mxu0 %v1990
  %2080 = vmatpush1.bf16.msra.mxu0 %v1987
  %2081 = vmatprep.subr.bf16.mxu0 %v1918
  %2082 = vmatpush1.bf16.msra.mxu0 %v1917
  %2083 = vmatprep.subr.bf16.mxu0 %v1911
  %2084 = vmatpush1.bf16.msra.mxu0 %v1910
  %2085 = vmatprep.subr.bf16.mxu0 %v1904
  %2086 = vmatpush1.bf16.msra.mxu0 %v1903
  %2087 = vmatprep.subr.bf16.mxu0 %v1897
  %2088 = vmatpush1.bf16.msra.mxu0 %v1896
  %2089 = vmatprep.subr.bf16.mxu0 %v1890
  %2090 = vmatpush1.bf16.msra.mxu0 %v1889
  %2091 = vmatprep.subr.bf16.mxu0 %v1883
  %2092 = vmatpush1.bf16.msra.mxu0 %v1882
  %2093 = vmatprep.subr.bf16.mxu0 0
  %2094 = vmatpush2.bf16.msra.mxu0 0
  %2095 = vmatprep.subr.bf16.mxu0 0
  %2096 = vmatpush2.bf16.msra.mxu0 0
  %2097 = vmatprep.subr.bf16.mxu0 0
  %2098 = vmatpush2.bf16.msra.mxu0 0
  %2099 = vmatprep.subr.bf16.mxu0 0
  %2100 = vmatpush2.bf16.msra.mxu0 0
  %2101 = vmatprep.subr.bf16.mxu0 0
  %2102 = vmatpush2.bf16.msra.mxu0 0
  %2103 = vmatprep.subr.bf16.mxu0 0
  %2104 = vmatpush2.bf16.msra.mxu0 0
  %2105 = vmatprep.subr.bf16.mxu0 0
  %2106 = vmatpush2.bf16.msra.mxu0 0
  %2107 = vmatprep.subr.bf16.mxu0 0
  %2108 = vmatpush2.bf16.msra.mxu0 0
  %2109 = vmatprep.mubr.bf16.mxu0 0
  %2110 = vmatmul.mubr.bf16.gmra.mxu0 %v1971
  %v2111 = vpop.f32.mrf.mxu0
  %v2112 = vadd.f32 0.0, %v2111
  %v2113 = vpop.f32.mrf.mxu0
  %v2114 = vadd.f32 0.0, %v2113
  %v2115 = vpop.f32.mrf.mxu0
  %v2116 = vpop.f32.mrf.mxu0
  %2117 = vdwg.mxu0
  %2118 = vmatprep.subr.bf16.mxu0 0
  %2119 = vmatpush1.bf16.msra.mxu0 0
  %2120 = vmatprep.subr.bf16.mxu0 0
  %2121 = vmatpush1.bf16.msra.mxu0 %v1993
  %2122 = vmatprep.subr.bf16.mxu0 0
  %2123 = vmatpush1.bf16.msra.mxu0 %v1919
  %2124 = vmatprep.subr.bf16.mxu0 0
  %2125 = vmatpush1.bf16.msra.mxu0 %v1912
  %2126 = vmatprep.subr.bf16.mxu0 0
  %2127 = vmatpush1.bf16.msra.mxu0 %v1905
  %2128 = vmatprep.subr.bf16.mxu0 0
  %2129 = vmatpush1.bf16.msra.mxu0 %v1898
  %2130 = vmatprep.subr.bf16.mxu0 0
  %2131 = vmatpush1.bf16.msra.mxu0 %v1891
  %2132 = vmatprep.subr.bf16.mxu0 0
  %2133 = vmatpush1.bf16.msra.mxu0 %v1884
  %2134 = vmatprep.subr.bf16.mxu0 0
  %2135 = vmatpush2.bf16.msra.mxu0 0
  %2136 = vmatprep.subr.bf16.mxu0 0
  %2137 = vmatpush2.bf16.msra.mxu0 0
  %2138 = vmatprep.subr.bf16.mxu0 0
  %2139 = vmatpush2.bf16.msra.mxu0 0
  %2140 = vmatprep.subr.bf16.mxu0 0
  %2141 = vmatpush2.bf16.msra.mxu0 0
  %2142 = vmatprep.subr.bf16.mxu0 0
  %2143 = vmatpush2.bf16.msra.mxu0 0
  %2144 = vmatprep.subr.bf16.mxu0 0
  %2145 = vmatpush2.bf16.msra.mxu0 0
  %2146 = vmatprep.subr.bf16.mxu0 0
  %2147 = vmatpush2.bf16.msra.mxu0 0
  %2148 = vmatprep.subr.bf16.mxu0 0
  %2149 = vmatpush2.bf16.msra.mxu0 0
  %2150 = vmatprep.mubr.bf16.mxu0 0
  %2151 = vmatmul.mubr.bf16.gmra.mxu0 %v1971
  %v2152 = vpop.f32.mrf.mxu0
  %v2153 = vadd.f32 0.0, %v2152
  %v2154 = vpop.f32.mrf.mxu0
  %v2155 = vpop.f32.mrf.mxu0
  %v2156 = vpop.f32.mrf.mxu0
  %2157 = vdwg.mxu0
  %v2158 = vmax.f32 %v2030, 0.0
  %v2159 = vmax.f32 %v2032, 0.0
  %v2160 = vmax.f32 %v2071, 0.0
  %v2161 = vmax.f32 %v2073, 0.0
  %v2162 = vmax.f32 %v2112, 0.0
  %v2163 = vmax.f32 %v2114, 0.0
  %v2164 = vmax.f32 %v2153, 0.0
  %2165 = vst [vmem:[%s2] sm:$0xff] %v2158
  %2166 = vst [vmem:[%s2 + $0x8] sm:$0xff] %v2159
  %2167 = vst [vmem:[%s2 + $0x10] sm:$0xff] %v2160
  %2168 = vst [vmem:[%s2 + $0x18] sm:$0xff] %v2161
  %2169 = vst [vmem:[%s2 + $0x20] sm:$0xff] %v2162
  %2170 = vst [vmem:[%s2 + $0x28] sm:$0xff] %v2163
  %2171 = vst [vmem:[%s2 + $0x30] sm:$0xff] %v2164
  %s2172 = scalar_lea.vmem %s0, 20
  %v2173 = vld [vmem:[%s2172] sm:$0xff]
  %v2174 = vld [vmem:[%s2172 + $0x8] sm:$0x3f]
  %v2177 = vcombine.high %v2173, %v2173
  %v2179 = vunpack.c.l.s4 1983009808
  %v2180 = vunpack.c.0.s8 %v2179
  %v2181 = vlaneseq
  %v2182 = vshrl.u32 %v2181, 7
  %v2183 = vsub.s32 %v2180, %v2182
  %v2184 = vrot.slane %v2173, %v2183
  %v2186 = vunpack.c.l.s4 1983009808
  %v2187 = vunpack.c.0.s8 %v2186
  %v2188 = vlaneseq
  %v2189 = vshrl.u32 %v2188, 7
  %v2190 = vsub.s32 %v2187, %v2189
  %v2191 = vrot.slane %v2177, %v2190
  %v2192 = vcombine.high %v2174, %v2174
  %v2194 = vunpack.c.l.s4 1983009808
  %v2195 = vunpack.c.0.s8 %v2194
  %v2196 = vlaneseq
  %v2197 = vshrl.u32 %v2196, 7
  %v2198 = vsub.s32 %v2195, %v2197
  %v2199 = vrot.slane %v2174, %v2198
  %v2201 = vunpack.c.l.s4 1983009808
  %v2202 = vunpack.c.0.s8 %v2201
  %v2203 = vlaneseq
  %v2204 = vshrl.u32 %v2203, 7
  %v2205 = vsub.s32 %v2202, %v2204
  %v2206 = vrot.slane %v2192, %v2205
  %2211 = vst [vmem:[#allocation2] sm:$0x33] %v2184
  %2212 = vst [vmem:[#allocation2 + $0x8] sm:$0x33] %v2191
  %2213 = vst [vmem:[#allocation2 + $0x10] sm:$0x33] %v2199
  %2214 = vst [vmem:[#allocation2 + $0x18] sm:$0x3] %v2206
  %v2215 = vld [vmem:[%s2172] sm:$0xff]
  %v2216 = vld [vmem:[%s2172 + $0x8] sm:$0xff]
  %v2219 = vcombine.low %v2215, %v2215
  %v2221 = vunpack.c.l.s4 1983009808
  %v2222 = vunpack.c.0.s8 %v2221
  %v2223 = vlaneseq
  %v2224 = vshrl.u32 %v2223, 7
  %v2225 = vsub.s32 %v2222, %v2224
  %v2226 = vrot.slane %v2219, %v2225
  %v2228 = vunpack.c.l.s4 1983009808
  %v2229 = vunpack.c.0.s8 %v2228
  %v2230 = vlaneseq
  %v2231 = vshrl.u32 %v2230, 7
  %v2232 = vsub.s32 %v2229, %v2231
  %v2233 = vrot.slane %v2215, %v2232
  %v2234 = vcombine.low %v2216, %v2216
  %v2236 = vunpack.c.l.s4 1983009808
  %v2237 = vunpack.c.0.s8 %v2236
  %v2238 = vlaneseq
  %v2239 = vshrl.u32 %v2238, 7
  %v2240 = vsub.s32 %v2237, %v2239
  %v2241 = vrot.slane %v2234, %v2240
  %v2243 = vunpack.c.l.s4 1983009808
  %v2244 = vunpack.c.0.s8 %v2243
  %v2245 = vlaneseq
  %v2246 = vshrl.u32 %v2245, 7
  %v2247 = vsub.s32 %v2244, %v2246
  %v2248 = vrot.slane %v2216, %v2247
  %2249 = vrot.lane.b32.xlu0 %v2226, 127
  %v2250 = vpop.permute.xlu0 %2249
  %2251 = vrot.lane.b32.xlu0 %v2233, 127
  %v2252 = vpop.permute.xlu0 %2251
  %2253 = vrot.lane.b32.xlu0 %v2241, 127
  %v2254 = vpop.permute.xlu0 %2253
  %2255 = vrot.lane.b32.xlu0 %v2248, 127
  %v2256 = vpop.permute.xlu0 %2255
  %v2257 = vrot.slane %v2250, 4
  %v2258 = vrot.slane %v2252, 4
  %v2259 = vrot.slane %v2254, 4
  %v2260 = vrot.slane %v2256, 4
  %v2261 = vsel %vm100, %v2257, %v2258
  %v2262 = vsel %vm102, %v2250, %v2261
  %v2263 = vsel %vm100, %v2258, %v2259
  %v2264 = vsel %vm102, %v2252, %v2263
  %v2265 = vsel %vm100, %v2259, %v2260
  %v2266 = vsel %vm102, %v2254, %v2265
  %v2267 = vsel %vm102, %v2256, %v2260
  %2272 = vst [vmem:[#allocation2] sm:$0xcc] %v2262
  %2273 = vst [vmem:[#allocation2 + $0x8] sm:$0xcc] %v2264
  %2274 = vst [vmem:[#allocation2 + $0x10] sm:$0xcc] %v2266
  %2275 = vst [vmem:[#allocation2 + $0x18] sm:$0xc] %v2267
  %v2276 = vld [vmem:[%s2172] sm:$0xff]
  %v2277 = vld [vmem:[%s2172 + $0x8] sm:$0xff]
  %v2280 = vcombine.high %v2276, %v2276
  %v2282 = vunpack.c.l.s4 1983009808
  %v2283 = vunpack.c.0.s8 %v2282
  %v2284 = vlaneseq
  %v2285 = vshrl.u32 %v2284, 7
  %v2286 = vsub.s32 %v2283, %v2285
  %v2287 = vrot.slane %v2276, %v2286
  %v2289 = vunpack.c.l.s4 1983009808
  %v2290 = vunpack.c.0.s8 %v2289
  %v2291 = vlaneseq
  %v2292 = vshrl.u32 %v2291, 7
  %v2293 = vsub.s32 %v2290, %v2292
  %v2294 = vrot.slane %v2280, %v2293
  %v2295 = vcombine.high %v2277, %v2277
  %v2297 = vunpack.c.l.s4 1983009808
  %v2298 = vunpack.c.0.s8 %v2297
  %v2299 = vlaneseq
  %v2300 = vshrl.u32 %v2299, 7
  %v2301 = vsub.s32 %v2298, %v2300
  %v2302 = vrot.slane %v2277, %v2301
  %v2304 = vunpack.c.l.s4 1983009808
  %v2305 = vunpack.c.0.s8 %v2304
  %v2306 = vlaneseq
  %v2307 = vshrl.u32 %v2306, 7
  %v2308 = vsub.s32 %v2305, %v2307
  %v2309 = vrot.slane %v2295, %v2308
  %2310 = vrot.lane.b32.xlu0 %v2287, 126
  %v2311 = vpop.permute.xlu0 %2310
  %2312 = vrot.lane.b32.xlu0 %v2294, 126
  %v2313 = vpop.permute.xlu0 %2312
  %2314 = vrot.lane.b32.xlu0 %v2302, 126
  %v2315 = vpop.permute.xlu0 %2314
  %2316 = vrot.lane.b32.xlu0 %v2309, 126
  %v2317 = vpop.permute.xlu0 %2316
  %v2318 = vrot.slane %v2311, 4
  %v2319 = vrot.slane %v2313, 4
  %v2320 = vrot.slane %v2315, 4
  %v2321 = vrot.slane %v2317, 4
  %v2322 = vsel %vm100, %v2318, %v2319
  %v2323 = vsel %vm164, %v2311, %v2322
  %v2324 = vsel %vm100, %v2319, %v2320
  %v2325 = vsel %vm164, %v2313, %v2324
  %v2326 = vsel %vm100, %v2320, %v2321
  %v2327 = vsel %vm164, %v2315, %v2326
  %v2328 = vsel %vm164, %v2317, %v2321
  %2333 = vst [vmem:[#allocation2 + $0x1c] sm:$0x33] %v2323
  %2334 = vst [vmem:[#allocation2 + $0x24] sm:$0x33] %v2325
  %2335 = vst [vmem:[#allocation2 + $0x2c] sm:$0x33] %v2327
  %2336 = vst [vmem:[#allocation2 + $0x34] sm:$0x3] %v2328
  %v2337 = vld [vmem:[%s2172] sm:$0xff]
  %v2338 = vld [vmem:[%s2172 + $0x8] sm:$0xff]
  %v2341 = vcombine.low %v2337, %v2337
  %v2343 = vunpack.c.l.s4 1983009808
  %v2344 = vunpack.c.0.s8 %v2343
  %v2345 = vlaneseq
  %v2346 = vshrl.u32 %v2345, 7
  %v2347 = vsub.s32 %v2344, %v2346
  %v2348 = vrot.slane %v2341, %v2347
  %v2350 = vunpack.c.l.s4 1983009808
  %v2351 = vunpack.c.0.s8 %v2350
  %v2352 = vlaneseq
  %v2353 = vshrl.u32 %v2352, 7
  %v2354 = vsub.s32 %v2351, %v2353
  %v2355 = vrot.slane %v2337, %v2354
  %v2356 = vcombine.low %v2338, %v2338
  %v2358 = vunpack.c.l.s4 1983009808
  %v2359 = vunpack.c.0.s8 %v2358
  %v2360 = vlaneseq
  %v2361 = vshrl.u32 %v2360, 7
  %v2362 = vsub.s32 %v2359, %v2361
  %v2363 = vrot.slane %v2356, %v2362
  %v2365 = vunpack.c.l.s4 1983009808
  %v2366 = vunpack.c.0.s8 %v2365
  %v2367 = vlaneseq
  %v2368 = vshrl.u32 %v2367, 7
  %v2369 = vsub.s32 %v2366, %v2368
  %v2370 = vrot.slane %v2338, %v2369
  %2371 = vrot.lane.b32.xlu0 %v2348, 118
  %v2372 = vpop.permute.xlu0 %2371
  %2373 = vrot.lane.b32.xlu0 %v2355, 118
  %v2374 = vpop.permute.xlu0 %2373
  %2375 = vrot.lane.b32.xlu0 %v2363, 118
  %v2376 = vpop.permute.xlu0 %2375
  %2377 = vrot.lane.b32.xlu0 %v2370, 118
  %v2378 = vpop.permute.xlu0 %2377
  %v2379 = vrot.slane %v2372, 4
  %v2380 = vrot.slane %v2374, 4
  %v2381 = vrot.slane %v2376, 4
  %v2382 = vrot.slane %v2378, 4
  %v2383 = vsel %vm100, %v2379, %v2380
  %v2384 = vsel %vm226, %v2372, %v2383
  %v2385 = vsel %vm100, %v2380, %v2381
  %v2386 = vsel %vm226, %v2374, %v2385
  %v2387 = vsel %vm100, %v2381, %v2382
  %v2388 = vsel %vm226, %v2376, %v2387
  %v2389 = vsel %vm226, %v2378, %v2382
  %2394 = vst [vmem:[#allocation2 + $0x1c] sm:$0xcc] %v2384
  %2395 = vst [vmem:[#allocation2 + $0x24] sm:$0xcc] %v2386
  %2396 = vst [vmem:[#allocation2 + $0x2c] sm:$0xcc] %v2388
  %2397 = vst [vmem:[#allocation2 + $0x34] sm:$0xc] %v2389
  %v2398 = vld [vmem:[%s2172] sm:$0xff]
  %v2399 = vld [vmem:[%s2172 + $0x8] sm:$0xff]
  %v2402 = vcombine.high %v2398, %v2398
  %v2404 = vunpack.c.l.s4 1983009808
  %v2405 = vunpack.c.0.s8 %v2404
  %v2406 = vlaneseq
  %v2407 = vshrl.u32 %v2406, 7
  %v2408 = vsub.s32 %v2405, %v2407
  %v2409 = vrot.slane %v2398, %v2408
  %v2411 = vunpack.c.l.s4 1983009808
  %v2412 = vunpack.c.0.s8 %v2411
  %v2413 = vlaneseq
  %v2414 = vshrl.u32 %v2413, 7
  %v2415 = vsub.s32 %v2412, %v2414
  %v2416 = vrot.slane %v2402, %v2415
  %v2417 = vcombine.high %v2399, %v2399
  %v2419 = vunpack.c.l.s4 1983009808
  %v2420 = vunpack.c.0.s8 %v2419
  %v2421 = vlaneseq
  %v2422 = vshrl.u32 %v2421, 7
  %v2423 = vsub.s32 %v2420, %v2422
  %v2424 = vrot.slane %v2399, %v2423
  %v2426 = vunpack.c.l.s4 1983009808
  %v2427 = vunpack.c.0.s8 %v2426
  %v2428 = vlaneseq
  %v2429 = vshrl.u32 %v2428, 7
  %v2430 = vsub.s32 %v2427, %v2429
  %v2431 = vrot.slane %v2417, %v2430
  %2432 = vrot.lane.b32.xlu0 %v2409, 117
  %v2433 = vpop.permute.xlu0 %2432
  %2434 = vrot.lane.b32.xlu0 %v2416, 117
  %v2435 = vpop.permute.xlu0 %2434
  %2436 = vrot.lane.b32.xlu0 %v2424, 117
  %v2437 = vpop.permute.xlu0 %2436
  %2438 = vrot.lane.b32.xlu0 %v2431, 117
  %v2439 = vpop.permute.xlu0 %2438
  %v2440 = vrot.slane %v2433, 4
  %v2441 = vrot.slane %v2435, 4
  %v2442 = vrot.slane %v2437, 4
  %v2443 = vrot.slane %v2439, 4
  %v2444 = vsel %vm100, %v2440, %v2441
  %v2445 = vsel %vm288, %v2433, %v2444
  %v2446 = vsel %vm100, %v2441, %v2442
  %v2447 = vsel %vm288, %v2435, %v2446
  %v2448 = vsel %vm100, %v2442, %v2443
  %v2449 = vsel %vm288, %v2437, %v2448
  %v2450 = vsel %vm288, %v2439, %v2443
  %2455 = vst [vmem:[#allocation2 + $0x38] sm:$0x33] %v2445
  %2456 = vst [vmem:[#allocation2 + $0x40] sm:$0x33] %v2447
  %2457 = vst [vmem:[#allocation2 + $0x48] sm:$0x33] %v2449
  %2458 = vst [vmem:[#allocation2 + $0x50] sm:$0x3] %v2450
  %v2459 = vld [vmem:[%s2172] sm:$0xff]
  %v2460 = vld [vmem:[%s2172 + $0x8] sm:$0xff]
  %v2463 = vcombine.low %v2459, %v2459
  %v2465 = vunpack.c.l.s4 1983009808
  %v2466 = vunpack.c.0.s8 %v2465
  %v2467 = vlaneseq
  %v2468 = vshrl.u32 %v2467, 7
  %v2469 = vsub.s32 %v2466, %v2468
  %v2470 = vrot.slane %v2463, %v2469
  %v2472 = vunpack.c.l.s4 1983009808
  %v2473 = vunpack.c.0.s8 %v2472
  %v2474 = vlaneseq
  %v2475 = vshrl.u32 %v2474, 7
  %v2476 = vsub.s32 %v2473, %v2475
  %v2477 = vrot.slane %v2459, %v2476
  %v2478 = vcombine.low %v2460, %v2460
  %v2480 = vunpack.c.l.s4 1983009808
  %v2481 = vunpack.c.0.s8 %v2480
  %v2482 = vlaneseq
  %v2483 = vshrl.u32 %v2482, 7
  %v2484 = vsub.s32 %v2481, %v2483
  %v2485 = vrot.slane %v2478, %v2484
  %v2487 = vunpack.c.l.s4 1983009808
  %v2488 = vunpack.c.0.s8 %v2487
  %v2489 = vlaneseq
  %v2490 = vshrl.u32 %v2489, 7
  %v2491 = vsub.s32 %v2488, %v2490
  %v2492 = vrot.slane %v2460, %v2491
  %2493 = vrot.lane.b32.xlu0 %v2470, 116
  %v2494 = vpop.permute.xlu0 %2493
  %2495 = vrot.lane.b32.xlu0 %v2477, 116
  %v2496 = vpop.permute.xlu0 %2495
  %2497 = vrot.lane.b32.xlu0 %v2485, 116
  %v2498 = vpop.permute.xlu0 %2497
  %2499 = vrot.lane.b32.xlu0 %v2492, 116
  %v2500 = vpop.permute.xlu0 %2499
  %v2501 = vrot.slane %v2494, 4
  %v2502 = vrot.slane %v2496, 4
  %v2503 = vrot.slane %v2498, 4
  %v2504 = vrot.slane %v2500, 4
  %v2505 = vsel %vm100, %v2501, %v2502
  %v2506 = vsel %vm350, %v2494, %v2505
  %v2507 = vsel %vm100, %v2502, %v2503
  %v2508 = vsel %vm350, %v2496, %v2507
  %v2509 = vsel %vm100, %v2503, %v2504
  %v2510 = vsel %vm350, %v2498, %v2509
  %v2511 = vsel %vm350, %v2500, %v2504
  %2516 = vst [vmem:[#allocation2 + $0x38] sm:$0xcc] %v2506
  %2517 = vst [vmem:[#allocation2 + $0x40] sm:$0xcc] %v2508
  %2518 = vst [vmem:[#allocation2 + $0x48] sm:$0xcc] %v2510
  %2519 = vst [vmem:[#allocation2 + $0x50] sm:$0xc] %v2511
  %v2520 = vld [vmem:[%s2172] sm:$0xff]
  %v2521 = vld [vmem:[%s2172 + $0x8] sm:$0xff]
  %v2524 = vcombine.high %v2520, %v2520
  %v2526 = vunpack.c.l.s4 1983009808
  %v2527 = vunpack.c.0.s8 %v2526
  %v2528 = vlaneseq
  %v2529 = vshrl.u32 %v2528, 7
  %v2530 = vsub.s32 %v2527, %v2529
  %v2531 = vrot.slane %v2520, %v2530
  %v2533 = vunpack.c.l.s4 1983009808
  %v2534 = vunpack.c.0.s8 %v2533
  %v2535 = vlaneseq
  %v2536 = vshrl.u32 %v2535, 7
  %v2537 = vsub.s32 %v2534, %v2536
  %v2538 = vrot.slane %v2524, %v2537
  %v2539 = vcombine.high %v2521, %v2521
  %v2541 = vunpack.c.l.s4 1983009808
  %v2542 = vunpack.c.0.s8 %v2541
  %v2543 = vlaneseq
  %v2544 = vshrl.u32 %v2543, 7
  %v2545 = vsub.s32 %v2542, %v2544
  %v2546 = vrot.slane %v2521, %v2545
  %v2548 = vunpack.c.l.s4 1983009808
  %v2549 = vunpack.c.0.s8 %v2548
  %v2550 = vlaneseq
  %v2551 = vshrl.u32 %v2550, 7
  %v2552 = vsub.s32 %v2549, %v2551
  %v2553 = vrot.slane %v2539, %v2552
  %2554 = vrot.lane.b32.xlu0 %v2531, 108
  %v2555 = vpop.permute.xlu0 %2554
  %2556 = vrot.lane.b32.xlu0 %v2538, 108
  %v2557 = vpop.permute.xlu0 %2556
  %2558 = vrot.lane.b32.xlu0 %v2546, 108
  %v2559 = vpop.permute.xlu0 %2558
  %2560 = vrot.lane.b32.xlu0 %v2553, 108
  %v2561 = vpop.permute.xlu0 %2560
  %v2562 = vrot.slane %v2555, 4
  %v2563 = vrot.slane %v2557, 4
  %v2564 = vrot.slane %v2559, 4
  %v2565 = vrot.slane %v2561, 4
  %v2566 = vsel %vm100, %v2562, %v2563
  %v2567 = vsel %vm412, %v2555, %v2566
  %v2568 = vsel %vm100, %v2563, %v2564
  %v2569 = vsel %vm412, %v2557, %v2568
  %v2570 = vsel %vm100, %v2564, %v2565
  %v2571 = vsel %vm412, %v2559, %v2570
  %v2572 = vsel %vm412, %v2561, %v2565
  %2577 = vst [vmem:[#allocation2 + $0x54] sm:$0x33] %v2567
  %2578 = vst [vmem:[#allocation2 + $0x5c] sm:$0x33] %v2569
  %2579 = vst [vmem:[#allocation2 + $0x64] sm:$0x33] %v2571
  %2580 = vst [vmem:[#allocation2 + $0x6c] sm:$0x3] %v2572
  %v2581 = vld [vmem:[%s2172] sm:$0xff]
  %v2582 = vld [vmem:[%s2172 + $0x8] sm:$0xff]
  %v2585 = vcombine.low %v2581, %v2581
  %v2587 = vunpack.c.l.s4 1983009808
  %v2588 = vunpack.c.0.s8 %v2587
  %v2589 = vlaneseq
  %v2590 = vshrl.u32 %v2589, 7
  %v2591 = vsub.s32 %v2588, %v2590
  %v2592 = vrot.slane %v2585, %v2591
  %v2594 = vunpack.c.l.s4 1983009808
  %v2595 = vunpack.c.0.s8 %v2594
  %v2596 = vlaneseq
  %v2597 = vshrl.u32 %v2596, 7
  %v2598 = vsub.s32 %v2595, %v2597
  %v2599 = vrot.slane %v2581, %v2598
  %v2600 = vcombine.low %v2582, %v2582
  %v2602 = vunpack.c.l.s4 1983009808
  %v2603 = vunpack.c.0.s8 %v2602
  %v2604 = vlaneseq
  %v2605 = vshrl.u32 %v2604, 7
  %v2606 = vsub.s32 %v2603, %v2605
  %v2607 = vrot.slane %v2600, %v2606
  %v2609 = vunpack.c.l.s4 1983009808
  %v2610 = vunpack.c.0.s8 %v2609
  %v2611 = vlaneseq
  %v2612 = vshrl.u32 %v2611, 7
  %v2613 = vsub.s32 %v2610, %v2612
  %v2614 = vrot.slane %v2582, %v2613
  %2615 = vrot.lane.b32.xlu0 %v2592, 107
  %v2616 = vpop.permute.xlu0 %2615
  %2617 = vrot.lane.b32.xlu0 %v2599, 107
  %v2618 = vpop.permute.xlu0 %2617
  %2619 = vrot.lane.b32.xlu0 %v2607, 107
  %v2620 = vpop.permute.xlu0 %2619
  %2621 = vrot.lane.b32.xlu0 %v2614, 107
  %v2622 = vpop.permute.xlu0 %2621
  %v2623 = vrot.slane %v2616, 4
  %v2624 = vrot.slane %v2618, 4
  %v2625 = vrot.slane %v2620, 4
  %v2626 = vrot.slane %v2622, 4
  %v2627 = vsel %vm100, %v2623, %v2624
  %v2628 = vsel %vm474, %v2616, %v2627
  %v2629 = vsel %vm100, %v2624, %v2625
  %v2630 = vsel %vm474, %v2618, %v2629
  %v2631 = vsel %vm100, %v2625, %v2626
  %v2632 = vsel %vm474, %v2620, %v2631
  %v2633 = vsel %vm474, %v2622, %v2626
  %2638 = vst [vmem:[#allocation2 + $0x54] sm:$0xcc] %v2628
  %2639 = vst [vmem:[#allocation2 + $0x5c] sm:$0xcc] %v2630
  %2640 = vst [vmem:[#allocation2 + $0x64] sm:$0xcc] %v2632
  %2641 = vst [vmem:[#allocation2 + $0x6c] sm:$0xc] %v2633
  %v2642 = vld [vmem:[%s2172] sm:$0xff]
  %v2643 = vld [vmem:[%s2172 + $0x8] sm:$0xff]
  %v2646 = vcombine.high %v2642, %v2642
  %v2648 = vunpack.c.l.s4 1983009808
  %v2649 = vunpack.c.0.s8 %v2648
  %v2650 = vlaneseq
  %v2651 = vshrl.u32 %v2650, 7
  %v2652 = vsub.s32 %v2649, %v2651
  %v2653 = vrot.slane %v2642, %v2652
  %v2655 = vunpack.c.l.s4 1983009808
  %v2656 = vunpack.c.0.s8 %v2655
  %v2657 = vlaneseq
  %v2658 = vshrl.u32 %v2657, 7
  %v2659 = vsub.s32 %v2656, %v2658
  %v2660 = vrot.slane %v2646, %v2659
  %v2661 = vcombine.high %v2643, %v2643
  %v2663 = vunpack.c.l.s4 1983009808
  %v2664 = vunpack.c.0.s8 %v2663
  %v2665 = vlaneseq
  %v2666 = vshrl.u32 %v2665, 7
  %v2667 = vsub.s32 %v2664, %v2666
  %v2668 = vrot.slane %v2643, %v2667
  %v2670 = vunpack.c.l.s4 1983009808
  %v2671 = vunpack.c.0.s8 %v2670
  %v2672 = vlaneseq
  %v2673 = vshrl.u32 %v2672, 7
  %v2674 = vsub.s32 %v2671, %v2673
  %v2675 = vrot.slane %v2661, %v2674
  %2676 = vrot.lane.b32.xlu0 %v2653, 106
  %v2677 = vpop.permute.xlu0 %2676
  %2678 = vrot.lane.b32.xlu0 %v2660, 106
  %v2679 = vpop.permute.xlu0 %2678
  %2680 = vrot.lane.b32.xlu0 %v2668, 106
  %v2681 = vpop.permute.xlu0 %2680
  %2682 = vrot.lane.b32.xlu0 %v2675, 106
  %v2683 = vpop.permute.xlu0 %2682
  %v2684 = vrot.slane %v2677, 4
  %v2685 = vrot.slane %v2679, 4
  %v2686 = vrot.slane %v2681, 4
  %v2687 = vrot.slane %v2683, 4
  %v2688 = vsel %vm100, %v2684, %v2685
  %v2689 = vsel %vm536, %v2677, %v2688
  %v2690 = vsel %vm100, %v2685, %v2686
  %v2691 = vsel %vm536, %v2679, %v2690
  %v2692 = vsel %vm100, %v2686, %v2687
  %v2693 = vsel %vm536, %v2681, %v2692
  %v2694 = vsel %vm536, %v2683, %v2687
  %2699 = vst [vmem:[#allocation2 + $0x70] sm:$0x33] %v2689
  %2700 = vst [vmem:[#allocation2 + $0x78] sm:$0x33] %v2691
  %2701 = vst [vmem:[#allocation2 + $0x80] sm:$0x33] %v2693
  %2702 = vst [vmem:[#allocation2 + $0x88] sm:$0x3] %v2694
  %v2703 = vld [vmem:[%s2172] sm:$0xff]
  %v2704 = vld [vmem:[%s2172 + $0x8] sm:$0xff]
  %v2707 = vcombine.low %v2703, %v2703
  %v2709 = vunpack.c.l.s4 1983009808
  %v2710 = vunpack.c.0.s8 %v2709
  %v2711 = vlaneseq
  %v2712 = vshrl.u32 %v2711, 7
  %v2713 = vsub.s32 %v2710, %v2712
  %v2714 = vrot.slane %v2707, %v2713
  %v2716 = vunpack.c.l.s4 1983009808
  %v2717 = vunpack.c.0.s8 %v2716
  %v2718 = vlaneseq
  %v2719 = vshrl.u32 %v2718, 7
  %v2720 = vsub.s32 %v2717, %v2719
  %v2721 = vrot.slane %v2703, %v2720
  %v2722 = vcombine.low %v2704, %v2704
  %v2724 = vunpack.c.l.s4 1983009808
  %v2725 = vunpack.c.0.s8 %v2724
  %v2726 = vlaneseq
  %v2727 = vshrl.u32 %v2726, 7
  %v2728 = vsub.s32 %v2725, %v2727
  %v2729 = vrot.slane %v2722, %v2728
  %v2731 = vunpack.c.l.s4 1983009808
  %v2732 = vunpack.c.0.s8 %v2731
  %v2733 = vlaneseq
  %v2734 = vshrl.u32 %v2733, 7
  %v2735 = vsub.s32 %v2732, %v2734
  %v2736 = vrot.slane %v2704, %v2735
  %2737 = vrot.lane.b32.xlu0 %v2714, 28
  %v2738 = vpop.permute.xlu0 %2737
  %2739 = vrot.lane.b32.xlu0 %v2721, 28
  %v2740 = vpop.permute.xlu0 %2739
  %2741 = vrot.lane.b32.xlu0 %v2729, 28
  %v2742 = vpop.permute.xlu0 %2741
  %2743 = vrot.lane.b32.xlu0 %v2736, 28
  %v2744 = vpop.permute.xlu0 %2743
  %v2745 = vrot.slane %v2738, 4
  %v2746 = vrot.slane %v2740, 4
  %v2747 = vrot.slane %v2742, 4
  %v2748 = vrot.slane %v2744, 4
  %v2749 = vsel %vm100, %v2745, %v2746
  %v2750 = vsel %vm598, %v2738, %v2749
  %v2751 = vsel %vm100, %v2746, %v2747
  %v2752 = vsel %vm598, %v2740, %v2751
  %v2753 = vsel %vm100, %v2747, %v2748
  %v2754 = vsel %vm598, %v2742, %v2753
  %v2755 = vsel %vm598, %v2744, %v2748
  %2760 = vst [vmem:[#allocation2 + $0x70] sm:$0xcc] %v2750
  %2761 = vst [vmem:[#allocation2 + $0x78] sm:$0xcc] %v2752
  %2762 = vst [vmem:[#allocation2 + $0x80] sm:$0xcc] %v2754
  %2763 = vst [vmem:[#allocation2 + $0x88] sm:$0xc] %v2755
  %v2764 = vld [vmem:[%s2172] sm:$0xff]
  %v2765 = vld [vmem:[%s2172 + $0x8] sm:$0xff]
  %v2768 = vcombine.high %v2764, %v2764
  %v2770 = vunpack.c.l.s4 1983009808
  %v2771 = vunpack.c.0.s8 %v2770
  %v2772 = vlaneseq
  %v2773 = vshrl.u32 %v2772, 7
  %v2774 = vsub.s32 %v2771, %v2773
  %v2775 = vrot.slane %v2764, %v2774
  %v2777 = vunpack.c.l.s4 1983009808
  %v2778 = vunpack.c.0.s8 %v2777
  %v2779 = vlaneseq
  %v2780 = vshrl.u32 %v2779, 7
  %v2781 = vsub.s32 %v2778, %v2780
  %v2782 = vrot.slane %v2768, %v2781
  %v2783 = vcombine.high %v2765, %v2765
  %v2785 = vunpack.c.l.s4 1983009808
  %v2786 = vunpack.c.0.s8 %v2785
  %v2787 = vlaneseq
  %v2788 = vshrl.u32 %v2787, 7
  %v2789 = vsub.s32 %v2786, %v2788
  %v2790 = vrot.slane %v2765, %v2789
  %v2792 = vunpack.c.l.s4 1983009808
  %v2793 = vunpack.c.0.s8 %v2792
  %v2794 = vlaneseq
  %v2795 = vshrl.u32 %v2794, 7
  %v2796 = vsub.s32 %v2793, %v2795
  %v2797 = vrot.slane %v2783, %v2796
  %2798 = vrot.lane.b32.xlu0 %v2775, 27
  %v2799 = vpop.permute.xlu0 %2798
  %2800 = vrot.lane.b32.xlu0 %v2782, 27
  %v2801 = vpop.permute.xlu0 %2800
  %2802 = vrot.lane.b32.xlu0 %v2790, 27
  %v2803 = vpop.permute.xlu0 %2802
  %2804 = vrot.lane.b32.xlu0 %v2797, 27
  %v2805 = vpop.permute.xlu0 %2804
  %v2806 = vrot.slane %v2799, 4
  %v2807 = vrot.slane %v2801, 4
  %v2808 = vrot.slane %v2803, 4
  %v2809 = vrot.slane %v2805, 4
  %v2810 = vsel %vm100, %v2806, %v2807
  %v2811 = vsel %vm660, %v2799, %v2810
  %v2812 = vsel %vm100, %v2807, %v2808
  %v2813 = vsel %vm660, %v2801, %v2812
  %v2814 = vsel %vm100, %v2808, %v2809
  %v2815 = vsel %vm660, %v2803, %v2814
  %v2816 = vsel %vm660, %v2805, %v2809
  %2821 = vst [vmem:[#allocation2 + $0x8c] sm:$0x33] %v2811
  %2822 = vst [vmem:[#allocation2 + $0x94] sm:$0x33] %v2813
  %2823 = vst [vmem:[#allocation2 + $0x9c] sm:$0x33] %v2815
  %2824 = vst [vmem:[#allocation2 + $0xa4] sm:$0x3] %v2816
  %v2825 = vld [vmem:[%s2172] sm:$0xff]
  %v2826 = vld [vmem:[%s2172 + $0x8] sm:$0xff]
  %v2829 = vcombine.low %v2825, %v2825
  %v2831 = vunpack.c.l.s4 1983009808
  %v2832 = vunpack.c.0.s8 %v2831
  %v2833 = vlaneseq
  %v2834 = vshrl.u32 %v2833, 7
  %v2835 = vsub.s32 %v2832, %v2834
  %v2836 = vrot.slane %v2829, %v2835
  %v2838 = vunpack.c.l.s4 1983009808
  %v2839 = vunpack.c.0.s8 %v2838
  %v2840 = vlaneseq
  %v2841 = vshrl.u32 %v2840, 7
  %v2842 = vsub.s32 %v2839, %v2841
  %v2843 = vrot.slane %v2825, %v2842
  %v2844 = vcombine.low %v2826, %v2826
  %v2846 = vunpack.c.l.s4 1983009808
  %v2847 = vunpack.c.0.s8 %v2846
  %v2848 = vlaneseq
  %v2849 = vshrl.u32 %v2848, 7
  %v2850 = vsub.s32 %v2847, %v2849
  %v2851 = vrot.slane %v2844, %v2850
  %v2853 = vunpack.c.l.s4 1983009808
  %v2854 = vunpack.c.0.s8 %v2853
  %v2855 = vlaneseq
  %v2856 = vshrl.u32 %v2855, 7
  %v2857 = vsub.s32 %v2854, %v2856
  %v2858 = vrot.slane %v2826, %v2857
  %2859 = vrot.lane.b32.xlu0 %v2836, 26
  %v2860 = vpop.permute.xlu0 %2859
  %2861 = vrot.lane.b32.xlu0 %v2843, 26
  %v2862 = vpop.permute.xlu0 %2861
  %2863 = vrot.lane.b32.xlu0 %v2851, 26
  %v2864 = vpop.permute.xlu0 %2863
  %2865 = vrot.lane.b32.xlu0 %v2858, 26
  %v2866 = vpop.permute.xlu0 %2865
  %v2867 = vrot.slane %v2860, 4
  %v2868 = vrot.slane %v2862, 4
  %v2869 = vrot.slane %v2864, 4
  %v2870 = vrot.slane %v2866, 4
  %v2871 = vsel %vm100, %v2867, %v2868
  %v2872 = vsel %vm722, %v2860, %v2871
  %v2873 = vsel %vm100, %v2868, %v2869
  %v2874 = vsel %vm722, %v2862, %v2873
  %v2875 = vsel %vm100, %v2869, %v2870
  %v2876 = vsel %vm722, %v2864, %v2875
  %v2877 = vsel %vm722, %v2866, %v2870
  %2882 = vst [vmem:[#allocation2 + $0x8c] sm:$0xcc] %v2872
  %2883 = vst [vmem:[#allocation2 + $0x94] sm:$0xcc] %v2874
  %2884 = vst [vmem:[#allocation2 + $0x9c] sm:$0xcc] %v2876
  %2885 = vst [vmem:[#allocation2 + $0xa4] sm:$0xc] %v2877
  %v2886 = vld [vmem:[%s2172] sm:$0xff]
  %v2887 = vld [vmem:[%s2172 + $0x8] sm:$0xff]
  %v2890 = vcombine.high %v2886, %v2886
  %v2892 = vunpack.c.l.s4 1983009808
  %v2893 = vunpack.c.0.s8 %v2892
  %v2894 = vlaneseq
  %v2895 = vshrl.u32 %v2894, 7
  %v2896 = vsub.s32 %v2893, %v2895
  %v2897 = vrot.slane %v2886, %v2896
  %v2899 = vunpack.c.l.s4 1983009808
  %v2900 = vunpack.c.0.s8 %v2899
  %v2901 = vlaneseq
  %v2902 = vshrl.u32 %v2901, 7
  %v2903 = vsub.s32 %v2900, %v2902
  %v2904 = vrot.slane %v2890, %v2903
  %v2905 = vcombine.high %v2887, %v2887
  %v2907 = vunpack.c.l.s4 1983009808
  %v2908 = vunpack.c.0.s8 %v2907
  %v2909 = vlaneseq
  %v2910 = vshrl.u32 %v2909, 7
  %v2911 = vsub.s32 %v2908, %v2910
  %v2912 = vrot.slane %v2887, %v2911
  %v2914 = vunpack.c.l.s4 1983009808
  %v2915 = vunpack.c.0.s8 %v2914
  %v2916 = vlaneseq
  %v2917 = vshrl.u32 %v2916, 7
  %v2918 = vsub.s32 %v2915, %v2917
  %v2919 = vrot.slane %v2905, %v2918
  %2920 = vrot.lane.b32.xlu0 %v2897, 18
  %v2921 = vpop.permute.xlu0 %2920
  %2922 = vrot.lane.b32.xlu0 %v2904, 18
  %v2923 = vpop.permute.xlu0 %2922
  %2924 = vrot.lane.b32.xlu0 %v2912, 18
  %v2925 = vpop.permute.xlu0 %2924
  %2926 = vrot.lane.b32.xlu0 %v2919, 18
  %v2927 = vpop.permute.xlu0 %2926
  %v2928 = vrot.slane %v2921, 4
  %v2929 = vrot.slane %v2923, 4
  %v2930 = vrot.slane %v2925, 4
  %v2931 = vrot.slane %v2927, 4
  %v2932 = vsel %vm100, %v2928, %v2929
  %v2933 = vsel %vm784, %v2921, %v2932
  %v2934 = vsel %vm100, %v2929, %v2930
  %v2935 = vsel %vm784, %v2923, %v2934
  %v2936 = vsel %vm100, %v2930, %v2931
  %v2937 = vsel %vm784, %v2925, %v2936
  %v2938 = vsel %vm784, %v2927, %v2931
  %2943 = vst [vmem:[#allocation2 + $0xa8] sm:$0x33] %v2933
  %2944 = vst [vmem:[#allocation2 + $0xb0] sm:$0x33] %v2935
  %2945 = vst [vmem:[#allocation2 + $0xb8] sm:$0x33] %v2937
  %2946 = vst [vmem:[#allocation2 + $0xc0] sm:$0x3] %v2938
  %v2947 = vld [vmem:[%s2172] sm:$0xff]
  %v2948 = vld [vmem:[%s2172 + $0x8] sm:$0xff]
  %v2951 = vcombine.low %v2947, %v2947
  %v2953 = vunpack.c.l.s4 1983009808
  %v2954 = vunpack.c.0.s8 %v2953
  %v2955 = vlaneseq
  %v2956 = vshrl.u32 %v2955, 7
  %v2957 = vsub.s32 %v2954, %v2956
  %v2958 = vrot.slane %v2951, %v2957
  %v2960 = vunpack.c.l.s4 1983009808
  %v2961 = vunpack.c.0.s8 %v2960
  %v2962 = vlaneseq
  %v2963 = vshrl.u32 %v2962, 7
  %v2964 = vsub.s32 %v2961, %v2963
  %v2965 = vrot.slane %v2947, %v2964
  %v2966 = vcombine.low %v2948, %v2948
  %v2968 = vunpack.c.l.s4 1983009808
  %v2969 = vunpack.c.0.s8 %v2968
  %v2970 = vlaneseq
  %v2971 = vshrl.u32 %v2970, 7
  %v2972 = vsub.s32 %v2969, %v2971
  %v2973 = vrot.slane %v2966, %v2972
  %v2975 = vunpack.c.l.s4 1983009808
  %v2976 = vunpack.c.0.s8 %v2975
  %v2977 = vlaneseq
  %v2978 = vshrl.u32 %v2977, 7
  %v2979 = vsub.s32 %v2976, %v2978
  %v2980 = vrot.slane %v2948, %v2979
  %2981 = vrot.lane.b32.xlu0 %v2958, 17
  %v2982 = vpop.permute.xlu0 %2981
  %2983 = vrot.lane.b32.xlu0 %v2965, 17
  %v2984 = vpop.permute.xlu0 %2983
  %2985 = vrot.lane.b32.xlu0 %v2973, 17
  %v2986 = vpop.permute.xlu0 %2985
  %2987 = vrot.lane.b32.xlu0 %v2980, 17
  %v2988 = vpop.permute.xlu0 %2987
  %v2989 = vrot.slane %v2982, 4
  %v2990 = vrot.slane %v2984, 4
  %v2991 = vrot.slane %v2986, 4
  %v2992 = vrot.slane %v2988, 4
  %v2993 = vsel %vm100, %v2989, %v2990
  %v2994 = vsel %vm846, %v2982, %v2993
  %v2995 = vsel %vm100, %v2990, %v2991
  %v2996 = vsel %vm846, %v2984, %v2995
  %v2997 = vsel %vm100, %v2991, %v2992
  %v2998 = vsel %vm846, %v2986, %v2997
  %v2999 = vsel %vm846, %v2988, %v2992
  %3004 = vst [vmem:[#allocation2 + $0xa8] sm:$0xcc] %v2994
  %3005 = vst [vmem:[#allocation2 + $0xb0] sm:$0xcc] %v2996
  %3006 = vst [vmem:[#allocation2 + $0xb8] sm:$0xcc] %v2998
  %3007 = vst [vmem:[#allocation2 + $0xc0] sm:$0xc] %v2999
  %v3008 = vld [vmem:[%s2172] sm:$0xff]
  %v3009 = vld [vmem:[%s2172 + $0x8] sm:$0xff]
  %v3012 = vcombine.high %v3008, %v3008
  %v3014 = vunpack.c.l.s4 1983009808
  %v3015 = vunpack.c.0.s8 %v3014
  %v3016 = vlaneseq
  %v3017 = vshrl.u32 %v3016, 7
  %v3018 = vsub.s32 %v3015, %v3017
  %v3019 = vrot.slane %v3008, %v3018
  %v3021 = vunpack.c.l.s4 1983009808
  %v3022 = vunpack.c.0.s8 %v3021
  %v3023 = vlaneseq
  %v3024 = vshrl.u32 %v3023, 7
  %v3025 = vsub.s32 %v3022, %v3024
  %v3026 = vrot.slane %v3012, %v3025
  %v3027 = vcombine.high %v3009, %v3009
  %v3029 = vunpack.c.l.s4 1983009808
  %v3030 = vunpack.c.0.s8 %v3029
  %v3031 = vlaneseq
  %v3032 = vshrl.u32 %v3031, 7
  %v3033 = vsub.s32 %v3030, %v3032
  %v3034 = vrot.slane %v3009, %v3033
  %v3036 = vunpack.c.l.s4 1983009808
  %v3037 = vunpack.c.0.s8 %v3036
  %v3038 = vlaneseq
  %v3039 = vshrl.u32 %v3038, 7
  %v3040 = vsub.s32 %v3037, %v3039
  %v3041 = vrot.slane %v3027, %v3040
  %3042 = vrot.lane.b32.xlu0 %v3019, 16
  %v3043 = vpop.permute.xlu0 %3042
  %3044 = vrot.lane.b32.xlu0 %v3026, 16
  %v3045 = vpop.permute.xlu0 %3044
  %3046 = vrot.lane.b32.xlu0 %v3034, 16
  %v3047 = vpop.permute.xlu0 %3046
  %3048 = vrot.lane.b32.xlu0 %v3041, 16
  %v3049 = vpop.permute.xlu0 %3048
  %v3050 = vrot.slane %v3043, 4
  %v3051 = vrot.slane %v3045, 4
  %v3052 = vrot.slane %v3047, 4
  %v3053 = vrot.slane %v3049, 4
  %v3054 = vsel %vm100, %v3050, %v3051
  %v3055 = vsel %vm908, %v3043, %v3054
  %v3056 = vsel %vm100, %v3051, %v3052
  %v3057 = vsel %vm908, %v3045, %v3056
  %v3058 = vsel %vm100, %v3052, %v3053
  %v3059 = vsel %vm908, %v3047, %v3058
  %v3060 = vsel %vm908, %v3049, %v3053
  %3065 = vst [vmem:[#allocation2 + $0xc4] sm:$0x33] %v3055
  %3066 = vst [vmem:[#allocation2 + $0xcc] sm:$0x33] %v3057
  %3067 = vst [vmem:[#allocation2 + $0xd4] sm:$0x33] %v3059
  %3068 = vst [vmem:[#allocation2 + $0xdc] sm:$0x3] %v3060
  %v3069 = vld [vmem:[%s2172] sm:$0xff]
  %v3070 = vld [vmem:[%s2172 + $0x8] sm:$0xff]
  %v3073 = vcombine.low %v3069, %v3069
  %v3075 = vunpack.c.l.s4 1983009808
  %v3076 = vunpack.c.0.s8 %v3075
  %v3077 = vlaneseq
  %v3078 = vshrl.u32 %v3077, 7
  %v3079 = vsub.s32 %v3076, %v3078
  %v3080 = vrot.slane %v3073, %v3079
  %v3082 = vunpack.c.l.s4 1983009808
  %v3083 = vunpack.c.0.s8 %v3082
  %v3084 = vlaneseq
  %v3085 = vshrl.u32 %v3084, 7
  %v3086 = vsub.s32 %v3083, %v3085
  %v3087 = vrot.slane %v3069, %v3086
  %v3088 = vcombine.low %v3070, %v3070
  %v3090 = vunpack.c.l.s4 1983009808
  %v3091 = vunpack.c.0.s8 %v3090
  %v3092 = vlaneseq
  %v3093 = vshrl.u32 %v3092, 7
  %v3094 = vsub.s32 %v3091, %v3093
  %v3095 = vrot.slane %v3088, %v3094
  %v3097 = vunpack.c.l.s4 1983009808
  %v3098 = vunpack.c.0.s8 %v3097
  %v3099 = vlaneseq
  %v3100 = vshrl.u32 %v3099, 7
  %v3101 = vsub.s32 %v3098, %v3100
  %v3102 = vrot.slane %v3070, %v3101
  %3103 = vrot.lane.b32.xlu0 %v3080, 8
  %v3104 = vpop.permute.xlu0 %3103
  %3105 = vrot.lane.b32.xlu0 %v3087, 8
  %v3106 = vpop.permute.xlu0 %3105
  %3107 = vrot.lane.b32.xlu0 %v3095, 8
  %v3108 = vpop.permute.xlu0 %3107
  %3109 = vrot.lane.b32.xlu0 %v3102, 8
  %v3110 = vpop.permute.xlu0 %3109
  %v3111 = vrot.slane %v3104, 4
  %v3112 = vrot.slane %v3106, 4
  %v3113 = vrot.slane %v3108, 4
  %v3114 = vrot.slane %v3110, 4
  %v3115 = vsel %vm100, %v3111, %v3112
  %v3116 = vsel %vm970, %v3104, %v3115
  %v3117 = vsel %vm100, %v3112, %v3113
  %v3118 = vsel %vm970, %v3106, %v3117
  %v3119 = vsel %vm100, %v3113, %v3114
  %v3120 = vsel %vm970, %v3108, %v3119
  %v3121 = vsel %vm970, %v3110, %v3114
  %3126 = vst [vmem:[#allocation2 + $0xc4] sm:$0xcc] %v3116
  %3127 = vst [vmem:[#allocation2 + $0xcc] sm:$0xcc] %v3118
  %3128 = vst [vmem:[#allocation2 + $0xd4] sm:$0xcc] %v3120
  %3129 = vst [vmem:[#allocation2 + $0xdc] sm:$0xc] %v3121
  %v3130 = vld [vmem:[%s2172] sm:$0xff]
  %v3131 = vld [vmem:[%s2172 + $0x8] sm:$0xff]
  %v3134 = vcombine.high %v3130, %v3130
  %v3136 = vunpack.c.l.s4 1983009808
  %v3137 = vunpack.c.0.s8 %v3136
  %v3138 = vlaneseq
  %v3139 = vshrl.u32 %v3138, 7
  %v3140 = vsub.s32 %v3137, %v3139
  %v3141 = vrot.slane %v3130, %v3140
  %v3143 = vunpack.c.l.s4 1983009808
  %v3144 = vunpack.c.0.s8 %v3143
  %v3145 = vlaneseq
  %v3146 = vshrl.u32 %v3145, 7
  %v3147 = vsub.s32 %v3144, %v3146
  %v3148 = vrot.slane %v3134, %v3147
  %v3149 = vcombine.high %v3131, %v3131
  %v3151 = vunpack.c.l.s4 1983009808
  %v3152 = vunpack.c.0.s8 %v3151
  %v3153 = vlaneseq
  %v3154 = vshrl.u32 %v3153, 7
  %v3155 = vsub.s32 %v3152, %v3154
  %v3156 = vrot.slane %v3131, %v3155
  %v3158 = vunpack.c.l.s4 1983009808
  %v3159 = vunpack.c.0.s8 %v3158
  %v3160 = vlaneseq
  %v3161 = vshrl.u32 %v3160, 7
  %v3162 = vsub.s32 %v3159, %v3161
  %v3163 = vrot.slane %v3149, %v3162
  %3164 = vrot.lane.b32.xlu0 %v3141, 7
  %v3165 = vpop.permute.xlu0 %3164
  %3166 = vrot.lane.b32.xlu0 %v3148, 7
  %v3167 = vpop.permute.xlu0 %3166
  %3168 = vrot.lane.b32.xlu0 %v3156, 7
  %v3169 = vpop.permute.xlu0 %3168
  %3170 = vrot.lane.b32.xlu0 %v3163, 7
  %v3171 = vpop.permute.xlu0 %3170
  %v3172 = vrot.slane %v3165, 4
  %v3173 = vrot.slane %v3167, 4
  %v3174 = vrot.slane %v3169, 4
  %v3175 = vrot.slane %v3171, 4
  %v3176 = vsel %vm100, %v3172, %v3173
  %v3177 = vsel %vm1032, %v3165, %v3176
  %v3178 = vsel %vm100, %v3173, %v3174
  %v3179 = vsel %vm1032, %v3167, %v3178
  %v3180 = vsel %vm100, %v3174, %v3175
  %v3181 = vsel %vm1032, %v3169, %v3180
  %v3182 = vsel %vm1032, %v3171, %v3175
  %3187 = vst [vmem:[#allocation2 + $0xe0] sm:$0x33] %v3177
  %3188 = vst [vmem:[#allocation2 + $0xe8] sm:$0x33] %v3179
  %3189 = vst [vmem:[#allocation2 + $0xf0] sm:$0x33] %v3181
  %3190 = vst [vmem:[#allocation2 + $0xf8] sm:$0x3] %v3182
  %v3191 = vld [vmem:[%s2172] sm:$0xff]
  %v3192 = vld [vmem:[%s2172 + $0x8] sm:$0xff]
  %v3195 = vcombine.low %v3191, %v3191
  %v3197 = vunpack.c.l.s4 1983009808
  %v3198 = vunpack.c.0.s8 %v3197
  %v3199 = vlaneseq
  %v3200 = vshrl.u32 %v3199, 7
  %v3201 = vsub.s32 %v3198, %v3200
  %v3202 = vrot.slane %v3195, %v3201
  %v3204 = vunpack.c.l.s4 1983009808
  %v3205 = vunpack.c.0.s8 %v3204
  %v3206 = vlaneseq
  %v3207 = vshrl.u32 %v3206, 7
  %v3208 = vsub.s32 %v3205, %v3207
  %v3209 = vrot.slane %v3191, %v3208
  %v3210 = vcombine.low %v3192, %v3192
  %v3212 = vunpack.c.l.s4 1983009808
  %v3213 = vunpack.c.0.s8 %v3212
  %v3214 = vlaneseq
  %v3215 = vshrl.u32 %v3214, 7
  %v3216 = vsub.s32 %v3213, %v3215
  %v3217 = vrot.slane %v3210, %v3216
  %v3219 = vunpack.c.l.s4 1983009808
  %v3220 = vunpack.c.0.s8 %v3219
  %v3221 = vlaneseq
  %v3222 = vshrl.u32 %v3221, 7
  %v3223 = vsub.s32 %v3220, %v3222
  %v3224 = vrot.slane %v3192, %v3223
  %3225 = vrot.lane.b32.xlu0 %v3202, 6
  %v3226 = vpop.permute.xlu0 %3225
  %3227 = vrot.lane.b32.xlu0 %v3209, 6
  %v3228 = vpop.permute.xlu0 %3227
  %3229 = vrot.lane.b32.xlu0 %v3217, 6
  %v3230 = vpop.permute.xlu0 %3229
  %3231 = vrot.lane.b32.xlu0 %v3224, 6
  %v3232 = vpop.permute.xlu0 %3231
  %v3233 = vrot.slane %v3226, 4
  %v3234 = vrot.slane %v3228, 4
  %v3235 = vrot.slane %v3230, 4
  %v3236 = vrot.slane %v3232, 4
  %v3237 = vsel %vm100, %v3233, %v3234
  %v3238 = vsel %vm1094, %v3226, %v3237
  %v3239 = vsel %vm100, %v3234, %v3235
  %v3240 = vsel %vm1094, %v3228, %v3239
  %v3241 = vsel %vm100, %v3235, %v3236
  %v3242 = vsel %vm1094, %v3230, %v3241
  %v3243 = vsel %vm1094, %v3232, %v3236
  %3248 = vst [vmem:[#allocation2 + $0xe0] sm:$0xcc] %v3238
  %3249 = vst [vmem:[#allocation2 + $0xe8] sm:$0xcc] %v3240
  %3250 = vst [vmem:[#allocation2 + $0xf0] sm:$0xcc] %v3242
  %3251 = vst [vmem:[#allocation2 + $0xf8] sm:$0xc] %v3243
  %v3252 = vld [vmem:[%s2172 + $0x2] sm:$0xff]
  %v3253 = vld [vmem:[%s2172 + $0xa] sm:$0xff]
  %v3256 = vcombine.high %v3252, %v3252
  %v3258 = vunpack.c.l.s4 1983009808
  %v3259 = vunpack.c.0.s8 %v3258
  %v3260 = vlaneseq
  %v3261 = vshrl.u32 %v3260, 7
  %v3262 = vsub.s32 %v3259, %v3261
  %v3263 = vrot.slane %v3252, %v3262
  %v3265 = vunpack.c.l.s4 1983009808
  %v3266 = vunpack.c.0.s8 %v3265
  %v3267 = vlaneseq
  %v3268 = vshrl.u32 %v3267, 7
  %v3269 = vsub.s32 %v3266, %v3268
  %v3270 = vrot.slane %v3256, %v3269
  %v3271 = vcombine.high %v3253, %v3253
  %v3273 = vunpack.c.l.s4 1983009808
  %v3274 = vunpack.c.0.s8 %v3273
  %v3275 = vlaneseq
  %v3276 = vshrl.u32 %v3275, 7
  %v3277 = vsub.s32 %v3274, %v3276
  %v3278 = vrot.slane %v3253, %v3277
  %v3280 = vunpack.c.l.s4 1983009808
  %v3281 = vunpack.c.0.s8 %v3280
  %v3282 = vlaneseq
  %v3283 = vshrl.u32 %v3282, 7
  %v3284 = vsub.s32 %v3281, %v3283
  %v3285 = vrot.slane %v3271, %v3284
  %3286 = vrot.lane.b32.xlu0 %v3263, 56
  %v3287 = vpop.permute.xlu0 %3286
  %3288 = vrot.lane.b32.xlu0 %v3270, 56
  %v3289 = vpop.permute.xlu0 %3288
  %3290 = vrot.lane.b32.xlu0 %v3278, 56
  %v3291 = vpop.permute.xlu0 %3290
  %3292 = vrot.lane.b32.xlu0 %v3285, 56
  %v3293 = vpop.permute.xlu0 %3292
  %v3294 = vrot.slane %v3287, 4
  %v3295 = vrot.slane %v3289, 4
  %v3296 = vrot.slane %v3291, 4
  %v3297 = vrot.slane %v3293, 4
  %v3298 = vsel %vm100, %v3294, %v3295
  %v3299 = vsel %vm1156, %v3287, %v3298
  %v3300 = vsel %vm100, %v3295, %v3296
  %v3301 = vsel %vm1156, %v3289, %v3300
  %v3302 = vsel %vm100, %v3296, %v3297
  %v3303 = vsel %vm1156, %v3291, %v3302
  %v3304 = vsel %vm1156, %v3293, %v3297
  %3309 = vst [vmem:[#allocation2 + $0xfc] sm:$0x33] %v3299
  %3310 = vst [vmem:[#allocation2 + $0x104] sm:$0x33] %v3301
  %3311 = vst [vmem:[#allocation2 + $0x10c] sm:$0x33] %v3303
  %3312 = vst [vmem:[#allocation2 + $0x114] sm:$0x3] %v3304
  %v3313 = vld [vmem:[%s2172 + $0x2] sm:$0xff]
  %v3314 = vld [vmem:[%s2172 + $0xa] sm:$0xff]
  %v3317 = vcombine.low %v3313, %v3313
  %v3319 = vunpack.c.l.s4 1983009808
  %v3320 = vunpack.c.0.s8 %v3319
  %v3321 = vlaneseq
  %v3322 = vshrl.u32 %v3321, 7
  %v3323 = vsub.s32 %v3320, %v3322
  %v3324 = vrot.slane %v3317, %v3323
  %v3326 = vunpack.c.l.s4 1983009808
  %v3327 = vunpack.c.0.s8 %v3326
  %v3328 = vlaneseq
  %v3329 = vshrl.u32 %v3328, 7
  %v3330 = vsub.s32 %v3327, %v3329
  %v3331 = vrot.slane %v3313, %v3330
  %v3332 = vcombine.low %v3314, %v3314
  %v3334 = vunpack.c.l.s4 1983009808
  %v3335 = vunpack.c.0.s8 %v3334
  %v3336 = vlaneseq
  %v3337 = vshrl.u32 %v3336, 7
  %v3338 = vsub.s32 %v3335, %v3337
  %v3339 = vrot.slane %v3332, %v3338
  %v3341 = vunpack.c.l.s4 1983009808
  %v3342 = vunpack.c.0.s8 %v3341
  %v3343 = vlaneseq
  %v3344 = vshrl.u32 %v3343, 7
  %v3345 = vsub.s32 %v3342, %v3344
  %v3346 = vrot.slane %v3314, %v3345
  %3347 = vrot.lane.b32.xlu0 %v3324, 55
  %v3348 = vpop.permute.xlu0 %3347
  %3349 = vrot.lane.b32.xlu0 %v3331, 55
  %v3350 = vpop.permute.xlu0 %3349
  %3351 = vrot.lane.b32.xlu0 %v3339, 55
  %v3352 = vpop.permute.xlu0 %3351
  %3353 = vrot.lane.b32.xlu0 %v3346, 55
  %v3354 = vpop.permute.xlu0 %3353
  %v3355 = vrot.slane %v3348, 4
  %v3356 = vrot.slane %v3350, 4
  %v3357 = vrot.slane %v3352, 4
  %v3358 = vrot.slane %v3354, 4
  %v3359 = vsel %vm100, %v3355, %v3356
  %v3360 = vsel %vm1218, %v3348, %v3359
  %v3361 = vsel %vm100, %v3356, %v3357
  %v3362 = vsel %vm1218, %v3350, %v3361
  %v3363 = vsel %vm100, %v3357, %v3358
  %v3364 = vsel %vm1218, %v3352, %v3363
  %v3365 = vsel %vm1218, %v3354, %v3358
  %3370 = vst [vmem:[#allocation2 + $0xfc] sm:$0xcc] %v3360
  %3371 = vst [vmem:[#allocation2 + $0x104] sm:$0xcc] %v3362
  %3372 = vst [vmem:[#allocation2 + $0x10c] sm:$0xcc] %v3364
  %3373 = vst [vmem:[#allocation2 + $0x114] sm:$0xc] %v3365
  %v3374 = vld [vmem:[%s2172 + $0x2] sm:$0xff]
  %v3375 = vld [vmem:[%s2172 + $0xa] sm:$0xff]
  %v3378 = vcombine.high %v3374, %v3374
  %v3380 = vunpack.c.l.s4 1983009808
  %v3381 = vunpack.c.0.s8 %v3380
  %v3382 = vlaneseq
  %v3383 = vshrl.u32 %v3382, 7
  %v3384 = vsub.s32 %v3381, %v3383
  %v3385 = vrot.slane %v3374, %v3384
  %v3387 = vunpack.c.l.s4 1983009808
  %v3388 = vunpack.c.0.s8 %v3387
  %v3389 = vlaneseq
  %v3390 = vshrl.u32 %v3389, 7
  %v3391 = vsub.s32 %v3388, %v3390
  %v3392 = vrot.slane %v3378, %v3391
  %v3393 = vcombine.high %v3375, %v3375
  %v3395 = vunpack.c.l.s4 1983009808
  %v3396 = vunpack.c.0.s8 %v3395
  %v3397 = vlaneseq
  %v3398 = vshrl.u32 %v3397, 7
  %v3399 = vsub.s32 %v3396, %v3398
  %v3400 = vrot.slane %v3375, %v3399
  %v3402 = vunpack.c.l.s4 1983009808
  %v3403 = vunpack.c.0.s8 %v3402
  %v3404 = vlaneseq
  %v3405 = vshrl.u32 %v3404, 7
  %v3406 = vsub.s32 %v3403, %v3405
  %v3407 = vrot.slane %v3393, %v3406
  %3408 = vrot.lane.b32.xlu0 %v3385, 54
  %v3409 = vpop.permute.xlu0 %3408
  %3410 = vrot.lane.b32.xlu0 %v3392, 54
  %v3411 = vpop.permute.xlu0 %3410
  %3412 = vrot.lane.b32.xlu0 %v3400, 54
  %v3413 = vpop.permute.xlu0 %3412
  %3414 = vrot.lane.b32.xlu0 %v3407, 54
  %v3415 = vpop.permute.xlu0 %3414
  %v3416 = vrot.slane %v3409, 4
  %v3417 = vrot.slane %v3411, 4
  %v3418 = vrot.slane %v3413, 4
  %v3419 = vrot.slane %v3415, 4
  %v3420 = vsel %vm100, %v3416, %v3417
  %v3421 = vsel %vm1280, %v3409, %v3420
  %v3422 = vsel %vm100, %v3417, %v3418
  %v3423 = vsel %vm1280, %v3411, %v3422
  %v3424 = vsel %vm100, %v3418, %v3419
  %v3425 = vsel %vm1280, %v3413, %v3424
  %v3426 = vsel %vm1280, %v3415, %v3419
  %3431 = vst [vmem:[#allocation2 + $0x118] sm:$0x33] %v3421
  %3432 = vst [vmem:[#allocation2 + $0x120] sm:$0x33] %v3423
  %3433 = vst [vmem:[#allocation2 + $0x128] sm:$0x33] %v3425
  %3434 = vst [vmem:[#allocation2 + $0x130] sm:$0x3] %v3426
  %v3435 = vld [vmem:[%s2172 + $0x2] sm:$0xff]
  %v3436 = vld [vmem:[%s2172 + $0xa] sm:$0xff]
  %v3439 = vcombine.low %v3435, %v3435
  %v3441 = vunpack.c.l.s4 1983009808
  %v3442 = vunpack.c.0.s8 %v3441
  %v3443 = vlaneseq
  %v3444 = vshrl.u32 %v3443, 7
  %v3445 = vsub.s32 %v3442, %v3444
  %v3446 = vrot.slane %v3439, %v3445
  %v3448 = vunpack.c.l.s4 1983009808
  %v3449 = vunpack.c.0.s8 %v3448
  %v3450 = vlaneseq
  %v3451 = vshrl.u32 %v3450, 7
  %v3452 = vsub.s32 %v3449, %v3451
  %v3453 = vrot.slane %v3435, %v3452
  %v3454 = vcombine.low %v3436, %v3436
  %v3456 = vunpack.c.l.s4 1983009808
  %v3457 = vunpack.c.0.s8 %v3456
  %v3458 = vlaneseq
  %v3459 = vshrl.u32 %v3458, 7
  %v3460 = vsub.s32 %v3457, %v3459
  %v3461 = vrot.slane %v3454, %v3460
  %v3463 = vunpack.c.l.s4 1983009808
  %v3464 = vunpack.c.0.s8 %v3463
  %v3465 = vlaneseq
  %v3466 = vshrl.u32 %v3465, 7
  %v3467 = vsub.s32 %v3464, %v3466
  %v3468 = vrot.slane %v3436, %v3467
  %3469 = vrot.lane.b32.xlu0 %v3446, 46
  %v3470 = vpop.permute.xlu0 %3469
  %3471 = vrot.lane.b32.xlu0 %v3453, 46
  %v3472 = vpop.permute.xlu0 %3471
  %3473 = vrot.lane.b32.xlu0 %v3461, 46
  %v3474 = vpop.permute.xlu0 %3473
  %3475 = vrot.lane.b32.xlu0 %v3468, 46
  %v3476 = vpop.permute.xlu0 %3475
  %v3477 = vrot.slane %v3470, 4
  %v3478 = vrot.slane %v3472, 4
  %v3479 = vrot.slane %v3474, 4
  %v3480 = vrot.slane %v3476, 4
  %v3481 = vsel %vm100, %v3477, %v3478
  %v3482 = vsel %vm1342, %v3470, %v3481
  %v3483 = vsel %vm100, %v3478, %v3479
  %v3484 = vsel %vm1342, %v3472, %v3483
  %v3485 = vsel %vm100, %v3479, %v3480
  %v3486 = vsel %vm1342, %v3474, %v3485
  %v3487 = vsel %vm1342, %v3476, %v3480
  %3492 = vst [vmem:[#allocation2 + $0x118] sm:$0xcc] %v3482
  %3493 = vst [vmem:[#allocation2 + $0x120] sm:$0xcc] %v3484
  %3494 = vst [vmem:[#allocation2 + $0x128] sm:$0xcc] %v3486
  %3495 = vst [vmem:[#allocation2 + $0x130] sm:$0xc] %v3487
  %v3496 = vld [vmem:[%s2172 + $0x2] sm:$0xff]
  %v3497 = vld [vmem:[%s2172 + $0xa] sm:$0xff]
  %v3500 = vcombine.high %v3496, %v3496
  %v3502 = vunpack.c.l.s4 1983009808
  %v3503 = vunpack.c.0.s8 %v3502
  %v3504 = vlaneseq
  %v3505 = vshrl.u32 %v3504, 7
  %v3506 = vsub.s32 %v3503, %v3505
  %v3507 = vrot.slane %v3496, %v3506
  %v3509 = vunpack.c.l.s4 1983009808
  %v3510 = vunpack.c.0.s8 %v3509
  %v3511 = vlaneseq
  %v3512 = vshrl.u32 %v3511, 7
  %v3513 = vsub.s32 %v3510, %v3512
  %v3514 = vrot.slane %v3500, %v3513
  %v3515 = vcombine.high %v3497, %v3497
  %v3517 = vunpack.c.l.s4 1983009808
  %v3518 = vunpack.c.0.s8 %v3517
  %v3519 = vlaneseq
  %v3520 = vshrl.u32 %v3519, 7
  %v3521 = vsub.s32 %v3518, %v3520
  %v3522 = vrot.slane %v3497, %v3521
  %v3524 = vunpack.c.l.s4 1983009808
  %v3525 = vunpack.c.0.s8 %v3524
  %v3526 = vlaneseq
  %v3527 = vshrl.u32 %v3526, 7
  %v3528 = vsub.s32 %v3525, %v3527
  %v3529 = vrot.slane %v3515, %v3528
  %3530 = vrot.lane.b32.xlu0 %v3507, 45
  %v3531 = vpop.permute.xlu0 %3530
  %3532 = vrot.lane.b32.xlu0 %v3514, 45
  %v3533 = vpop.permute.xlu0 %3532
  %3534 = vrot.lane.b32.xlu0 %v3522, 45
  %v3535 = vpop.permute.xlu0 %3534
  %3536 = vrot.lane.b32.xlu0 %v3529, 45
  %v3537 = vpop.permute.xlu0 %3536
  %v3538 = vrot.slane %v3531, 4
  %v3539 = vrot.slane %v3533, 4
  %v3540 = vrot.slane %v3535, 4
  %v3541 = vrot.slane %v3537, 4
  %v3542 = vsel %vm100, %v3538, %v3539
  %v3543 = vsel %vm1404, %v3531, %v3542
  %v3544 = vsel %vm100, %v3539, %v3540
  %v3545 = vsel %vm1404, %v3533, %v3544
  %v3546 = vsel %vm100, %v3540, %v3541
  %v3547 = vsel %vm1404, %v3535, %v3546
  %v3548 = vsel %vm1404, %v3537, %v3541
  %3553 = vst [vmem:[#allocation2 + $0x134] sm:$0x33] %v3543
  %3554 = vst [vmem:[#allocation2 + $0x13c] sm:$0x33] %v3545
  %3555 = vst [vmem:[#allocation2 + $0x144] sm:$0x33] %v3547
  %3556 = vst [vmem:[#allocation2 + $0x14c] sm:$0x3] %v3548
  %v3557 = vld [vmem:[%s2172 + $0x2] sm:$0xff]
  %v3558 = vld [vmem:[%s2172 + $0xa] sm:$0xff]
  %v3561 = vcombine.low %v3557, %v3557
  %v3563 = vunpack.c.l.s4 1983009808
  %v3564 = vunpack.c.0.s8 %v3563
  %v3565 = vlaneseq
  %v3566 = vshrl.u32 %v3565, 7
  %v3567 = vsub.s32 %v3564, %v3566
  %v3568 = vrot.slane %v3561, %v3567
  %v3570 = vunpack.c.l.s4 1983009808
  %v3571 = vunpack.c.0.s8 %v3570
  %v3572 = vlaneseq
  %v3573 = vshrl.u32 %v3572, 7
  %v3574 = vsub.s32 %v3571, %v3573
  %v3575 = vrot.slane %v3557, %v3574
  %v3576 = vcombine.low %v3558, %v3558
  %v3578 = vunpack.c.l.s4 1983009808
  %v3579 = vunpack.c.0.s8 %v3578
  %v3580 = vlaneseq
  %v3581 = vshrl.u32 %v3580, 7
  %v3582 = vsub.s32 %v3579, %v3581
  %v3583 = vrot.slane %v3576, %v3582
  %v3585 = vunpack.c.l.s4 1983009808
  %v3586 = vunpack.c.0.s8 %v3585
  %v3587 = vlaneseq
  %v3588 = vshrl.u32 %v3587, 7
  %v3589 = vsub.s32 %v3586, %v3588
  %v3590 = vrot.slane %v3558, %v3589
  %3591 = vrot.lane.b32.xlu0 %v3568, 44
  %v3592 = vpop.permute.xlu0 %3591
  %3593 = vrot.lane.b32.xlu0 %v3575, 44
  %v3594 = vpop.permute.xlu0 %3593
  %3595 = vrot.lane.b32.xlu0 %v3583, 44
  %v3596 = vpop.permute.xlu0 %3595
  %3597 = vrot.lane.b32.xlu0 %v3590, 44
  %v3598 = vpop.permute.xlu0 %3597
  %v3599 = vrot.slane %v3592, 4
  %v3600 = vrot.slane %v3594, 4
  %v3601 = vrot.slane %v3596, 4
  %v3602 = vrot.slane %v3598, 4
  %v3603 = vsel %vm100, %v3599, %v3600
  %v3604 = vsel %vm1466, %v3592, %v3603
  %v3605 = vsel %vm100, %v3600, %v3601
  %v3606 = vsel %vm1466, %v3594, %v3605
  %v3607 = vsel %vm100, %v3601, %v3602
  %v3608 = vsel %vm1466, %v3596, %v3607
  %v3609 = vsel %vm1466, %v3598, %v3602
  %3614 = vst [vmem:[#allocation2 + $0x134] sm:$0xcc] %v3604
  %3615 = vst [vmem:[#allocation2 + $0x13c] sm:$0xcc] %v3606
  %3616 = vst [vmem:[#allocation2 + $0x144] sm:$0xcc] %v3608
  %3617 = vst [vmem:[#allocation2 + $0x14c] sm:$0xc] %v3609
  %v3618 = vld [vmem:[%s2172 + $0x2] sm:$0xff]
  %v3619 = vld [vmem:[%s2172 + $0xa] sm:$0xff]
  %v3622 = vcombine.high %v3618, %v3618
  %v3624 = vunpack.c.l.s4 1983009808
  %v3625 = vunpack.c.0.s8 %v3624
  %v3626 = vlaneseq
  %v3627 = vshrl.u32 %v3626, 7
  %v3628 = vsub.s32 %v3625, %v3627
  %v3629 = vrot.slane %v3618, %v3628
  %v3631 = vunpack.c.l.s4 1983009808
  %v3632 = vunpack.c.0.s8 %v3631
  %v3633 = vlaneseq
  %v3634 = vshrl.u32 %v3633, 7
  %v3635 = vsub.s32 %v3632, %v3634
  %v3636 = vrot.slane %v3622, %v3635
  %v3637 = vcombine.high %v3619, %v3619
  %v3639 = vunpack.c.l.s4 1983009808
  %v3640 = vunpack.c.0.s8 %v3639
  %v3641 = vlaneseq
  %v3642 = vshrl.u32 %v3641, 7
  %v3643 = vsub.s32 %v3640, %v3642
  %v3644 = vrot.slane %v3619, %v3643
  %v3646 = vunpack.c.l.s4 1983009808
  %v3647 = vunpack.c.0.s8 %v3646
  %v3648 = vlaneseq
  %v3649 = vshrl.u32 %v3648, 7
  %v3650 = vsub.s32 %v3647, %v3649
  %v3651 = vrot.slane %v3637, %v3650
  %3652 = vrot.lane.b32.xlu0 %v3629, 36
  %v3653 = vpop.permute.xlu0 %3652
  %3654 = vrot.lane.b32.xlu0 %v3636, 36
  %v3655 = vpop.permute.xlu0 %3654
  %3656 = vrot.lane.b32.xlu0 %v3644, 36
  %v3657 = vpop.permute.xlu0 %3656
  %3658 = vrot.lane.b32.xlu0 %v3651, 36
  %v3659 = vpop.permute.xlu0 %3658
  %v3660 = vrot.slane %v3653, 4
  %v3661 = vrot.slane %v3655, 4
  %v3662 = vrot.slane %v3657, 4
  %v3663 = vrot.slane %v3659, 4
  %v3664 = vsel %vm100, %v3660, %v3661
  %v3665 = vsel %vm1528, %v3653, %v3664
  %v3666 = vsel %vm100, %v3661, %v3662
  %v3667 = vsel %vm1528, %v3655, %v3666
  %v3668 = vsel %vm100, %v3662, %v3663
  %v3669 = vsel %vm1528, %v3657, %v3668
  %v3670 = vsel %vm1528, %v3659, %v3663
  %3675 = vst [vmem:[#allocation2 + $0x150] sm:$0x33] %v3665
  %3676 = vst [vmem:[#allocation2 + $0x158] sm:$0x33] %v3667
  %3677 = vst [vmem:[#allocation2 + $0x160] sm:$0x33] %v3669
  %3678 = vst [vmem:[#allocation2 + $0x168] sm:$0x3] %v3670
  %v3679 = vld [vmem:[%s2172 + $0x2] sm:$0xff]
  %v3680 = vld [vmem:[%s2172 + $0xa] sm:$0xff]
  %v3683 = vcombine.low %v3679, %v3679
  %v3685 = vunpack.c.l.s4 1983009808
  %v3686 = vunpack.c.0.s8 %v3685
  %v3687 = vlaneseq
  %v3688 = vshrl.u32 %v3687, 7
  %v3689 = vsub.s32 %v3686, %v3688
  %v3690 = vrot.slane %v3683, %v3689
  %v3692 = vunpack.c.l.s4 1983009808
  %v3693 = vunpack.c.0.s8 %v3692
  %v3694 = vlaneseq
  %v3695 = vshrl.u32 %v3694, 7
  %v3696 = vsub.s32 %v3693, %v3695
  %v3697 = vrot.slane %v3679, %v3696
  %v3698 = vcombine.low %v3680, %v3680
  %v3700 = vunpack.c.l.s4 1983009808
  %v3701 = vunpack.c.0.s8 %v3700
  %v3702 = vlaneseq
  %v3703 = vshrl.u32 %v3702, 7
  %v3704 = vsub.s32 %v3701, %v3703
  %v3705 = vrot.slane %v3698, %v3704
  %v3707 = vunpack.c.l.s4 1983009808
  %v3708 = vunpack.c.0.s8 %v3707
  %v3709 = vlaneseq
  %v3710 = vshrl.u32 %v3709, 7
  %v3711 = vsub.s32 %v3708, %v3710
  %v3712 = vrot.slane %v3680, %v3711
  %3713 = vrot.lane.b32.xlu0 %v3690, 35
  %v3714 = vpop.permute.xlu0 %3713
  %3715 = vrot.lane.b32.xlu0 %v3697, 35
  %v3716 = vpop.permute.xlu0 %3715
  %3717 = vrot.lane.b32.xlu0 %v3705, 35
  %v3718 = vpop.permute.xlu0 %3717
  %3719 = vrot.lane.b32.xlu0 %v3712, 35
  %v3720 = vpop.permute.xlu0 %3719
  %v3721 = vrot.slane %v3714, 4
  %v3722 = vrot.slane %v3716, 4
  %v3723 = vrot.slane %v3718, 4
  %v3724 = vrot.slane %v3720, 4
  %v3725 = vsel %vm100, %v3721, %v3722
  %v3726 = vsel %vm1590, %v3714, %v3725
  %v3727 = vsel %vm100, %v3722, %v3723
  %v3728 = vsel %vm1590, %v3716, %v3727
  %v3729 = vsel %vm100, %v3723, %v3724
  %v3730 = vsel %vm1590, %v3718, %v3729
  %v3731 = vsel %vm1590, %v3720, %v3724
  %3736 = vst [vmem:[#allocation2 + $0x150] sm:$0xcc] %v3726
  %3737 = vst [vmem:[#allocation2 + $0x158] sm:$0xcc] %v3728
  %3738 = vst [vmem:[#allocation2 + $0x160] sm:$0xcc] %v3730
  %3739 = vst [vmem:[#allocation2 + $0x168] sm:$0xc] %v3731
  %v3740 = vld [vmem:[%s2172 + $0x2] sm:$0xff]
  %v3741 = vld [vmem:[%s2172 + $0xa] sm:$0xff]
  %v3744 = vcombine.high %v3740, %v3740
  %v3746 = vunpack.c.l.s4 1983009808
  %v3747 = vunpack.c.0.s8 %v3746
  %v3748 = vlaneseq
  %v3749 = vshrl.u32 %v3748, 7
  %v3750 = vsub.s32 %v3747, %v3749
  %v3751 = vrot.slane %v3740, %v3750
  %v3753 = vunpack.c.l.s4 1983009808
  %v3754 = vunpack.c.0.s8 %v3753
  %v3755 = vlaneseq
  %v3756 = vshrl.u32 %v3755, 7
  %v3757 = vsub.s32 %v3754, %v3756
  %v3758 = vrot.slane %v3744, %v3757
  %v3759 = vcombine.high %v3741, %v3741
  %v3761 = vunpack.c.l.s4 1983009808
  %v3762 = vunpack.c.0.s8 %v3761
  %v3763 = vlaneseq
  %v3764 = vshrl.u32 %v3763, 7
  %v3765 = vsub.s32 %v3762, %v3764
  %v3766 = vrot.slane %v3741, %v3765
  %v3768 = vunpack.c.l.s4 1983009808
  %v3769 = vunpack.c.0.s8 %v3768
  %v3770 = vlaneseq
  %v3771 = vshrl.u32 %v3770, 7
  %v3772 = vsub.s32 %v3769, %v3771
  %v3773 = vrot.slane %v3759, %v3772
  %3774 = vrot.lane.b32.xlu0 %v3751, 34
  %v3775 = vpop.permute.xlu0 %3774
  %3776 = vrot.lane.b32.xlu0 %v3758, 34
  %v3777 = vpop.permute.xlu0 %3776
  %3778 = vrot.lane.b32.xlu0 %v3766, 34
  %v3779 = vpop.permute.xlu0 %3778
  %3780 = vrot.lane.b32.xlu0 %v3773, 34
  %v3781 = vpop.permute.xlu0 %3780
  %v3782 = vrot.slane %v3775, 4
  %v3783 = vrot.slane %v3777, 4
  %v3784 = vrot.slane %v3779, 4
  %v3785 = vrot.slane %v3781, 4
  %v3786 = vsel %vm100, %v3782, %v3783
  %v3787 = vsel %vm1652, %v3775, %v3786
  %v3788 = vsel %vm100, %v3783, %v3784
  %v3789 = vsel %vm1652, %v3777, %v3788
  %v3790 = vsel %vm100, %v3784, %v3785
  %v3791 = vsel %vm1652, %v3779, %v3790
  %v3792 = vsel %vm1652, %v3781, %v3785
  %3797 = vst [vmem:[#allocation2 + $0x16c] sm:$0x33] %v3787
  %3798 = vst [vmem:[#allocation2 + $0x174] sm:$0x33] %v3789
  %3799 = vst [vmem:[#allocation2 + $0x17c] sm:$0x33] %v3791
  %3800 = vst [vmem:[#allocation2 + $0x184] sm:$0x3] %v3792
  %v3801 = vld [vmem:[%s1] sm:$0xf]
  %v3802 = vld [vmem:[#allocation2] sm:$0xff]
  %v3803 = vld [vmem:[#allocation2 + $0x8] sm:$0xff]
  %v3804 = vld [vmem:[#allocation2 + $0x10] sm:$0xff]
  %v3805 = vld [vmem:[#allocation2 + $0x18] sm:$0xf]
  %v3806 = vld [vmem:[#allocation2 + $0x1c] sm:$0xff]
  %v3807 = vld [vmem:[#allocation2 + $0x24] sm:$0xff]
  %v3808 = vld [vmem:[#allocation2 + $0x2c] sm:$0xff]
  %v3809 = vld [vmem:[#allocation2 + $0x34] sm:$0xf]
  %v3810 = vld [vmem:[#allocation2 + $0x38] sm:$0xff]
  %v3811 = vld [vmem:[#allocation2 + $0x40] sm:$0xff]
  %v3812 = vld [vmem:[#allocation2 + $0x48] sm:$0xff]
  %v3813 = vld [vmem:[#allocation2 + $0x50] sm:$0xf]
  %v3814 = vld [vmem:[#allocation2 + $0x54] sm:$0xff]
  %v3815 = vld [vmem:[#allocation2 + $0x5c] sm:$0xff]
  %v3816 = vld [vmem:[#allocation2 + $0x64] sm:$0xff]
  %v3817 = vld [vmem:[#allocation2 + $0x6c] sm:$0xf]
  %v3818 = vld [vmem:[#allocation2 + $0x70] sm:$0xff]
  %v3819 = vld [vmem:[#allocation2 + $0x78] sm:$0xff]
  %v3820 = vld [vmem:[#allocation2 + $0x80] sm:$0xff]
  %v3821 = vld [vmem:[#allocation2 + $0x88] sm:$0xf]
  %v3822 = vld [vmem:[#allocation2 + $0x8c] sm:$0xff]
  %v3823 = vld [vmem:[#allocation2 + $0x94] sm:$0xff]
  %v3824 = vld [vmem:[#allocation2 + $0x9c] sm:$0xff]
  %v3825 = vld [vmem:[#allocation2 + $0xa4] sm:$0xf]
  %v3826 = vld [vmem:[#allocation2 + $0xa8] sm:$0xff]
  %v3827 = vld [vmem:[#allocation2 + $0xb0] sm:$0xff]
  %v3828 = vld [vmem:[#allocation2 + $0xb8] sm:$0xff]
  %v3829 = vld [vmem:[#allocation2 + $0xc0] sm:$0xf]
  %v3830 = vld [vmem:[#allocation2 + $0xc4] sm:$0xff]
  %v3831 = vld [vmem:[#allocation2 + $0xcc] sm:$0xff]
  %v3832 = vld [vmem:[#allocation2 + $0xd4] sm:$0xff]
  %v3833 = vld [vmem:[#allocation2 + $0xdc] sm:$0xf]
  %v3834 = vld [vmem:[#allocation2 + $0xe0] sm:$0xff]
  %v3835 = vld [vmem:[#allocation2 + $0xe8] sm:$0xff]
  %v3836 = vld [vmem:[#allocation2 + $0xf0] sm:$0xff]
  %v3837 = vld [vmem:[#allocation2 + $0xf8] sm:$0xf]
  %v3838 = vld [vmem:[#allocation2 + $0xfc] sm:$0xff]
  %v3839 = vld [vmem:[#allocation2 + $0x104] sm:$0xff]
  %v3840 = vld [vmem:[#allocation2 + $0x10c] sm:$0xff]
  %v3841 = vld [vmem:[#allocation2 + $0x114] sm:$0xf]
  %v3842 = vld [vmem:[#allocation2 + $0x118] sm:$0xff]
  %v3843 = vld [vmem:[#allocation2 + $0x120] sm:$0xff]
  %v3844 = vld [vmem:[#allocation2 + $0x128] sm:$0xff]
  %v3845 = vld [vmem:[#allocation2 + $0x130] sm:$0xf]
  %v3846 = vld [vmem:[#allocation2 + $0x134] sm:$0xff]
  %v3847 = vld [vmem:[#allocation2 + $0x13c] sm:$0xff]
  %v3848 = vld [vmem:[#allocation2 + $0x144] sm:$0xff]
  %v3849 = vld [vmem:[#allocation2 + $0x14c] sm:$0xf]
  %v3850 = vld [vmem:[#allocation2 + $0x150] sm:$0xff]
  %v3851 = vld [vmem:[#allocation2 + $0x158] sm:$0xff]
  %v3852 = vld [vmem:[#allocation2 + $0x160] sm:$0xff]
  %v3853 = vld [vmem:[#allocation2 + $0x168] sm:$0xf]
  %v3854 = vld [vmem:[#allocation2 + $0x16c] sm:$0x33]
  %v3855 = vld [vmem:[#allocation2 + $0x174] sm:$0x33]
  %v3856 = vld [vmem:[#allocation2 + $0x17c] sm:$0x33]
  %v3857 = vld [vmem:[#allocation2 + $0x184] sm:$0x3]
  %v3914 = vunpack.c.l.b16 %v3802
  %v3915 = vunpack.c.h.b16 %v3802
  %v3916 = vunpack.c.l.b16 %v3803
  %v3917 = vunpack.c.h.b16 %v3803
  %v3918 = vunpack.c.l.b16 %v3804
  %v3919 = vunpack.c.h.b16 %v3804
  %v3920 = vunpack.c.l.b16 %v3805
  %v3921 = vunpack.c.l.b16 %v3806
  %v3922 = vunpack.c.h.b16 %v3806
  %v3923 = vunpack.c.l.b16 %v3807
  %v3924 = vunpack.c.h.b16 %v3807
  %v3925 = vunpack.c.l.b16 %v3808
  %v3926 = vunpack.c.h.b16 %v3808
  %v3927 = vunpack.c.l.b16 %v3809
  %v3928 = vunpack.c.l.b16 %v3810
  %v3929 = vunpack.c.h.b16 %v3810
  %v3930 = vunpack.c.l.b16 %v3811
  %v3931 = vunpack.c.h.b16 %v3811
  %v3932 = vunpack.c.l.b16 %v3812
  %v3933 = vunpack.c.h.b16 %v3812
  %v3934 = vunpack.c.l.b16 %v3813
  %v3935 = vunpack.c.l.b16 %v3814
  %v3936 = vunpack.c.h.b16 %v3814
  %v3937 = vunpack.c.l.b16 %v3815
  %v3938 = vunpack.c.h.b16 %v3815
  %v3939 = vunpack.c.l.b16 %v3816
  %v3940 = vunpack.c.h.b16 %v3816
  %v3941 = vunpack.c.l.b16 %v3817
  %v3942 = vunpack.c.l.b16 %v3818
  %v3943 = vunpack.c.h.b16 %v3818
  %v3944 = vunpack.c.l.b16 %v3819
  %v3945 = vunpack.c.h.b16 %v3819
  %v3946 = vunpack.c.l.b16 %v3820
  %v3947 = vunpack.c.h.b16 %v3820
  %v3948 = vunpack.c.l.b16 %v3821
  %v3949 = vunpack.c.l.b16 %v3822
  %v3950 = vunpack.c.h.b16 %v3822
  %v3951 = vunpack.c.l.b16 %v3823
  %v3952 = vunpack.c.h.b16 %v3823
  %v3953 = vunpack.c.l.b16 %v3824
  %v3954 = vunpack.c.h.b16 %v3824
  %v3955 = vunpack.c.l.b16 %v3825
  %v3956 = vunpack.c.l.b16 %v3826
  %v3957 = vunpack.c.h.b16 %v3826
  %v3958 = vunpack.c.l.b16 %v3827
  %v3959 = vunpack.c.h.b16 %v3827
  %v3960 = vunpack.c.l.b16 %v3828
  %v3961 = vunpack.c.h.b16 %v3828
  %v3962 = vunpack.c.l.b16 %v3829
  %v3963 = vunpack.c.l.b16 %v3830
  %v3964 = vunpack.c.h.b16 %v3830
  %v3965 = vunpack.c.l.b16 %v3831
  %v3966 = vunpack.c.h.b16 %v3831
  %v3967 = vunpack.c.l.b16 %v3832
  %v3968 = vunpack.c.h.b16 %v3832
  %v3969 = vunpack.c.l.b16 %v3833
  %v3970 = vunpack.c.l.b16 %v3834
  %v3971 = vunpack.c.h.b16 %v3834
  %v3972 = vunpack.c.l.b16 %v3835
  %v3973 = vunpack.c.h.b16 %v3835
  %v3974 = vunpack.c.l.b16 %v3836
  %v3975 = vunpack.c.h.b16 %v3836
  %v3976 = vunpack.c.l.b16 %v3837
  %v3977 = vunpack.c.l.b16 %v3838
  %v3978 = vunpack.c.h.b16 %v3838
  %v3979 = vunpack.c.l.b16 %v3839
  %v3980 = vunpack.c.h.b16 %v3839
  %v3981 = vunpack.c.l.b16 %v3840
  %v3982 = vunpack.c.h.b16 %v3840
  %v3983 = vunpack.c.l.b16 %v3841
  %v3984 = vunpack.c.l.b16 %v3842
  %v3985 = vunpack.c.h.b16 %v3842
  %v3986 = vunpack.c.l.b16 %v3843
  %v3987 = vunpack.c.h.b16 %v3843
  %v3988 = vunpack.c.l.b16 %v3844
  %v3989 = vunpack.c.h.b16 %v3844
  %v3990 = vunpack.c.l.b16 %v3845
  %v3991 = vunpack.c.l.b16 %v3846
  %v3992 = vunpack.c.h.b16 %v3846
  %v3993 = vunpack.c.l.b16 %v3847
  %v3994 = vunpack.c.h.b16 %v3847
  %v3995 = vunpack.c.l.b16 %v3848
  %v3996 = vunpack.c.h.b16 %v3848
  %v3997 = vunpack.c.l.b16 %v3849
  %v3998 = vunpack.c.l.b16 %v3850
  %v3999 = vunpack.c.h.b16 %v3850
  %v4000 = vunpack.c.l.b16 %v3851
  %v4001 = vunpack.c.h.b16 %v3851
  %v4002 = vunpack.c.l.b16 %v3852
  %v4003 = vunpack.c.h.b16 %v3852
  %v4004 = vunpack.c.l.b16 %v3853
  %v4005 = vunpack.c.l.b16 %v3854
  %v4006 = vunpack.c.h.b16 %v3854
  %v4007 = vunpack.c.l.b16 %v3855
  %v4008 = vunpack.c.h.b16 %v3855
  %v4009 = vunpack.c.l.b16 %v3856
  %v4010 = vunpack.c.h.b16 %v3856
  %v4011 = vunpack.c.l.b16 %v3857
  %v4012 = vpack.c.b16 %v3921, %v3914
  %v4013 = vpack.c.b16 %v3922, %v3915
  %v4014 = vpack.c.b16 %v3923, %v3916
  %v4015 = vpack.c.b16 %v3924, %v3917
  %v4016 = vpack.c.b16 %v3925, %v3918
  %v4017 = vpack.c.b16 %v3926, %v3919
  %v4018 = vpack.c.b16 %v3927, %v3920
  %v4019 = vpack.c.b16 %v3935, %v3928
  %v4020 = vpack.c.b16 %v3936, %v3929
  %v4021 = vpack.c.b16 %v3937, %v3930
  %v4022 = vpack.c.b16 %v3938, %v3931
  %v4023 = vpack.c.b16 %v3939, %v3932
  %v4024 = vpack.c.b16 %v3940, %v3933
  %v4025 = vpack.c.b16 %v3941, %v3934
  %v4026 = vpack.c.b16 %v3949, %v3942
  %v4027 = vpack.c.b16 %v3950, %v3943
  %v4028 = vpack.c.b16 %v3951, %v3944
  %v4029 = vpack.c.b16 %v3952, %v3945
  %v4030 = vpack.c.b16 %v3953, %v3946
  %v4031 = vpack.c.b16 %v3954, %v3947
  %v4032 = vpack.c.b16 %v3955, %v3948
  %v4033 = vpack.c.b16 %v3963, %v3956
  %v4034 = vpack.c.b16 %v3964, %v3957
  %v4035 = vpack.c.b16 %v3965, %v3958
  %v4036 = vpack.c.b16 %v3966, %v3959
  %v4037 = vpack.c.b16 %v3967, %v3960
  %v4038 = vpack.c.b16 %v3968, %v3961
  %v4039 = vpack.c.b16 %v3969, %v3962
  %v4040 = vpack.c.b16 %v3977, %v3970
  %v4041 = vpack.c.b16 %v3978, %v3971
  %v4042 = vpack.c.b16 %v3979, %v3972
  %v4043 = vpack.c.b16 %v3980, %v3973
  %v4044 = vpack.c.b16 %v3981, %v3974
  %v4045 = vpack.c.b16 %v3982, %v3975
  %v4046 = vpack.c.b16 %v3983, %v3976
  %v4047 = vpack.c.b16 %v3991, %v3984
  %v4048 = vpack.c.b16 %v3992, %v3985
  %v4049 = vpack.c.b16 %v3993, %v3986
  %v4050 = vpack.c.b16 %v3994, %v3987
  %v4051 = vpack.c.b16 %v3995, %v3988
  %v4052 = vpack.c.b16 %v3996, %v3989
  %v4053 = vpack.c.b16 %v3997, %v3990
  %v4054 = vpack.c.b16 %v4005, %v3998
  %v4055 = vpack.c.b16 %v4006, %v3999
  %v4056 = vpack.c.b16 %v4007, %v4000
  %v4057 = vpack.c.b16 %v4008, %v4001
  %v4058 = vpack.c.b16 %v4009, %v4002
  %v4059 = vpack.c.b16 %v4010, %v4003
  %v4060 = vpack.c.b16 %v4011, %v4004
  %v4104 = vsel %vm1969, %v3801, 0
  %v4107 = vsel %vm1973, %v4054, 0
  %v4110 = vsel %vm1973, %v4055, 0
  %v4113 = vsel %vm1973, %v4056, 0
  %v4116 = vsel %vm1973, %v4057, 0
  %v4119 = vsel %vm1973, %v4058, 0
  %v4122 = vsel %vm1973, %v4059, 0
  %v4125 = vsel %vm1973, %v4060, 0
  %4127 = vmatprep.subr.bf16.mxu0 0
  %4128 = vmatpush1.bf16.msra.mxu0 0
  %4129 = vmatprep.subr.bf16.mxu0 %v4110
  %4130 = vmatpush1.bf16.msra.mxu0 %v4107
  %4131 = vmatprep.subr.bf16.mxu0 %v4048
  %4132 = vmatpush1.bf16.msra.mxu0 %v4047
  %4133 = vmatprep.subr.bf16.mxu0 %v4041
  %4134 = vmatpush1.bf16.msra.mxu0 %v4040
  %4135 = vmatprep.subr.bf16.mxu0 %v4034
  %4136 = vmatpush1.bf16.msra.mxu0 %v4033
  %4137 = vmatprep.subr.bf16.mxu0 %v4027
  %4138 = vmatpush1.bf16.msra.mxu0 %v4026
  %4139 = vmatprep.subr.bf16.mxu0 %v4020
  %4140 = vmatpush1.bf16.msra.mxu0 %v4019
  %4141 = vmatprep.subr.bf16.mxu0 %v4013
  %4142 = vmatpush1.bf16.msra.mxu0 %v4012
  %4143 = vmatprep.subr.bf16.mxu0 0
  %4144 = vmatpush2.bf16.msra.mxu0 0
  %4145 = vmatprep.subr.bf16.mxu0 0
  %4146 = vmatpush2.bf16.msra.mxu0 0
  %4147 = vmatprep.subr.bf16.mxu0 0
  %4148 = vmatpush2.bf16.msra.mxu0 0
  %4149 = vmatprep.subr.bf16.mxu0 0
  %4150 = vmatpush2.bf16.msra.mxu0 0
  %4151 = vmatprep.subr.bf16.mxu0 0
  %4152 = vmatpush2.bf16.msra.mxu0 0
  %4153 = vmatprep.subr.bf16.mxu0 0
  %4154 = vmatpush2.bf16.msra.mxu0 0
  %4155 = vmatprep.subr.bf16.mxu0 0
  %4156 = vmatpush2.bf16.msra.mxu0 0
  %4157 = vmatprep.subr.bf16.mxu0 0
  %4158 = vmatpush2.bf16.msra.mxu0 0
  %4159 = vmatprep.mubr.bf16.mxu0 0
  %4160 = vmatmul.mubr.bf16.gmra.mxu0 %v4104
  %v4161 = vpop.f32.mrf.mxu0
  %v4162 = vadd.f32 0.0, %v4161
  %v4163 = vpop.f32.mrf.mxu0
  %v4164 = vadd.f32 0.0, %v4163
  %v4165 = vpop.f32.mrf.mxu0
  %v4166 = vpop.f32.mrf.mxu0
  %4167 = vdwg.mxu0
  %4168 = vmatprep.subr.bf16.mxu0 0
  %4169 = vmatpush1.bf16.msra.mxu0 0
  %4170 = vmatprep.subr.bf16.mxu0 %v4116
  %4171 = vmatpush1.bf16.msra.mxu0 %v4113
  %4172 = vmatprep.subr.bf16.mxu0 %v4050
  %4173 = vmatpush1.bf16.msra.mxu0 %v4049
  %4174 = vmatprep.subr.bf16.mxu0 %v4043
  %4175 = vmatpush1.bf16.msra.mxu0 %v4042
  %4176 = vmatprep.subr.bf16.mxu0 %v4036
  %4177 = vmatpush1.bf16.msra.mxu0 %v4035
  %4178 = vmatprep.subr.bf16.mxu0 %v4029
  %4179 = vmatpush1.bf16.msra.mxu0 %v4028
  %4180 = vmatprep.subr.bf16.mxu0 %v4022
  %4181 = vmatpush1.bf16.msra.mxu0 %v4021
  %4182 = vmatprep.subr.bf16.mxu0 %v4015
  %4183 = vmatpush1.bf16.msra.mxu0 %v4014
  %4184 = vmatprep.subr.bf16.mxu0 0
  %4185 = vmatpush2.bf16.msra.mxu0 0
  %4186 = vmatprep.subr.bf16.mxu0 0
  %4187 = vmatpush2.bf16.msra.mxu0 0
  %4188 = vmatprep.subr.bf16.mxu0 0
  %4189 = vmatpush2.bf16.msra.mxu0 0
  %4190 = vmatprep.subr.bf16.mxu0 0
  %4191 = vmatpush2.bf16.msra.mxu0 0
  %4192 = vmatprep.subr.bf16.mxu0 0
  %4193 = vmatpush2.bf16.msra.mxu0 0
  %4194 = vmatprep.subr.bf16.mxu0 0
  %4195 = vmatpush2.bf16.msra.mxu0 0
  %4196 = vmatprep.subr.bf16.mxu0 0
  %4197 = vmatpush2.bf16.msra.mxu0 0
  %4198 = vmatprep.subr.bf16.mxu0 0
  %4199 = vmatpush2.bf16.msra.mxu0 0
  %4200 = vmatprep.mubr.bf16.mxu0 0
  %4201 = vmatmul.mubr.bf16.gmra.mxu0 %v4104
  %v4202 = vpop.f32.mrf.mxu0
  %v4203 = vadd.f32 0.0, %v4202
  %v4204 = vpop.f32.mrf.mxu0
  %v4205 = vadd.f32 0.0, %v4204
  %v4206 = vpop.f32.mrf.mxu0
  %v4207 = vpop.f32.mrf.mxu0
  %4208 = vdwg.mxu0
  %4209 = vmatprep.subr.bf16.mxu0 0
  %4210 = vmatpush1.bf16.msra.mxu0 0
  %4211 = vmatprep.subr.bf16.mxu0 %v4122
  %4212 = vmatpush1.bf16.msra.mxu0 %v4119
  %4213 = vmatprep.subr.bf16.mxu0 %v4052
  %4214 = vmatpush1.bf16.msra.mxu0 %v4051
  %4215 = vmatprep.subr.bf16.mxu0 %v4045
  %4216 = vmatpush1.bf16.msra.mxu0 %v4044
  %4217 = vmatprep.subr.bf16.mxu0 %v4038
  %4218 = vmatpush1.bf16.msra.mxu0 %v4037
  %4219 = vmatprep.subr.bf16.mxu0 %v4031
  %4220 = vmatpush1.bf16.msra.mxu0 %v4030
  %4221 = vmatprep.subr.bf16.mxu0 %v4024
  %4222 = vmatpush1.bf16.msra.mxu0 %v4023
  %4223 = vmatprep.subr.bf16.mxu0 %v4017
  %4224 = vmatpush1.bf16.msra.mxu0 %v4016
  %4225 = vmatprep.subr.bf16.mxu0 0
  %4226 = vmatpush2.bf16.msra.mxu0 0
  %4227 = vmatprep.subr.bf16.mxu0 0
  %4228 = vmatpush2.bf16.msra.mxu0 0
  %4229 = vmatprep.subr.bf16.mxu0 0
  %4230 = vmatpush2.bf16.msra.mxu0 0
  %4231 = vmatprep.subr.bf16.mxu0 0
  %4232 = vmatpush2.bf16.msra.mxu0 0
  %4233 = vmatprep.subr.bf16.mxu0 0
  %4234 = vmatpush2.bf16.msra.mxu0 0
  %4235 = vmatprep.subr.bf16.mxu0 0
  %4236 = vmatpush2.bf16.msra.mxu0 0
  %4237 = vmatprep.subr.bf16.mxu0 0
  %4238 = vmatpush2.bf16.msra.mxu0 0
  %4239 = vmatprep.subr.bf16.mxu0 0
  %4240 = vmatpush2.bf16.msra.mxu0 0
  %4241 = vmatprep.mubr.bf16.mxu0 0
  %4242 = vmatmul.mubr.bf16.gmra.mxu0 %v4104
  %v4243 = vpop.f32.mrf.mxu0
  %v4244 = vadd.f32 0.0, %v4243
  %v4245 = vpop.f32.mrf.mxu0
  %v4246 = vadd.f32 0.0, %v4245
  %v4247 = vpop.f32.mrf.mxu0
  %v4248 = vpop.f32.mrf.mxu0
  %4249 = vdwg.mxu0
  %4250 = vmatprep.subr.bf16.mxu0 0
  %4251 = vmatpush1.bf16.msra.mxu0 0
  %4252 = vmatprep.subr.bf16.mxu0 0
  %4253 = vmatpush1.bf16.msra.mxu0 %v4125
  %4254 = vmatprep.subr.bf16.mxu0 0
  %4255 = vmatpush1.bf16.msra.mxu0 %v4053
  %4256 = vmatprep.subr.bf16.mxu0 0
  %4257 = vmatpush1.bf16.msra.mxu0 %v4046
  %4258 = vmatprep.subr.bf16.mxu0 0
  %4259 = vmatpush1.bf16.msra.mxu0 %v4039
  %4260 = vmatprep.subr.bf16.mxu0 0
  %4261 = vmatpush1.bf16.msra.mxu0 %v4032
  %4262 = vmatprep.subr.bf16.mxu0 0
  %4263 = vmatpush1.bf16.msra.mxu0 %v4025
  %4264 = vmatprep.subr.bf16.mxu0 0
  %4265 = vmatpush1.bf16.msra.mxu0 %v4018
  %4266 = vmatprep.subr.bf16.mxu0 0
  %4267 = vmatpush2.bf16.msra.mxu0 0
  %4268 = vmatprep.subr.bf16.mxu0 0
  %4269 = vmatpush2.bf16.msra.mxu0 0
  %4270 = vmatprep.subr.bf16.mxu0 0
  %4271 = vmatpush2.bf16.msra.mxu0 0
  %4272 = vmatprep.subr.bf16.mxu0 0
  %4273 = vmatpush2.bf16.msra.mxu0 0
  %4274 = vmatprep.subr.bf16.mxu0 0
  %4275 = vmatpush2.bf16.msra.mxu0 0
  %4276 = vmatprep.subr.bf16.mxu0 0
  %4277 = vmatpush2.bf16.msra.mxu0 0
  %4278 = vmatprep.subr.bf16.mxu0 0
  %4279 = vmatpush2.bf16.msra.mxu0 0
  %4280 = vmatprep.subr.bf16.mxu0 0
  %4281 = vmatpush2.bf16.msra.mxu0 0
  %4282 = vmatprep.mubr.bf16.mxu0 0
  %4283 = vmatmul.mubr.bf16.gmra.mxu0 %v4104
  %v4284 = vpop.f32.mrf.mxu0
  %v4285 = vadd.f32 0.0, %v4284
  %v4286 = vpop.f32.mrf.mxu0
  %v4287 = vpop.f32.mrf.mxu0
  %v4288 = vpop.f32.mrf.mxu0
  %4289 = vdwg.mxu0
  %v4290 = vmax.f32 %v4162, 0.0
  %v4291 = vmax.f32 %v4164, 0.0
  %v4292 = vmax.f32 %v4203, 0.0
  %v4293 = vmax.f32 %v4205, 0.0
  %v4294 = vmax.f32 %v4244, 0.0
  %v4295 = vmax.f32 %v4246, 0.0
  %v4296 = vmax.f32 %v4285, 0.0
  %s4297 = scalar_lea.vmem %s2, 56
  %4298 = vst [vmem:[%s4297] sm:$0xff] %v4290
  %4299 = vst [vmem:[%s4297 + $0x8] sm:$0xff] %v4291
  %4300 = vst [vmem:[%s4297 + $0x10] sm:$0xff] %v4292
  %4301 = vst [vmem:[%s4297 + $0x18] sm:$0xff] %v4293
  %4302 = vst [vmem:[%s4297 + $0x20] sm:$0xff] %v4294
  %4303 = vst [vmem:[%s4297 + $0x28] sm:$0xff] %v4295
  %4304 = vst [vmem:[%s4297 + $0x30] sm:$0xff] %v4296
  // Predicated region
  $region10: #{out_block_forward.1} parent=0 // pred_check
    _
  $region11: #{out_block_forward.1} parent=0 // pred_check_branch
    %4306 = sbr.rel (0) target = $region13
  $region12: #{out_block_forward.1} parent=0 // pred_region
    _
  $region13: #{out_block_forward.1} parent=0 // pred_fallthru
    _
  // Predicated region
  $region14: #{out_block_forward.1} parent=0 // pred_check
    _
  $region15: #{out_block_forward.1} parent=0 // pred_check_branch
    %4308 = sbr.rel (0) target = $region17
  $region16: #{out_block_forward.1} parent=0 // pred_region
    _
  $region17: #{out_block_forward.1} parent=0 // pred_fallthru
    _

</llo_original>
